<compile_context>
chip_gen: v7x
topology: tpu7x:2x2x1
jax: 0.10.0
libtpu: 0.0.40
codegen_flags: <defaults>
</compile_context>

<pallas_src>
import jax
import jax.numpy as jnp
from jax import lax
from jax.experimental import pallas as pl
from jax.experimental.pallas import tpu as pltpu


def _ds(start, size, stride):
    if stride == 1:
        return pl.ds(start, size)
    return pl.ds(start, size, stride)


def _make_conv_bn_kernel(KH, KW, T_OH, OW, stride, dilation, relu):
    def kernel(x_ref, w_ref, shift_ref, o_ref):
        # x_ref:     (1, H_ext, W_ext, Cin)   whole padded image of batch element n (resident)
        # w_ref:     (KH, KW, Cin, Cout_pad)  BN-scale-folded weights (resident)
        # shift_ref: (1, Cout_pad)            BN shift (f32)
        # o_ref:     (1, T_OH, OW, Cout_pad)  output tile (rows [t*T_OH, (t+1)*T_OH))
        t = pl.program_id(1)
        row0 = pl.multiple_of(t * (T_OH * stride), T_OH * stride)

        cin = x_ref.shape[-1]
        cout = o_ref.shape[-1]
        m = T_OH * OW

        acc = jnp.zeros((m, cout), dtype=jnp.float32)
        for kh in range(KH):
            for kw in range(KW):
                # Shifted (strided) window of the resident image: (T_OH, OW, Cin).
                patch = x_ref[0,
                              _ds(row0 + kh * dilation, T_OH, stride),
                              _ds(kw * dilation, OW, stride),
                              :]
                patch2d = patch.reshape(m, cin)
                wk = w_ref[kh, kw]                       # (Cin, Cout_pad)
                acc = acc + jnp.dot(patch2d, wk,
                                    preferred_element_type=jnp.float32)

        y = acc + shift_ref[...]                          # broadcast (1, Cout_pad)
        if relu:
            y = jnp.maximum(y, 0.0)
        o_ref[0] = y.reshape(T_OH, OW, cout).astype(o_ref.dtype)

    return kernel


def gelu_conv2d(x, weight, gamma, beta, running_mean, running_var, *,
                stride=1, padding=0, dilation=1, relu=False, eps=1e-5,
                compute_dtype=None):
    """Forward of GeluConv2d: Conv2d(bias=False) -> BatchNorm2d(eval) [-> ReLU].

    x:      (N, Cin, H, W)       NCHW, like PyTorch
    weight: (Cout, Cin, KH, KW)  OIHW, like PyTorch
    gamma/beta/running_mean/running_var: (Cout,)
    compute_dtype: optional MXU input dtype (e.g. jnp.bfloat16); accumulation is always f32.
    """
    N, Cin, H, W = x.shape
    Cout, Cin_w, KH, KW = weight.shape
    assert Cin == Cin_w

    OH = (H + 2 * padding - dilation * (KH - 1) - 1) // stride + 1
    OW = (W + 2 * padding - dilation * (KW - 1) - 1) // stride + 1

    out_dtype = x.dtype
    cdt = jnp.dtype(compute_dtype) if compute_dtype is not None else jnp.dtype(x.dtype)

    # ---- Fold BatchNorm (eval mode): scale goes into the weights (f32), shift stays additive ----
    inv_std = 1.0 / jnp.sqrt(running_var.astype(jnp.float32) + eps)
    scale = gamma.astype(jnp.float32) * inv_std                      # (Cout,)
    shift = beta.astype(jnp.float32) - running_mean.astype(jnp.float32) * scale

    # ---- Lane-dense output channels ----
    Cout_pad = pl.cdiv(Cout, 128) * 128

    # Weight OIHW -> HWIO, fold BN scale in f32, then cast + pad Cout with zero columns.
    w = weight.astype(jnp.float32).transpose(2, 3, 1, 0) * scale[None, None, None, :]
    w = w.astype(cdt)
    if Cout_pad != Cout:
        w = jnp.pad(w, ((0, 0), (0, 0), (0, 0), (0, Cout_pad - Cout)))
        shift_p = jnp.pad(shift, (0, Cout_pad - Cout))
    else:
        shift_p = shift
    shift_p = shift_p.reshape(1, Cout_pad)

    # ---- Output row-tile size (M of the matmul = T_OH * OW) ----
    T_OH = max(1, min(OH, pl.cdiv(512, OW)))
    # Keep f32 accumulator + output tile modest so VMEM stays comfortable on v7x (64 MiB/TC).
    while T_OH > 1 and T_OH * OW * Cout_pad * 4 > (8 << 20):
        T_OH = (T_OH + 1) // 2
    # Guarantee >= 2 grid steps so both v7x TensorCores can be used.
    if N * pl.cdiv(OH, T_OH) < 2 and OH > 1:
        T_OH = pl.cdiv(OH, 2)
    n_t = pl.cdiv(OH, T_OH)
    OH_pad = n_t * T_OH

    # ---- Input: NCHW -> NHWC, conv zero-padding + extra bottom rows so padded OH tiles stay
    #      in-bounds (no OOB reads on the resident VMEM image) ----
    H_ext = max(H + 2 * padding, (OH_pad - 1) * stride + dilation * (KH - 1) + 1)
    W_ext = W + 2 * padding
    x_nhwc = jnp.transpose(x, (0, 2, 3, 1)).astype(cdt)
    x_pad = jnp.pad(x_nhwc, ((0, 0),
                             (padding, H_ext - H - padding),
                             (padding, padding),
                             (0, 0)))

    grid = (N, n_t)
    kernel = _make_conv_bn_kernel(KH, KW, T_OH, OW, stride, dilation, relu)

    # VMEM budget estimate (double-buffered blocks + f32 accumulator temp).
    in_item = jnp.dtype(cdt).itemsize
    out_item = jnp.dtype(out_dtype).itemsize
    est = (2 * H_ext * W_ext * Cin * in_item
           + 2 * KH * KW * Cin * Cout_pad * in_item
           + 2 * T_OH * OW * Cout_pad * out_item
           + T_OH * OW * Cout_pad * 4
           + 2 * Cout_pad * 4)
    vmem_limit = int(min(48 << 20, max(32 << 20, 2 * est)))

    out = pl.pallas_call(
        kernel,
        out_shape=jax.ShapeDtypeStruct((N, OH_pad, OW, Cout_pad), out_dtype),
        grid_spec=pltpu.PrefetchScalarGridSpec(
            num_scalar_prefetch=0,
            grid=grid,
            in_specs=[
                # whole padded image of batch element n; block index is constant in t, so it is
                # DMA'd once per image (1x input traffic, no im2col expansion)
                pl.BlockSpec((1, H_ext, W_ext, Cin), lambda n, t: (n, 0, 0, 0)),
                pl.BlockSpec((KH, KW, Cin, Cout_pad), lambda n, t: (0, 0, 0, 0)),
                pl.BlockSpec((1, Cout_pad), lambda n, t: (0, 0)),
            ],
            out_specs=pl.BlockSpec((1, T_OH, OW, Cout_pad), lambda n, t: (n, t, 0, 0)),
        ),
        compiler_params=pltpu.CompilerParams(
            dimension_semantics=("parallel", "parallel"),
            vmem_limit_bytes=vmem_limit,
        ),
    )(x_pad, w, shift_p)

    out = out[:, :OH, :, :Cout]                       # drop OH-tile / Cout-lane padding
    return jnp.transpose(out, (0, 3, 1, 2))           # NHWC -> NCHW to match PyTorch


def _reference(x, weight, gamma, beta, running_mean, running_var, *,
               stride, padding, dilation, relu, eps):
    conv = lax.conv_general_dilated(
        x, weight, window_strides=(stride, stride),
        padding=[(padding, padding), (padding, padding)],
        rhs_dilation=(dilation, dilation),
        dimension_numbers=('NCHW', 'OIHW', 'NCHW'))
    inv_std = 1.0 / jnp.sqrt(running_var + eps)
    y = ((conv - running_mean[None, :, None, None]) *
         (gamma * inv_std)[None, :, None, None] + beta[None, :, None, None])
    if relu:
        y = jnp.maximum(y, 0.0)
    return y


if __name__ == "__main__":
    key = jax.random.PRNGKey(0)
    k_x, k_w, k_g, k_b, k_m, k_v = jax.random.split(key, 6)

    # Small shapes consistent with the module: N=2, Cin=4, Cout=8, H=W=16, 3x3 conv, pad=1.
    N, Cin, H, W = 2, 4, 16, 16
    Cout, KH, KW = 8, 3, 3
    stride, padding, dilation = 1, 1, 1
    eps = 1e-5

    x = jax.random.normal(k_x, (N, Cin, H, W), dtype=jnp.float32)
    weight = jax.random.normal(k_w, (Cout, Cin, KH, KW), dtype=jnp.float32) * 0.1
    gamma = jax.random.uniform(k_g, (Cout,), dtype=jnp.float32, minval=0.5, maxval=1.5)
    beta = jax.random.normal(k_b, (Cout,), dtype=jnp.float32) * 0.5
    running_mean = jax.random.normal(k_m, (Cout,), dtype=jnp.float32) * 0.1
    running_var = jax.random.uniform(k_v, (Cout,), dtype=jnp.float32, minval=0.5, maxval=1.5)

    # 1) f32 compute, no ReLU (tight check vs XLA reference).
    y = gelu_conv2d(x, weight, gamma, beta, running_mean, running_var,
                    stride=stride, padding=padding, dilation=dilation,
                    relu=False, eps=eps)
    jax.block_until_ready(y)
    y_ref = _reference(x, weight, gamma, beta, running_mean, running_var,
                       stride=stride, padding=padding, dilation=dilation,
                       relu=False, eps=eps)
    assert y.shape == (N, Cout, H, W) and y.dtype == x.dtype
    assert jnp.allclose(y, y_ref, atol=1e-3, rtol=1e-3), (
        f"f32 mismatch vs reference, max abs diff = {jnp.max(jnp.abs(y - y_ref))}")

    # 2) bf16 MXU compute + fused ReLU (f32 accumulation; looser tolerance vs f32 reference).
    y_bf = gelu_conv2d(x, weight, gamma, beta, running_mean, running_var,
                       stride=stride, padding=padding, dilation=dilation,
                       relu=True, eps=eps, compute_dtype=jnp.bfloat16)
    jax.block_until_ready(y_bf)
    y_ref_r = _reference(x, weight, gamma, beta, running_mean, running_var,
                         stride=stride, padding=padding, dilation=dilation,
                         relu=True, eps=eps)
    assert y_bf.shape == (N, Cout, H, W) and y_bf.dtype == x.dtype
    assert jnp.allclose(y_bf, y_ref_r, atol=5e-2, rtol=5e-2), (
        f"bf16 mismatch vs reference, max abs diff = {jnp.max(jnp.abs(y_bf - y_ref_r))}")

    print("KERNEL_OK")
</pallas_src>

<mosaic_0001>
module attributes {stable_mosaic.version = 11 : i64} {
  func.func @kernel(%arg0: i32, %arg1: i32, %arg2: memref<1x18x18x4xf32, #tpu.memory_space<vmem>>, %arg3: memref<3x3x4x128xf32, #tpu.memory_space<vmem>>, %arg4: memref<1x128xf32, #tpu.memory_space<vmem>>, %arg5: memref<1x16x16x128xf32, #tpu.memory_space<vmem>>) attributes {dimension_semantics = [#tpu.dimension_semantics<parallel>, #tpu.dimension_semantics<parallel>], iteration_bounds = array<i64: 2, 1>, scalar_prefetch = 0 : i64, scratch_operands = 0 : i64, tpu.core_type = #tpu.core_type<tc>, window_params = [{transform_indices = @transform_0, window_bounds = array<i64: 1, 18, 18, 4>}, {pipeline_mode = #tpu.pipeline_mode<synchronous>, transform_indices = @transform_1, window_bounds = array<i64: 3, 3, 4, 128>}, {pipeline_mode = #tpu.pipeline_mode<synchronous>, transform_indices = @transform_2, window_bounds = array<i64: 1, 128>}, {transform_indices = @transform_3, window_bounds = array<i64: 1, 16, 16, 128>}]} {
    %c16_i32 = arith.constant 16 : i32
    %0 = arith.muli %arg1, %c16_i32 : i32
    %1 = tpu.assume_multiple %0, 16 : i32
    %cst = arith.constant 0.000000e+00 : f32
    %2 = vector.broadcast %cst : f32 to vector<256x128xf32>
    %c0_i32 = arith.constant 0 : i32
    %3 = arith.addi %1, %c0_i32 : i32
    %c0 = arith.constant 0 : index
    %4 = arith.index_cast %3 : i32 to index
    %c0_0 = arith.constant 0 : index
    %c0_1 = arith.constant 0 : index
    %5 = vector.load %arg2[%c0, %4, %c0_0, %c0_1] : memref<1x18x18x4xf32, #tpu.memory_space<vmem>>, vector<1x16x16x4xf32>
    %6 = vector.shape_cast %5 : vector<1x16x16x4xf32> to vector<16x16x4xf32>
    %7 = vector.shape_cast %6 : vector<16x16x4xf32> to vector<256x4xf32>
    %c0_2 = arith.constant 0 : index
    %c0_3 = arith.constant 0 : index
    %c0_4 = arith.constant 0 : index
    %c0_5 = arith.constant 0 : index
    %8 = vector.load %arg3[%c0_2, %c0_3, %c0_4, %c0_5] : memref<3x3x4x128xf32, #tpu.memory_space<vmem>>, vector<1x1x4x128xf32>
    %9 = vector.shape_cast %8 : vector<1x1x4x128xf32> to vector<4x128xf32>
    %cst_6 = arith.constant dense<0.000000e+00> : vector<256x128xf32>
    %10 = tpu.matmul %7, %9, %cst_6 {dimension_numbers = #tpu.dot_dimension_numbers<[1], [0], [0], [1], [0, 0, 1, 1], [], []>} : vector<256x4xf32>, vector<4x128xf32>, vector<256x128xf32> -> vector<256x128xf32>
    %11 = arith.addf %2, %10 : vector<256x128xf32>
    %c0_i32_7 = arith.constant 0 : i32
    %12 = arith.addi %1, %c0_i32_7 : i32
    %c0_8 = arith.constant 0 : index
    %13 = arith.index_cast %12 : i32 to index
    %c1 = arith.constant 1 : index
    %c0_9 = arith.constant 0 : index
    %14 = vector.load %arg2[%c0_8, %13, %c1, %c0_9] : memref<1x18x18x4xf32, #tpu.memory_space<vmem>>, vector<1x16x16x4xf32>
    %15 = vector.shape_cast %14 : vector<1x16x16x4xf32> to vector<16x16x4xf32>
    %16 = vector.shape_cast %15 : vector<16x16x4xf32> to vector<256x4xf32>
    %c0_10 = arith.constant 0 : index
    %c1_11 = arith.constant 1 : index
    %c0_12 = arith.constant 0 : index
    %c0_13 = arith.constant 0 : index
    %17 = vector.load %arg3[%c0_10, %c1_11, %c0_12, %c0_13] : memref<3x3x4x128xf32, #tpu.memory_space<vmem>>, vector<1x1x4x128xf32>
    %18 = vector.shape_cast %17 : vector<1x1x4x128xf32> to vector<4x128xf32>
    %cst_14 = arith.constant dense<0.000000e+00> : vector<256x128xf32>
    %19 = tpu.matmul %16, %18, %cst_14 {dimension_numbers = #tpu.dot_dimension_numbers<[1], [0], [0], [1], [0, 0, 1, 1], [], []>} : vector<256x4xf32>, vector<4x128xf32>, vector<256x128xf32> -> vector<256x128xf32>
    %20 = arith.addf %11, %19 : vector<256x128xf32>
    %c0_i32_15 = arith.constant 0 : i32
    %21 = arith.addi %1, %c0_i32_15 : i32
    %c0_16 = arith.constant 0 : index
    %22 = arith.index_cast %21 : i32 to index
    %c2 = arith.constant 2 : index
    %c0_17 = arith.constant 0 : index
    %23 = vector.load %arg2[%c0_16, %22, %c2, %c0_17] : memref<1x18x18x4xf32, #tpu.memory_space<vmem>>, vector<1x16x16x4xf32>
    %24 = vector.shape_cast %23 : vector<1x16x16x4xf32> to vector<16x16x4xf32>
    %25 = vector.shape_cast %24 : vector<16x16x4xf32> to vector<256x4xf32>
    %c0_18 = arith.constant 0 : index
    %c2_19 = arith.constant 2 : index
    %c0_20 = arith.constant 0 : index
    %c0_21 = arith.constant 0 : index
    %26 = vector.load %arg3[%c0_18, %c2_19, %c0_20, %c0_21] : memref<3x3x4x128xf32, #tpu.memory_space<vmem>>, vector<1x1x4x128xf32>
    %27 = vector.shape_cast %26 : vector<1x1x4x128xf32> to vector<4x128xf32>
    %cst_22 = arith.constant dense<0.000000e+00> : vector<256x128xf32>
    %28 = tpu.matmul %25, %27, %cst_22 {dimension_numbers = #tpu.dot_dimension_numbers<[1], [0], [0], [1], [0, 0, 1, 1], [], []>} : vector<256x4xf32>, vector<4x128xf32>, vector<256x128xf32> -> vector<256x128xf32>
    %29 = arith.addf %20, %28 : vector<256x128xf32>
    %c1_i32 = arith.constant 1 : i32
    %30 = arith.addi %1, %c1_i32 : i32
    %c0_23 = arith.constant 0 : index
    %31 = arith.index_cast %30 : i32 to index
    %c0_24 = arith.constant 0 : index
    %c0_25 = arith.constant 0 : index
    %32 = vector.load %arg2[%c0_23, %31, %c0_24, %c0_25] : memref<1x18x18x4xf32, #tpu.memory_space<vmem>>, vector<1x16x16x4xf32>
    %33 = vector.shape_cast %32 : vector<1x16x16x4xf32> to vector<16x16x4xf32>
    %34 = vector.shape_cast %33 : vector<16x16x4xf32> to vector<256x4xf32>
    %c1_26 = arith.constant 1 : index
    %c0_27 = arith.constant 0 : index
    %c0_28 = arith.constant 0 : index
    %c0_29 = arith.constant 0 : index
    %35 = vector.load %arg3[%c1_26, %c0_27, %c0_28, %c0_29] : memref<3x3x4x128xf32, #tpu.memory_space<vmem>>, vector<1x1x4x128xf32>
    %36 = vector.shape_cast %35 : vector<1x1x4x128xf32> to vector<4x128xf32>
    %cst_30 = arith.constant dense<0.000000e+00> : vector<256x128xf32>
    %37 = tpu.matmul %34, %36, %cst_30 {dimension_numbers = #tpu.dot_dimension_numbers<[1], [0], [0], [1], [0, 0, 1, 1], [], []>} : vector<256x4xf32>, vector<4x128xf32>, vector<256x128xf32> -> vector<256x128xf32>
    %38 = arith.addf %29, %37 : vector<256x128xf32>
    %c1_i32_31 = arith.constant 1 : i32
    %39 = arith.addi %1, %c1_i32_31 : i32
    %c0_32 = arith.constant 0 : index
    %40 = arith.index_cast %39 : i32 to index
    %c1_33 = arith.constant 1 : index
    %c0_34 = arith.constant 0 : index
    %41 = vector.load %arg2[%c0_32, %40, %c1_33, %c0_34] : memref<1x18x18x4xf32, #tpu.memory_space<vmem>>, vector<1x16x16x4xf32>
    %42 = vector.shape_cast %41 : vector<1x16x16x4xf32> to vector<16x16x4xf32>
    %43 = vector.shape_cast %42 : vector<16x16x4xf32> to vector<256x4xf32>
    %c1_35 = arith.constant 1 : index
    %c1_36 = arith.constant 1 : index
    %c0_37 = arith.constant 0 : index
    %c0_38 = arith.constant 0 : index
    %44 = vector.load %arg3[%c1_35, %c1_36, %c0_37, %c0_38] : memref<3x3x4x128xf32, #tpu.memory_space<vmem>>, vector<1x1x4x128xf32>
    %45 = vector.shape_cast %44 : vector<1x1x4x128xf32> to vector<4x128xf32>
    %cst_39 = arith.constant dense<0.000000e+00> : vector<256x128xf32>
    %46 = tpu.matmul %43, %45, %cst_39 {dimension_numbers = #tpu.dot_dimension_numbers<[1], [0], [0], [1], [0, 0, 1, 1], [], []>} : vector<256x4xf32>, vector<4x128xf32>, vector<256x128xf32> -> vector<256x128xf32>
    %47 = arith.addf %38, %46 : vector<256x128xf32>
    %c1_i32_40 = arith.constant 1 : i32
    %48 = arith.addi %1, %c1_i32_40 : i32
    %c0_41 = arith.constant 0 : index
    %49 = arith.index_cast %48 : i32 to index
    %c2_42 = arith.constant 2 : index
    %c0_43 = arith.constant 0 : index
    %50 = vector.load %arg2[%c0_41, %49, %c2_42, %c0_43] : memref<1x18x18x4xf32, #tpu.memory_space<vmem>>, vector<1x16x16x4xf32>
    %51 = vector.shape_cast %50 : vector<1x16x16x4xf32> to vector<16x16x4xf32>
    %52 = vector.shape_cast %51 : vector<16x16x4xf32> to vector<256x4xf32>
    %c1_44 = arith.constant 1 : index
    %c2_45 = arith.constant 2 : index
    %c0_46 = arith.constant 0 : index
    %c0_47 = arith.constant 0 : index
    %53 = vector.load %arg3[%c1_44, %c2_45, %c0_46, %c0_47] : memref<3x3x4x128xf32, #tpu.memory_space<vmem>>, vector<1x1x4x128xf32>
    %54 = vector.shape_cast %53 : vector<1x1x4x128xf32> to vector<4x128xf32>
    %cst_48 = arith.constant dense<0.000000e+00> : vector<256x128xf32>
    %55 = tpu.matmul %52, %54, %cst_48 {dimension_numbers = #tpu.dot_dimension_numbers<[1], [0], [0], [1], [0, 0, 1, 1], [], []>} : vector<256x4xf32>, vector<4x128xf32>, vector<256x128xf32> -> vector<256x128xf32>
    %56 = arith.addf %47, %55 : vector<256x128xf32>
    %c2_i32 = arith.constant 2 : i32
    %57 = arith.addi %1, %c2_i32 : i32
    %c0_49 = arith.constant 0 : index
    %58 = arith.index_cast %57 : i32 to index
    %c0_50 = arith.constant 0 : index
    %c0_51 = arith.constant 0 : index
    %59 = vector.load %arg2[%c0_49, %58, %c0_50, %c0_51] : memref<1x18x18x4xf32, #tpu.memory_space<vmem>>, vector<1x16x16x4xf32>
    %60 = vector.shape_cast %59 : vector<1x16x16x4xf32> to vector<16x16x4xf32>
    %61 = vector.shape_cast %60 : vector<16x16x4xf32> to vector<256x4xf32>
    %c2_52 = arith.constant 2 : index
    %c0_53 = arith.constant 0 : index
    %c0_54 = arith.constant 0 : index
    %c0_55 = arith.constant 0 : index
    %62 = vector.load %arg3[%c2_52, %c0_53, %c0_54, %c0_55] : memref<3x3x4x128xf32, #tpu.memory_space<vmem>>, vector<1x1x4x128xf32>
    %63 = vector.shape_cast %62 : vector<1x1x4x128xf32> to vector<4x128xf32>
    %cst_56 = arith.constant dense<0.000000e+00> : vector<256x128xf32>
    %64 = tpu.matmul %61, %63, %cst_56 {dimension_numbers = #tpu.dot_dimension_numbers<[1], [0], [0], [1], [0, 0, 1, 1], [], []>} : vector<256x4xf32>, vector<4x128xf32>, vector<256x128xf32> -> vector<256x128xf32>
    %65 = arith.addf %56, %64 : vector<256x128xf32>
    %c2_i32_57 = arith.constant 2 : i32
    %66 = arith.addi %1, %c2_i32_57 : i32
    %c0_58 = arith.constant 0 : index
    %67 = arith.index_cast %66 : i32 to index
    %c1_59 = arith.constant 1 : index
    %c0_60 = arith.constant 0 : index
    %68 = vector.load %arg2[%c0_58, %67, %c1_59, %c0_60] : memref<1x18x18x4xf32, #tpu.memory_space<vmem>>, vector<1x16x16x4xf32>
    %69 = vector.shape_cast %68 : vector<1x16x16x4xf32> to vector<16x16x4xf32>
    %70 = vector.shape_cast %69 : vector<16x16x4xf32> to vector<256x4xf32>
    %c2_61 = arith.constant 2 : index
    %c1_62 = arith.constant 1 : index
    %c0_63 = arith.constant 0 : index
    %c0_64 = arith.constant 0 : index
    %71 = vector.load %arg3[%c2_61, %c1_62, %c0_63, %c0_64] : memref<3x3x4x128xf32, #tpu.memory_space<vmem>>, vector<1x1x4x128xf32>
    %72 = vector.shape_cast %71 : vector<1x1x4x128xf32> to vector<4x128xf32>
    %cst_65 = arith.constant dense<0.000000e+00> : vector<256x128xf32>
    %73 = tpu.matmul %70, %72, %cst_65 {dimension_numbers = #tpu.dot_dimension_numbers<[1], [0], [0], [1], [0, 0, 1, 1], [], []>} : vector<256x4xf32>, vector<4x128xf32>, vector<256x128xf32> -> vector<256x128xf32>
    %74 = arith.addf %65, %73 : vector<256x128xf32>
    %c2_i32_66 = arith.constant 2 : i32
    %75 = arith.addi %1, %c2_i32_66 : i32
    %c0_67 = arith.constant 0 : index
    %76 = arith.index_cast %75 : i32 to index
    %c2_68 = arith.constant 2 : index
    %c0_69 = arith.constant 0 : index
    %77 = vector.load %arg2[%c0_67, %76, %c2_68, %c0_69] : memref<1x18x18x4xf32, #tpu.memory_space<vmem>>, vector<1x16x16x4xf32>
    %78 = vector.shape_cast %77 : vector<1x16x16x4xf32> to vector<16x16x4xf32>
    %79 = vector.shape_cast %78 : vector<16x16x4xf32> to vector<256x4xf32>
    %c2_70 = arith.constant 2 : index
    %c2_71 = arith.constant 2 : index
    %c0_72 = arith.constant 0 : index
    %c0_73 = arith.constant 0 : index
    %80 = vector.load %arg3[%c2_70, %c2_71, %c0_72, %c0_73] : memref<3x3x4x128xf32, #tpu.memory_space<vmem>>, vector<1x1x4x128xf32>
    %81 = vector.shape_cast %80 : vector<1x1x4x128xf32> to vector<4x128xf32>
    %cst_74 = arith.constant dense<0.000000e+00> : vector<256x128xf32>
    %82 = tpu.matmul %79, %81, %cst_74 {dimension_numbers = #tpu.dot_dimension_numbers<[1], [0], [0], [1], [0, 0, 1, 1], [], []>} : vector<256x4xf32>, vector<4x128xf32>, vector<256x128xf32> -> vector<256x128xf32>
    %83 = arith.addf %74, %82 : vector<256x128xf32>
    %c0_75 = arith.constant 0 : index
    %c0_76 = arith.constant 0 : index
    %84 = vector.load %arg4[%c0_75, %c0_76] : memref<1x128xf32, #tpu.memory_space<vmem>>, vector<1x128xf32>
    %85 = vector.broadcast %84 : vector<1x128xf32> to vector<256x128xf32>
    %86 = arith.addf %83, %85 : vector<256x128xf32>
    %87 = vector.shape_cast %86 : vector<256x128xf32> to vector<16x16x128xf32>
    %c0_77 = arith.constant 0 : index
    %c0_78 = arith.constant 0 : index
    %c0_79 = arith.constant 0 : index
    %c0_80 = arith.constant 0 : index
    %88 = vector.load %arg5[%c0_77, %c0_78, %c0_79, %c0_80] : memref<1x16x16x128xf32, #tpu.memory_space<vmem>>, vector<1x16x16x128xf32>
    %89 = vector.shape_cast %88 : vector<1x16x16x128xf32> to vector<16x16x128xf32>
    %90 = vector.shape_cast %87 : vector<16x16x128xf32> to vector<1x16x16x128xf32>
    tpu.vector_store %arg5[%c0_77, %c0_78, %c0_79, %c0_80], %90 {strides = array<i32>} : memref<1x16x16x128xf32, #tpu.memory_space<vmem>>, vector<1x16x16x128xf32>,
    return
  }
  func.func @transform_0(%arg0: i32, %arg1: i32) -> (i32, i32, i32, i32) {
    %c0_i32 = arith.constant 0 : i32
    %c0_i32_0 = arith.constant 0 : i32
    %c0_i32_1 = arith.constant 0 : i32
    %c0_i32_2 = arith.constant 0 : i32
    return %arg0, %c0_i32, %c0_i32_0, %c0_i32_1 : i32, i32, i32, i32
  }
  func.func @transform_1(%arg0: i32, %arg1: i32) -> (i32, i32, i32, i32) {
    %c0_i32 = arith.constant 0 : i32
    %c0_i32_0 = arith.constant 0 : i32
    %c0_i32_1 = arith.constant 0 : i32
    %c0_i32_2 = arith.constant 0 : i32
    %c0_i32_3 = arith.constant 0 : i32
    return %c0_i32, %c0_i32_0, %c0_i32_1, %c0_i32_2 : i32, i32, i32, i32
  }
  func.func @transform_2(%arg0: i32, %arg1: i32) -> (i32, i32) {
    %c0_i32 = arith.constant 0 : i32
    %c0_i32_0 = arith.constant 0 : i32
    %c0_i32_1 = arith.constant 0 : i32
    return %c0_i32, %c0_i32_0 : i32, i32
  }
  func.func @transform_3(%arg0: i32, %arg1: i32) -> (i32, i32, i32, i32) {
    %c0_i32 = arith.constant 0 : i32
    %c0_i32_0 = arith.constant 0 : i32
    %c0_i32_1 = arith.constant 0 : i32
    return %arg0, %arg1, %c0_i32, %c0_i32_0 : i32, i32, i32, i32
  }
}

</mosaic_0001>

<llo_original>
// kernel: tpu_custom_call.1
$region0: #{tpu_custom_call.1}
  #allocation0 [shape = 'u32[]', space=smem, size = 0x4, offset = 0x4, fixed_abs, tag = 'smem constant byte address 0x4 - core index']
  #allocation1 [shape = 'u32[144,128]{1,0:T(1,128)}', space=vmem, size = 0x12000, scoped, tag = 'internal scratch']
  %s0 = inlined_call_operand.vmem [shape: f32[2,18,18,4], index: 0, kind: input, shape index: {}]
  %s1 = inlined_call_operand.vmem [shape: f32[3,3,4,128], index: 1, kind: input, shape index: {}]
  %s2 = inlined_call_operand.vmem [shape: f32[1,128], index: 2, kind: input, shape index: {}]
  %s3 = inlined_call_operand.hbm [shape: f32[2,16,16,128], index: 3, kind: output, shape index: {}]
  %s4 = sld [smem:[#allocation0]]
  $region45: #{tpu_custom_call.1} parent=0
    _
  %s6 = ssub.s32 1, %s4
  %s7 = scalar_select 0, %s6, %s4
  $region1: #{tpu_custom_call.1} parent=0
    #allocation2 [shape = 'u8[262144]{0}', space=vmem, size = 0x40000, scoped, tag = 'output window, operand 0']
    #allocation3 [shape = 's32[2]{0}', space=sflag, size = 0x8, scoped, tag = 'scoped memory for tpu_custom_call.1']
    %8 = vsyncpa [#allocation3], 0
    %s9 = scalar_lea.sflag [#allocation3], 1
    %10 = vsyncpa %s9, 0
    loop: start=0, step=1, limit=4
    $region2: #{tpu_custom_call.1} parent=1 // loop_pre_header
      _
    $region3: #{tpu_custom_call.1} parent=1 // loop_header
      %s12 = sphi 0, %s16
      %p13 = scmp.ge.s32.totalorder %s12, 4
      %s19 = sphi 0, %s31
      %s20 = sphi 0, %s27
      %s21 = sphi 0, %s19
      %s22 = sphi 0, %s20
      %s23 = sphi 0, %s21
      %s24 = sphi 0, %s22
      %s34 = sphi 0, %s36
      %s37 = sphi 0, %s34
      %s38 = sphi 0, %s37
      %s54 = sphi 0, %s38
      %s58 = sphi 0, %s58
      %s60 = sphi 0, %s58
      %s61 = sphi 0, %s60
      %s75 = sphi 0, %s61
      %s79 = sphi 0, %s79
      %s81 = sphi 0, %s79
      %s82 = sphi 0, %s81
      %s96 = sphi 0, %s82
      %s104 = sphi 0, %s106
      %s107 = sphi 0, %s104
      %s108 = sphi 0, %s107
      %s124 = sphi 0, %s108
    $region4: #{tpu_custom_call.1} parent=1 // loop_header_branch
      %15 = sbr.rel (%p13) target = $region8
    $region5: #{tpu_custom_call.1} parent=1 // loop_body
      %s17 = ssub.s32 %s12, 1
      %s18 = ssub.s32 %s12, 2
      %s25 = sadd.s32 1, %s20
      %p26 = scmp.ge.s32.totalorder %s25, 1
      %s27 = scalar_select %p26, 0, %s25
      %s28 = sadd.s32 1, %s19
      %s29 = scalar_select %p26, %s28, %s19
      %p30 = scmp.ge.s32.totalorder %s29, 2
      %s31 = scalar_select %p30, 0, %s29
      %s32 = ssub.s32 %s19, %s31
      %p33 = scmp.eq.s32.totalorder %s32, 0
      %s35 = sadd.s32 %s34, 1
      %s36 = scalar_select %p33, %s34, %s35
      %p39 = pneg %p33
      %p40 = scmp.eq.s32.totalorder %s12, 1
      %p41 = por %p39, %p40
      %p42 = scmp.ne.s32.totalorder %s34, %s37
      %p43 = scmp.eq.s32.totalorder %s12, 0
      %p44 = por %p42, %p43
      %p45 = scmp.ne.s32.totalorder %s34, %s37
      %p46 = scmp.eq.s32.totalorder %s17, 1
      %p47 = por %p45, %p46
      %p48 = scmp.ne.s32.totalorder %s37, %s38
      %p49 = scmp.eq.s32.totalorder %s17, 0
      %p50 = por %p48, %p49
      %p51 = scmp.ne.s32.totalorder %s37, %s38
      %p52 = scmp.eq.s32.totalorder %s18, 1
      %p53 = por %p51, %p52
      %p55 = scmp.ne.s32.totalorder %s38, %s54
      %p56 = scmp.eq.s32.totalorder %s18, 0
      %p57 = por %p55, %p56
      %s59 = sadd.s32 %s58, 1
      %p62 = scmp.eq.s32.totalorder %s12, 1
      %p63 = scmp.ne.s32.totalorder %s58, %s60
      %p64 = scmp.eq.s32.totalorder %s12, 0
      %p65 = por %p63, %p64
      %p66 = scmp.ne.s32.totalorder %s58, %s60
      %p67 = scmp.eq.s32.totalorder %s17, 1
      %p68 = por %p66, %p67
      %p69 = scmp.ne.s32.totalorder %s60, %s61
      %p70 = scmp.eq.s32.totalorder %s17, 0
      %p71 = por %p69, %p70
      %p72 = scmp.ne.s32.totalorder %s60, %s61
      %p73 = scmp.eq.s32.totalorder %s18, 1
      %p74 = por %p72, %p73
      %p76 = scmp.ne.s32.totalorder %s61, %s75
      %p77 = scmp.eq.s32.totalorder %s18, 0
      %p78 = por %p76, %p77
      %s80 = sadd.s32 %s79, 1
      %p83 = scmp.eq.s32.totalorder %s12, 1
      %p84 = scmp.ne.s32.totalorder %s79, %s81
      %p85 = scmp.eq.s32.totalorder %s12, 0
      %p86 = por %p84, %p85
      %p87 = scmp.ne.s32.totalorder %s79, %s81
      %p88 = scmp.eq.s32.totalorder %s17, 1
      %p89 = por %p87, %p88
      %p90 = scmp.ne.s32.totalorder %s81, %s82
      %p91 = scmp.eq.s32.totalorder %s17, 0
      %p92 = por %p90, %p91
      %p93 = scmp.ne.s32.totalorder %s81, %s82
      %p94 = scmp.eq.s32.totalorder %s18, 1
      %p95 = por %p93, %p94
      %p97 = scmp.ne.s32.totalorder %s82, %s96
      %p98 = scmp.eq.s32.totalorder %s18, 0
      %p99 = por %p97, %p98
      %s100 = ssub.s32 %s19, %s31
      %s101 = ssub.s32 %s20, %s27
      %s102 = sor.u32 %s100, %s101
      %p103 = scmp.eq.s32.totalorder %s102, 0
      %s105 = sadd.s32 %s104, 1
      %s106 = scalar_select %p103, %s104, %s105
      %p109 = pneg %p103
      %p110 = scmp.eq.s32.totalorder %s12, 1
      %p111 = por %p109, %p110
      %p112 = scmp.ne.s32.totalorder %s104, %s107
      %p113 = scmp.eq.s32.totalorder %s12, 0
      %p114 = por %p112, %p113
      %p115 = scmp.ne.s32.totalorder %s104, %s107
      %p116 = scmp.eq.s32.totalorder %s17, 1
      %p117 = por %p115, %p116
      %p118 = scmp.ne.s32.totalorder %s107, %s108
      %p119 = scmp.eq.s32.totalorder %s17, 0
      %p120 = por %p118, %p119
      %p121 = scmp.ne.s32.totalorder %s107, %s108
      %p122 = scmp.eq.s32.totalorder %s18, 1
      %p123 = por %p121, %p122
      %p125 = scmp.ne.s32.totalorder %s108, %s124
      %p126 = scmp.eq.s32.totalorder %s18, 0
      %p127 = por %p125, %p126
      %p128 = scmp.le.s32.totalorder 1, %s12
      %p129 = scmp.lt.s32.totalorder %s12, 3
      %p130 = pnand %p128, %p129
      %p131 = pneg %p130
      // Predicated region
      $region9: #{tpu_custom_call.1} parent=5 // pred_check
        _
      $region10: #{tpu_custom_call.1} parent=5 // pred_check_branch
        %133 = sbr.rel (%p130) target = $region12
      $region11: #{tpu_custom_call.1} parent=5 // pred_region
        %s134 = ssub.s32 %s12, 1
        // Predicated region
        $region13: #{tpu_custom_call.1} parent=11 // pred_check
          %p135 = pneg %p71
        $region14: #{tpu_custom_call.1} parent=11 // pred_check_branch
          %137 = sbr.rel (%p135) target = $region16
        $region15: #{tpu_custom_call.1} parent=11 // pred_region
          _
        $region16: #{tpu_custom_call.1} parent=11 // pred_fallthru
          _
        // Predicated region
        $region17: #{tpu_custom_call.1} parent=11 // pred_check
          %p138 = pneg %p92
        $region18: #{tpu_custom_call.1} parent=11 // pred_check_branch
          %140 = sbr.rel (%p138) target = $region20
        $region19: #{tpu_custom_call.1} parent=11 // pred_region
          _
        $region20: #{tpu_custom_call.1} parent=11 // pred_fallthru
          _
      $region12: #{tpu_custom_call.1} parent=5 // pred_fallthru
        _
      %p141 = scmp.lt.s32.totalorder %s12, 2
      // Predicated region
      $region21: #{tpu_custom_call.1} parent=5 // pred_check
        %p142 = pneg %p141
      $region22: #{tpu_custom_call.1} parent=5 // pred_check_branch
        %144 = sbr.rel (%p142) target = $region24
      $region23: #{tpu_custom_call.1} parent=5 // pred_region
        // Predicated region
        $region25: #{tpu_custom_call.1} parent=23 // pred_check
          %p145 = pneg %p44
        $region26: #{tpu_custom_call.1} parent=23 // pred_check_branch
          %147 = sbr.rel (%p145) target = $region28
        $region27: #{tpu_custom_call.1} parent=23 // pred_region
          %p148 = scmp.lt.s32.totalorder %s19, 1
          %s149 = scalar_select %p148, %s19, 1
          %s150 = smul.addr %s149, 54
          %s151 = smul.addr %s150, 8
          %s152 = scalar_lea.vmem %s0, %s151
        $region28: #{tpu_custom_call.1} parent=23 // pred_fallthru
          _
      $region24: #{tpu_custom_call.1} parent=5 // pred_fallthru
        _
      %p153 = scmp.le.s32.totalorder 1, %s12
      %p154 = scmp.lt.s32.totalorder %s12, 3
      %p155 = pnand %p153, %p154
      %p156 = pneg %p155
      // Predicated region
      $region29: #{tpu_custom_call.1} parent=5 // pred_check
        _
      $region30: #{tpu_custom_call.1} parent=5 // pred_check_branch
        %158 = sbr.rel (%p155) target = $region32
      $region31: #{tpu_custom_call.1} parent=5 // pred_region
        %s159 = ssub.s32 %s12, 1
        %p160 = scmp.lt.s32.totalorder %s21, 1
        %s161 = scalar_select %p160, %s21, 1
        %s162 = smul.addr %s161, 54
        %s163 = smul.addr %s162, 8
        %s164 = scalar_lea.vmem %s0, %s163
        %p165 = pneg %p50
        %p166 = pneg %p47
        %p167 = pneg %p71
        %p168 = pneg %p68
        %p169 = pneg %p92
        %p170 = pneg %p89
        %p171 = pneg %p120
        %p172 = pneg %p117
        %s173 = sand.u32 %s107, 1
        %s174 = scalar_lea.sflag [#allocation3], %s173
        %s175 = sand.u32 %s107, 1
        %s176 = smul.addr %s175, 256
        %s177 = scalar_lea.vmem [#allocation2], %s176
        %p178 = scmp.lt.s32.totalorder %s21, 1
        %s179 = scalar_select %p178, %s21, 1
        %s180 = smul.addr %s179, 54
        %s181 = smul.addr %s180, 8
        %s182 = scalar_lea.vmem %s0, %s181
        %s183 = smul.u32 16, %s22
        %s184 = smul.u32 %s22, 16
        %s185 = smul.u32 %s184, 24
        %s186 = scalar_lea.vmem %s182, %s185
        %v187 = vld [vmem:[%s186] sm:$0xff]
        %v188 = vld [vmem:[%s186 + $0x8] sm:$0xff]
        %v189 = vld [vmem:[%s186 + $0x18] sm:$0xff]
        %v190 = vld [vmem:[%s186 + $0x20] sm:$0xff]
        %v191 = vld [vmem:[%s186 + $0x30] sm:$0xff]
        %v192 = vld [vmem:[%s186 + $0x38] sm:$0xff]
        %v193 = vld [vmem:[%s186 + $0x48] sm:$0xff]
        %v194 = vld [vmem:[%s186 + $0x50] sm:$0xff]
        %v195 = vld [vmem:[%s186 + $0x60] sm:$0xff]
        %v196 = vld [vmem:[%s186 + $0x68] sm:$0xff]
        %v197 = vld [vmem:[%s186 + $0x78] sm:$0xff]
        %v198 = vld [vmem:[%s186 + $0x80] sm:$0xff]
        %v199 = vld [vmem:[%s186 + $0x90] sm:$0xff]
        %v200 = vld [vmem:[%s186 + $0x98] sm:$0xff]
        %v201 = vld [vmem:[%s186 + $0xa8] sm:$0xff]
        %v202 = vld [vmem:[%s186 + $0xb0] sm:$0xff]
        %v203 = vld [vmem:[%s186 + $0xc0] sm:$0xff]
        %v204 = vld [vmem:[%s186 + $0xc8] sm:$0xff]
        %v205 = vld [vmem:[%s186 + $0xd8] sm:$0xff]
        %v206 = vld [vmem:[%s186 + $0xe0] sm:$0xff]
        %v207 = vld [vmem:[%s186 + $0xf0] sm:$0xff]
        %v208 = vld [vmem:[%s186 + $0xf8] sm:$0xff]
        %v209 = vld [vmem:[%s186 + $0x108] sm:$0xff]
        %v210 = vld [vmem:[%s186 + $0x110] sm:$0xff]
        %v211 = vld [vmem:[%s186 + $0x120] sm:$0xff]
        %v212 = vld [vmem:[%s186 + $0x128] sm:$0xff]
        %v213 = vld [vmem:[%s186 + $0x138] sm:$0xff]
        %v214 = vld [vmem:[%s186 + $0x140] sm:$0xff]
        %v215 = vld [vmem:[%s186 + $0x150] sm:$0xff]
        %v216 = vld [vmem:[%s186 + $0x158] sm:$0xff]
        %v217 = vld [vmem:[%s186 + $0x168] sm:$0xff]
        %v218 = vld [vmem:[%s186 + $0x170] sm:$0xff]
        %v219 = vld [vmem:[%s1] sm:$0xf]
        %v220 = vld [vmem:[%s186 + $0x1] sm:$0xff]
        %v221 = vld [vmem:[%s186 + $0x9] sm:$0xff]
        %v222 = vld [vmem:[%s186 + $0x19] sm:$0xff]
        %v223 = vld [vmem:[%s186 + $0x21] sm:$0xff]
        %v224 = vld [vmem:[%s186 + $0x31] sm:$0xff]
        %v225 = vld [vmem:[%s186 + $0x39] sm:$0xff]
        %v226 = vld [vmem:[%s186 + $0x49] sm:$0xff]
        %v227 = vld [vmem:[%s186 + $0x51] sm:$0xff]
        %v228 = vld [vmem:[%s186 + $0x61] sm:$0xff]
        %v229 = vld [vmem:[%s186 + $0x69] sm:$0xff]
        %v230 = vld [vmem:[%s186 + $0x79] sm:$0xff]
        %v231 = vld [vmem:[%s186 + $0x81] sm:$0xff]
        %v232 = vld [vmem:[%s186 + $0x91] sm:$0xff]
        %v233 = vld [vmem:[%s186 + $0x99] sm:$0xff]
        %v234 = vld [vmem:[%s186 + $0xa9] sm:$0xff]
        %v235 = vld [vmem:[%s186 + $0xb1] sm:$0xff]
        %v236 = vld [vmem:[%s186 + $0xc1] sm:$0xff]
        %v237 = vld [vmem:[%s186 + $0xc9] sm:$0xff]
        %v238 = vld [vmem:[%s186 + $0xd9] sm:$0xff]
        %v239 = vld [vmem:[%s186 + $0xe1] sm:$0xff]
        %v240 = vld [vmem:[%s186 + $0xf1] sm:$0xff]
        %v241 = vld [vmem:[%s186 + $0xf9] sm:$0xff]
        %v242 = vld [vmem:[%s186 + $0x109] sm:$0xff]
        %v243 = vld [vmem:[%s186 + $0x111] sm:$0xff]
        %v244 = vld [vmem:[%s186 + $0x121] sm:$0xff]
        %v245 = vld [vmem:[%s186 + $0x129] sm:$0xff]
        %v246 = vld [vmem:[%s186 + $0x139] sm:$0xff]
        %v247 = vld [vmem:[%s186 + $0x141] sm:$0xff]
        %v248 = vld [vmem:[%s186 + $0x151] sm:$0xff]
        %v249 = vld [vmem:[%s186 + $0x159] sm:$0xff]
        %v250 = vld [vmem:[%s186 + $0x169] sm:$0xff]
        %v251 = vld [vmem:[%s186 + $0x171] sm:$0xff]
        %s252 = scalar_lea.vmem %s1, 4
        %v253 = vld [vmem:[%s252] sm:$0xf]
        %vm254 = vcmask 31744
        %v256 = vsel %vm254, %v220, 0
        %v259 = vsel %vm254, %v221, 0
        %v262 = vsel %vm254, %v222, 0
        %v265 = vsel %vm254, %v223, 0
        %v268 = vsel %vm254, %v224, 0
        %v271 = vsel %vm254, %v225, 0
        %v274 = vsel %vm254, %v226, 0
        %v277 = vsel %vm254, %v227, 0
        %v280 = vsel %vm254, %v228, 0
        %v283 = vsel %vm254, %v229, 0
        %v286 = vsel %vm254, %v230, 0
        %v289 = vsel %vm254, %v231, 0
        %v292 = vsel %vm254, %v232, 0
        %v295 = vsel %vm254, %v233, 0
        %v298 = vsel %vm254, %v234, 0
        %v301 = vsel %vm254, %v235, 0
        %v304 = vsel %vm254, %v236, 0
        %v307 = vsel %vm254, %v237, 0
        %v310 = vsel %vm254, %v238, 0
        %v313 = vsel %vm254, %v239, 0
        %v316 = vsel %vm254, %v240, 0
        %v319 = vsel %vm254, %v241, 0
        %v322 = vsel %vm254, %v242, 0
        %v325 = vsel %vm254, %v243, 0
        %v328 = vsel %vm254, %v244, 0
        %v331 = vsel %vm254, %v245, 0
        %v334 = vsel %vm254, %v246, 0
        %v337 = vsel %vm254, %v247, 0
        %v340 = vsel %vm254, %v248, 0
        %v343 = vsel %vm254, %v249, 0
        %v346 = vsel %vm254, %v250, 0
        %v349 = vsel %vm254, %v251, 0
        %vm351 = vcmask 1043456
        %v353 = vsel %vm351, %v253, 0
        %355 = vmatprep.subr.mxu0 0.0
        %356 = vmatpush1.msra.mxu0 %v353
        %357 = vmatprep.subr.mxu0 0.0
        %358 = vmatpush1.msra.mxu0 0.0
        %359 = vmatprep.subr.mxu0 0.0
        %360 = vmatpush1.msra.mxu0 0.0
        %361 = vmatprep.subr.mxu0 0.0
        %362 = vmatpush1.msra.mxu0 0.0
        %363 = vmatprep.subr.mxu0 0.0
        %364 = vmatpush1.msra.mxu0 0.0
        %365 = vmatprep.subr.mxu0 0.0
        %366 = vmatpush1.msra.mxu0 0.0
        %367 = vmatprep.subr.mxu0 0.0
        %368 = vmatpush1.msra.mxu0 0.0
        %369 = vmatprep.subr.mxu0 0.0
        %370 = vmatpush1.msra.mxu0 0.0
        %371 = vmatprep.subr.mxu0 0.0
        %372 = vmatpush1.msra.mxu0 0.0
        %373 = vmatprep.subr.mxu0 0.0
        %374 = vmatpush1.msra.mxu0 0.0
        %375 = vmatprep.subr.mxu0 0.0
        %376 = vmatpush1.msra.mxu0 0.0
        %377 = vmatprep.subr.mxu0 0.0
        %378 = vmatpush1.msra.mxu0 0.0
        %379 = vmatprep.subr.mxu0 0.0
        %380 = vmatpush1.msra.mxu0 0.0
        %381 = vmatprep.subr.mxu0 0.0
        %382 = vmatpush1.msra.mxu0 0.0
        %383 = vmatprep.subr.mxu0 0.0
        %384 = vmatpush1.msra.mxu0 0.0
        %385 = vmatprep.subr.mxu0 0.0
        %386 = vmatpush1.msra.mxu0 0.0
        %387 = vmatprep.subr.mxu0 0.0
        %388 = vmatpush1.msra.mxu0 0.0
        %389 = vmatprep.subr.mxu0 0.0
        %390 = vmatpush1.msra.mxu0 0.0
        %391 = vmatprep.subr.mxu0 0.0
        %392 = vmatpush1.msra.mxu0 0.0
        %393 = vmatprep.subr.mxu0 0.0
        %394 = vmatpush1.msra.mxu0 0.0
        %395 = vmatprep.subr.mxu0 0.0
        %396 = vmatpush1.msra.mxu0 0.0
        %397 = vmatprep.subr.mxu0 0.0
        %398 = vmatpush1.msra.mxu0 0.0
        %399 = vmatprep.subr.mxu0 0.0
        %400 = vmatpush1.msra.mxu0 0.0
        %401 = vmatprep.subr.mxu0 0.0
        %402 = vmatpush1.msra.mxu0 0.0
        %403 = vmatprep.subr.mxu0 0.0
        %404 = vmatpush1.msra.mxu0 0.0
        %405 = vmatprep.subr.mxu0 0.0
        %406 = vmatpush1.msra.mxu0 0.0
        %407 = vmatprep.subr.mxu0 0.0
        %408 = vmatpush1.msra.mxu0 0.0
        %409 = vmatprep.subr.mxu0 0.0
        %410 = vmatpush1.msra.mxu0 0.0
        %411 = vmatprep.subr.mxu0 0.0
        %412 = vmatpush1.msra.mxu0 0.0
        %413 = vmatprep.subr.mxu0 0.0
        %414 = vmatpush1.msra.mxu0 0.0
        %415 = vmatprep.subr.mxu0 0.0
        %416 = vmatpush1.msra.mxu0 0.0
        %417 = vmatprep.subr.mxu0 0.0
        %418 = vmatpush1.msra.mxu0 0.0
        %419 = vmatprep.mubr.f32.mxu0 0.0
        %420 = vmatmul.mubr.f32.gmra.mrb[0].mxu0 %v256
        %v421 = vpop.f32.mrb[0].mxu0
        %v422 = vadd.f32 0.0, %v421
        %v423 = vpop.f32.mrb[0].mxu0
        %424 = vmatprep.mubr.f32.mxu0 0.0
        %425 = vmatmul.mubr.f32.gmra.mrb[0].mxu0 %v259
        %v426 = vpop.f32.mrb[0].mxu0
        %v427 = vadd.f32 0.0, %v426
        %v428 = vpop.f32.mrb[0].mxu0
        %429 = vmatprep.mubr.f32.mxu0 0.0
        %430 = vmatmul.mubr.f32.gmra.mrb[0].mxu0 %v262
        %v431 = vpop.f32.mrb[0].mxu0
        %v432 = vadd.f32 0.0, %v431
        %v433 = vpop.f32.mrb[0].mxu0
        %434 = vmatprep.mubr.f32.mxu0 0.0
        %435 = vmatmul.mubr.f32.gmra.mrb[0].mxu0 %v265
        %v436 = vpop.f32.mrb[0].mxu0
        %v437 = vadd.f32 0.0, %v436
        %v438 = vpop.f32.mrb[0].mxu0
        %439 = vmatprep.mubr.f32.mxu0 0.0
        %440 = vmatmul.mubr.f32.gmra.mrb[0].mxu0 %v268
        %v441 = vpop.f32.mrb[0].mxu0
        %v442 = vadd.f32 0.0, %v441
        %v443 = vpop.f32.mrb[0].mxu0
        %444 = vmatprep.mubr.f32.mxu0 0.0
        %445 = vmatmul.mubr.f32.gmra.mrb[0].mxu0 %v271
        %v446 = vpop.f32.mrb[0].mxu0
        %v447 = vadd.f32 0.0, %v446
        %v448 = vpop.f32.mrb[0].mxu0
        %449 = vmatprep.mubr.f32.mxu0 0.0
        %450 = vmatmul.mubr.f32.gmra.mrb[0].mxu0 %v274
        %v451 = vpop.f32.mrb[0].mxu0
        %v452 = vadd.f32 0.0, %v451
        %v453 = vpop.f32.mrb[0].mxu0
        %454 = vmatprep.mubr.f32.mxu0 0.0
        %455 = vmatmul.mubr.f32.gmra.mrb[0].mxu0 %v277
        %v456 = vpop.f32.mrb[0].mxu0
        %v457 = vadd.f32 0.0, %v456
        %v458 = vpop.f32.mrb[0].mxu0
        %459 = vmatprep.mubr.f32.mxu0 0.0
        %460 = vmatmul.mubr.f32.gmra.mrb[0].mxu0 %v280
        %v461 = vpop.f32.mrb[0].mxu0
        %v462 = vadd.f32 0.0, %v461
        %v463 = vpop.f32.mrb[0].mxu0
        %464 = vmatprep.mubr.f32.mxu0 0.0
        %465 = vmatmul.mubr.f32.gmra.mrb[0].mxu0 %v283
        %v466 = vpop.f32.mrb[0].mxu0
        %v467 = vadd.f32 0.0, %v466
        %v468 = vpop.f32.mrb[0].mxu0
        %469 = vmatprep.mubr.f32.mxu0 0.0
        %470 = vmatmul.mubr.f32.gmra.mrb[0].mxu0 %v286
        %v471 = vpop.f32.mrb[0].mxu0
        %v472 = vadd.f32 0.0, %v471
        %v473 = vpop.f32.mrb[0].mxu0
        %474 = vmatprep.mubr.f32.mxu0 0.0
        %475 = vmatmul.mubr.f32.gmra.mrb[0].mxu0 %v289
        %v476 = vpop.f32.mrb[0].mxu0
        %v477 = vadd.f32 0.0, %v476
        %v478 = vpop.f32.mrb[0].mxu0
        %479 = vmatprep.mubr.f32.mxu0 0.0
        %480 = vmatmul.mubr.f32.gmra.mrb[0].mxu0 %v292
        %v481 = vpop.f32.mrb[0].mxu0
        %v482 = vadd.f32 0.0, %v481
        %v483 = vpop.f32.mrb[0].mxu0
        %484 = vmatprep.mubr.f32.mxu0 0.0
        %485 = vmatmul.mubr.f32.gmra.mrb[0].mxu0 %v295
        %v486 = vpop.f32.mrb[0].mxu0
        %v487 = vadd.f32 0.0, %v486
        %v488 = vpop.f32.mrb[0].mxu0
        %489 = vmatprep.mubr.f32.mxu0 0.0
        %490 = vmatmul.mubr.f32.gmra.mrb[0].mxu0 %v298
        %v491 = vpop.f32.mrb[0].mxu0
        %v492 = vadd.f32 0.0, %v491
        %v493 = vpop.f32.mrb[0].mxu0
        %494 = vmatprep.mubr.f32.mxu0 0.0
        %495 = vmatmul.mubr.f32.gmra.mrb[0].mxu0 %v301
        %v496 = vpop.f32.mrb[0].mxu0
        %v497 = vadd.f32 0.0, %v496
        %v498 = vpop.f32.mrb[0].mxu0
        %499 = vmatprep.mubr.f32.mxu0 0.0
        %500 = vmatmul.mubr.f32.gmra.mrb[0].mxu0 %v304
        %v501 = vpop.f32.mrb[0].mxu0
        %v502 = vadd.f32 0.0, %v501
        %v503 = vpop.f32.mrb[0].mxu0
        %504 = vmatprep.mubr.f32.mxu0 0.0
        %505 = vmatmul.mubr.f32.gmra.mrb[0].mxu0 %v307
        %v506 = vpop.f32.mrb[0].mxu0
        %v507 = vadd.f32 0.0, %v506
        %v508 = vpop.f32.mrb[0].mxu0
        %509 = vmatprep.mubr.f32.mxu0 0.0
        %510 = vmatmul.mubr.f32.gmra.mrb[0].mxu0 %v310
        %v511 = vpop.f32.mrb[0].mxu0
        %v512 = vadd.f32 0.0, %v511
        %v513 = vpop.f32.mrb[0].mxu0
        %514 = vmatprep.mubr.f32.mxu0 0.0
        %515 = vmatmul.mubr.f32.gmra.mrb[0].mxu0 %v313
        %v516 = vpop.f32.mrb[0].mxu0
        %v517 = vadd.f32 0.0, %v516
        %v518 = vpop.f32.mrb[0].mxu0
        %519 = vmatprep.mubr.f32.mxu0 0.0
        %520 = vmatmul.mubr.f32.gmra.mrb[0].mxu0 %v316
        %v521 = vpop.f32.mrb[0].mxu0
        %v522 = vadd.f32 0.0, %v521
        %v523 = vpop.f32.mrb[0].mxu0
        %524 = vmatprep.mubr.f32.mxu0 0.0
        %525 = vmatmul.mubr.f32.gmra.mrb[0].mxu0 %v319
        %v526 = vpop.f32.mrb[0].mxu0
        %v527 = vadd.f32 0.0, %v526
        %v528 = vpop.f32.mrb[0].mxu0
        %529 = vmatprep.mubr.f32.mxu0 0.0
        %530 = vmatmul.mubr.f32.gmra.mrb[0].mxu0 %v322
        %v531 = vpop.f32.mrb[0].mxu0
        %v532 = vadd.f32 0.0, %v531
        %v533 = vpop.f32.mrb[0].mxu0
        %534 = vmatprep.mubr.f32.mxu0 0.0
        %535 = vmatmul.mubr.f32.gmra.mrb[0].mxu0 %v325
        %v536 = vpop.f32.mrb[0].mxu0
        %v537 = vadd.f32 0.0, %v536
        %v538 = vpop.f32.mrb[0].mxu0
        %539 = vmatprep.mubr.f32.mxu0 0.0
        %540 = vmatmul.mubr.f32.gmra.mrb[0].mxu0 %v328
        %v541 = vpop.f32.mrb[0].mxu0
        %v542 = vadd.f32 0.0, %v541
        %v543 = vpop.f32.mrb[0].mxu0
        %544 = vmatprep.mubr.f32.mxu0 0.0
        %545 = vmatmul.mubr.f32.gmra.mrb[0].mxu0 %v331
        %v546 = vpop.f32.mrb[0].mxu0
        %v547 = vadd.f32 0.0, %v546
        %v548 = vpop.f32.mrb[0].mxu0
        %549 = vmatprep.mubr.f32.mxu0 0.0
        %550 = vmatmul.mubr.f32.gmra.mrb[0].mxu0 %v334
        %v551 = vpop.f32.mrb[0].mxu0
        %v552 = vadd.f32 0.0, %v551
        %v553 = vpop.f32.mrb[0].mxu0
        %554 = vmatprep.mubr.f32.mxu0 0.0
        %555 = vmatmul.mubr.f32.gmra.mrb[0].mxu0 %v337
        %v556 = vpop.f32.mrb[0].mxu0
        %v557 = vadd.f32 0.0, %v556
        %v558 = vpop.f32.mrb[0].mxu0
        %559 = vmatprep.mubr.f32.mxu0 0.0
        %560 = vmatmul.mubr.f32.gmra.mrb[0].mxu0 %v340
        %v561 = vpop.f32.mrb[0].mxu0
        %v562 = vadd.f32 0.0, %v561
        %v563 = vpop.f32.mrb[0].mxu0
        %564 = vmatprep.mubr.f32.mxu0 0.0
        %565 = vmatmul.mubr.f32.gmra.mrb[0].mxu0 %v343
        %v566 = vpop.f32.mrb[0].mxu0
        %v567 = vadd.f32 0.0, %v566
        %v568 = vpop.f32.mrb[0].mxu0
        %569 = vmatprep.mubr.f32.mxu0 0.0
        %570 = vmatmul.mubr.f32.gmra.mrb[0].mxu0 %v346
        %v571 = vpop.f32.mrb[0].mxu0
        %v572 = vadd.f32 0.0, %v571
        %v573 = vpop.f32.mrb[0].mxu0
        %574 = vmatprep.mubr.f32.mxu0 0.0
        %575 = vmatmul.mubr.f32.gmra.mrb[0].mxu0 %v349
        %v576 = vpop.f32.mrb[0].mxu0
        %v577 = vadd.f32 0.0, %v576
        %v578 = vpop.f32.mrb[0].mxu0
        %579 = vdwg.mxu0
        %v581 = vsel %vm254, %v187, 0
        %v584 = vsel %vm254, %v188, 0
        %v587 = vsel %vm254, %v189, 0
        %v590 = vsel %vm254, %v190, 0
        %v593 = vsel %vm254, %v191, 0
        %v596 = vsel %vm254, %v192, 0
        %v599 = vsel %vm254, %v193, 0
        %v602 = vsel %vm254, %v194, 0
        %v605 = vsel %vm254, %v195, 0
        %v608 = vsel %vm254, %v196, 0
        %v611 = vsel %vm254, %v197, 0
        %v614 = vsel %vm254, %v198, 0
        %v617 = vsel %vm254, %v199, 0
        %v620 = vsel %vm254, %v200, 0
        %v623 = vsel %vm254, %v201, 0
        %v626 = vsel %vm254, %v202, 0
        %v629 = vsel %vm254, %v203, 0
        %v632 = vsel %vm254, %v204, 0
        %v635 = vsel %vm254, %v205, 0
        %v638 = vsel %vm254, %v206, 0
        %v641 = vsel %vm254, %v207, 0
        %v644 = vsel %vm254, %v208, 0
        %v647 = vsel %vm254, %v209, 0
        %v650 = vsel %vm254, %v210, 0
        %v653 = vsel %vm254, %v211, 0
        %v656 = vsel %vm254, %v212, 0
        %v659 = vsel %vm254, %v213, 0
        %v662 = vsel %vm254, %v214, 0
        %v665 = vsel %vm254, %v215, 0
        %v668 = vsel %vm254, %v216, 0
        %v671 = vsel %vm254, %v217, 0
        %v674 = vsel %vm254, %v218, 0
        %v677 = vsel %vm351, %v219, 0
        %679 = vmatprep.subr.mxu0 0.0
        %680 = vmatpush1.msra.mxu0 %v677
        %681 = vmatprep.subr.mxu0 0.0
        %682 = vmatpush1.msra.mxu0 0.0
        %683 = vmatprep.subr.mxu0 0.0
        %684 = vmatpush1.msra.mxu0 0.0
        %685 = vmatprep.subr.mxu0 0.0
        %686 = vmatpush1.msra.mxu0 0.0
        %687 = vmatprep.subr.mxu0 0.0
        %688 = vmatpush1.msra.mxu0 0.0
        %689 = vmatprep.subr.mxu0 0.0
        %690 = vmatpush1.msra.mxu0 0.0
        %691 = vmatprep.subr.mxu0 0.0
        %692 = vmatpush1.msra.mxu0 0.0
        %693 = vmatprep.subr.mxu0 0.0
        %694 = vmatpush1.msra.mxu0 0.0
        %695 = vmatprep.subr.mxu0 0.0
        %696 = vmatpush1.msra.mxu0 0.0
        %697 = vmatprep.subr.mxu0 0.0
        %698 = vmatpush1.msra.mxu0 0.0
        %699 = vmatprep.subr.mxu0 0.0
        %700 = vmatpush1.msra.mxu0 0.0
        %701 = vmatprep.subr.mxu0 0.0
        %702 = vmatpush1.msra.mxu0 0.0
        %703 = vmatprep.subr.mxu0 0.0
        %704 = vmatpush1.msra.mxu0 0.0
        %705 = vmatprep.subr.mxu0 0.0
        %706 = vmatpush1.msra.mxu0 0.0
        %707 = vmatprep.subr.mxu0 0.0
        %708 = vmatpush1.msra.mxu0 0.0
        %709 = vmatprep.subr.mxu0 0.0
        %710 = vmatpush1.msra.mxu0 0.0
        %711 = vmatprep.subr.mxu0 0.0
        %712 = vmatpush1.msra.mxu0 0.0
        %713 = vmatprep.subr.mxu0 0.0
        %714 = vmatpush1.msra.mxu0 0.0
        %715 = vmatprep.subr.mxu0 0.0
        %716 = vmatpush1.msra.mxu0 0.0
        %717 = vmatprep.subr.mxu0 0.0
        %718 = vmatpush1.msra.mxu0 0.0
        %719 = vmatprep.subr.mxu0 0.0
        %720 = vmatpush1.msra.mxu0 0.0
        %721 = vmatprep.subr.mxu0 0.0
        %722 = vmatpush1.msra.mxu0 0.0
        %723 = vmatprep.subr.mxu0 0.0
        %724 = vmatpush1.msra.mxu0 0.0
        %725 = vmatprep.subr.mxu0 0.0
        %726 = vmatpush1.msra.mxu0 0.0
        %727 = vmatprep.subr.mxu0 0.0
        %728 = vmatpush1.msra.mxu0 0.0
        %729 = vmatprep.subr.mxu0 0.0
        %730 = vmatpush1.msra.mxu0 0.0
        %731 = vmatprep.subr.mxu0 0.0
        %732 = vmatpush1.msra.mxu0 0.0
        %733 = vmatprep.subr.mxu0 0.0
        %734 = vmatpush1.msra.mxu0 0.0
        %735 = vmatprep.subr.mxu0 0.0
        %736 = vmatpush1.msra.mxu0 0.0
        %737 = vmatprep.subr.mxu0 0.0
        %738 = vmatpush1.msra.mxu0 0.0
        %739 = vmatprep.subr.mxu0 0.0
        %740 = vmatpush1.msra.mxu0 0.0
        %741 = vmatprep.subr.mxu0 0.0
        %742 = vmatpush1.msra.mxu0 0.0
        %743 = vmatprep.mubr.f32.mxu0 0.0
        %744 = vmatmul.mubr.f32.gmra.mrb[0].mxu0 %v581
        %v745 = vpop.f32.mrb[0].mxu0
        %v746 = vadd.f32 %v422, %v745
        %v747 = vpop.f32.mrb[0].mxu0
        %748 = vmatprep.mubr.f32.mxu0 0.0
        %749 = vmatmul.mubr.f32.gmra.mrb[0].mxu0 %v584
        %v750 = vpop.f32.mrb[0].mxu0
        %v751 = vadd.f32 %v427, %v750
        %v752 = vpop.f32.mrb[0].mxu0
        %753 = vmatprep.mubr.f32.mxu0 0.0
        %754 = vmatmul.mubr.f32.gmra.mrb[0].mxu0 %v587
        %v755 = vpop.f32.mrb[0].mxu0
        %v756 = vadd.f32 %v432, %v755
        %v757 = vpop.f32.mrb[0].mxu0
        %758 = vmatprep.mubr.f32.mxu0 0.0
        %759 = vmatmul.mubr.f32.gmra.mrb[0].mxu0 %v590
        %v760 = vpop.f32.mrb[0].mxu0
        %v761 = vadd.f32 %v437, %v760
        %v762 = vpop.f32.mrb[0].mxu0
        %763 = vmatprep.mubr.f32.mxu0 0.0
        %764 = vmatmul.mubr.f32.gmra.mrb[0].mxu0 %v593
        %v765 = vpop.f32.mrb[0].mxu0
        %v766 = vadd.f32 %v442, %v765
        %v767 = vpop.f32.mrb[0].mxu0
        %768 = vmatprep.mubr.f32.mxu0 0.0
        %769 = vmatmul.mubr.f32.gmra.mrb[0].mxu0 %v596
        %v770 = vpop.f32.mrb[0].mxu0
        %v771 = vadd.f32 %v447, %v770
        %v772 = vpop.f32.mrb[0].mxu0
        %773 = vmatprep.mubr.f32.mxu0 0.0
        %774 = vmatmul.mubr.f32.gmra.mrb[0].mxu0 %v599
        %v775 = vpop.f32.mrb[0].mxu0
        %v776 = vadd.f32 %v452, %v775
        %v777 = vpop.f32.mrb[0].mxu0
        %778 = vmatprep.mubr.f32.mxu0 0.0
        %779 = vmatmul.mubr.f32.gmra.mrb[0].mxu0 %v602
        %v780 = vpop.f32.mrb[0].mxu0
        %v781 = vadd.f32 %v457, %v780
        %v782 = vpop.f32.mrb[0].mxu0
        %783 = vmatprep.mubr.f32.mxu0 0.0
        %784 = vmatmul.mubr.f32.gmra.mrb[0].mxu0 %v605
        %v785 = vpop.f32.mrb[0].mxu0
        %v786 = vadd.f32 %v462, %v785
        %v787 = vpop.f32.mrb[0].mxu0
        %788 = vmatprep.mubr.f32.mxu0 0.0
        %789 = vmatmul.mubr.f32.gmra.mrb[0].mxu0 %v608
        %v790 = vpop.f32.mrb[0].mxu0
        %v791 = vadd.f32 %v467, %v790
        %v792 = vpop.f32.mrb[0].mxu0
        %793 = vmatprep.mubr.f32.mxu0 0.0
        %794 = vmatmul.mubr.f32.gmra.mrb[0].mxu0 %v611
        %v795 = vpop.f32.mrb[0].mxu0
        %v796 = vadd.f32 %v472, %v795
        %v797 = vpop.f32.mrb[0].mxu0
        %798 = vmatprep.mubr.f32.mxu0 0.0
        %799 = vmatmul.mubr.f32.gmra.mrb[0].mxu0 %v614
        %v800 = vpop.f32.mrb[0].mxu0
        %v801 = vadd.f32 %v477, %v800
        %v802 = vpop.f32.mrb[0].mxu0
        %803 = vmatprep.mubr.f32.mxu0 0.0
        %804 = vmatmul.mubr.f32.gmra.mrb[0].mxu0 %v617
        %v805 = vpop.f32.mrb[0].mxu0
        %v806 = vadd.f32 %v482, %v805
        %v807 = vpop.f32.mrb[0].mxu0
        %808 = vmatprep.mubr.f32.mxu0 0.0
        %809 = vmatmul.mubr.f32.gmra.mrb[0].mxu0 %v620
        %v810 = vpop.f32.mrb[0].mxu0
        %v811 = vadd.f32 %v487, %v810
        %v812 = vpop.f32.mrb[0].mxu0
        %813 = vmatprep.mubr.f32.mxu0 0.0
        %814 = vmatmul.mubr.f32.gmra.mrb[0].mxu0 %v623
        %v815 = vpop.f32.mrb[0].mxu0
        %v816 = vadd.f32 %v492, %v815
        %v817 = vpop.f32.mrb[0].mxu0
        %818 = vmatprep.mubr.f32.mxu0 0.0
        %819 = vmatmul.mubr.f32.gmra.mrb[0].mxu0 %v626
        %v820 = vpop.f32.mrb[0].mxu0
        %v821 = vadd.f32 %v497, %v820
        %v822 = vpop.f32.mrb[0].mxu0
        %823 = vmatprep.mubr.f32.mxu0 0.0
        %824 = vmatmul.mubr.f32.gmra.mrb[0].mxu0 %v629
        %v825 = vpop.f32.mrb[0].mxu0
        %v826 = vadd.f32 %v502, %v825
        %v827 = vpop.f32.mrb[0].mxu0
        %828 = vmatprep.mubr.f32.mxu0 0.0
        %829 = vmatmul.mubr.f32.gmra.mrb[0].mxu0 %v632
        %v830 = vpop.f32.mrb[0].mxu0
        %v831 = vadd.f32 %v507, %v830
        %v832 = vpop.f32.mrb[0].mxu0
        %833 = vmatprep.mubr.f32.mxu0 0.0
        %834 = vmatmul.mubr.f32.gmra.mrb[0].mxu0 %v635
        %v835 = vpop.f32.mrb[0].mxu0
        %v836 = vadd.f32 %v512, %v835
        %v837 = vpop.f32.mrb[0].mxu0
        %838 = vmatprep.mubr.f32.mxu0 0.0
        %839 = vmatmul.mubr.f32.gmra.mrb[0].mxu0 %v638
        %v840 = vpop.f32.mrb[0].mxu0
        %v841 = vadd.f32 %v517, %v840
        %v842 = vpop.f32.mrb[0].mxu0
        %843 = vmatprep.mubr.f32.mxu0 0.0
        %844 = vmatmul.mubr.f32.gmra.mrb[0].mxu0 %v641
        %v845 = vpop.f32.mrb[0].mxu0
        %v846 = vadd.f32 %v522, %v845
        %v847 = vpop.f32.mrb[0].mxu0
        %848 = vmatprep.mubr.f32.mxu0 0.0
        %849 = vmatmul.mubr.f32.gmra.mrb[0].mxu0 %v644
        %v850 = vpop.f32.mrb[0].mxu0
        %v851 = vadd.f32 %v527, %v850
        %v852 = vpop.f32.mrb[0].mxu0
        %853 = vmatprep.mubr.f32.mxu0 0.0
        %854 = vmatmul.mubr.f32.gmra.mrb[0].mxu0 %v647
        %v855 = vpop.f32.mrb[0].mxu0
        %v856 = vadd.f32 %v532, %v855
        %v857 = vpop.f32.mrb[0].mxu0
        %858 = vmatprep.mubr.f32.mxu0 0.0
        %859 = vmatmul.mubr.f32.gmra.mrb[0].mxu0 %v650
        %v860 = vpop.f32.mrb[0].mxu0
        %v861 = vadd.f32 %v537, %v860
        %v862 = vpop.f32.mrb[0].mxu0
        %863 = vmatprep.mubr.f32.mxu0 0.0
        %864 = vmatmul.mubr.f32.gmra.mrb[0].mxu0 %v653
        %v865 = vpop.f32.mrb[0].mxu0
        %v866 = vadd.f32 %v542, %v865
        %v867 = vpop.f32.mrb[0].mxu0
        %868 = vmatprep.mubr.f32.mxu0 0.0
        %869 = vmatmul.mubr.f32.gmra.mrb[0].mxu0 %v656
        %v870 = vpop.f32.mrb[0].mxu0
        %v871 = vadd.f32 %v547, %v870
        %v872 = vpop.f32.mrb[0].mxu0
        %873 = vmatprep.mubr.f32.mxu0 0.0
        %874 = vmatmul.mubr.f32.gmra.mrb[0].mxu0 %v659
        %v875 = vpop.f32.mrb[0].mxu0
        %v876 = vadd.f32 %v552, %v875
        %v877 = vpop.f32.mrb[0].mxu0
        %878 = vmatprep.mubr.f32.mxu0 0.0
        %879 = vmatmul.mubr.f32.gmra.mrb[0].mxu0 %v662
        %v880 = vpop.f32.mrb[0].mxu0
        %v881 = vadd.f32 %v557, %v880
        %v882 = vpop.f32.mrb[0].mxu0
        %883 = vmatprep.mubr.f32.mxu0 0.0
        %884 = vmatmul.mubr.f32.gmra.mrb[0].mxu0 %v665
        %v885 = vpop.f32.mrb[0].mxu0
        %v886 = vadd.f32 %v562, %v885
        %v887 = vpop.f32.mrb[0].mxu0
        %888 = vmatprep.mubr.f32.mxu0 0.0
        %889 = vmatmul.mubr.f32.gmra.mrb[0].mxu0 %v668
        %v890 = vpop.f32.mrb[0].mxu0
        %v891 = vadd.f32 %v567, %v890
        %v892 = vpop.f32.mrb[0].mxu0
        %893 = vmatprep.mubr.f32.mxu0 0.0
        %894 = vmatmul.mubr.f32.gmra.mrb[0].mxu0 %v671
        %v895 = vpop.f32.mrb[0].mxu0
        %v896 = vadd.f32 %v572, %v895
        %v897 = vpop.f32.mrb[0].mxu0
        %898 = vmatprep.mubr.f32.mxu0 0.0
        %899 = vmatmul.mubr.f32.gmra.mrb[0].mxu0 %v674
        %v900 = vpop.f32.mrb[0].mxu0
        %v901 = vadd.f32 %v577, %v900
        %v902 = vpop.f32.mrb[0].mxu0
        %903 = vdwg.mxu0
        %v904 = vld [vmem:[%s186 + $0x2] sm:$0xff]
        %v905 = vld [vmem:[%s186 + $0xa] sm:$0xff]
        %v906 = vld [vmem:[%s186 + $0x1a] sm:$0xff]
        %v907 = vld [vmem:[%s186 + $0x22] sm:$0xff]
        %v908 = vld [vmem:[%s186 + $0x32] sm:$0xff]
        %v909 = vld [vmem:[%s186 + $0x3a] sm:$0xff]
        %v910 = vld [vmem:[%s186 + $0x4a] sm:$0xff]
        %v911 = vld [vmem:[%s186 + $0x52] sm:$0xff]
        %v912 = vld [vmem:[%s186 + $0x62] sm:$0xff]
        %v913 = vld [vmem:[%s186 + $0x6a] sm:$0xff]
        %v914 = vld [vmem:[%s186 + $0x7a] sm:$0xff]
        %v915 = vld [vmem:[%s186 + $0x82] sm:$0xff]
        %v916 = vld [vmem:[%s186 + $0x92] sm:$0xff]
        %v917 = vld [vmem:[%s186 + $0x9a] sm:$0xff]
        %v918 = vld [vmem:[%s186 + $0xaa] sm:$0xff]
        %v919 = vld [vmem:[%s186 + $0xb2] sm:$0xff]
        %v920 = vld [vmem:[%s186 + $0xc2] sm:$0xff]
        %v921 = vld [vmem:[%s186 + $0xca] sm:$0xff]
        %v922 = vld [vmem:[%s186 + $0xda] sm:$0xff]
        %v923 = vld [vmem:[%s186 + $0xe2] sm:$0xff]
        %v924 = vld [vmem:[%s186 + $0xf2] sm:$0xff]
        %v925 = vld [vmem:[%s186 + $0xfa] sm:$0xff]
        %v926 = vld [vmem:[%s186 + $0x10a] sm:$0xff]
        %v927 = vld [vmem:[%s186 + $0x112] sm:$0xff]
        %v928 = vld [vmem:[%s186 + $0x122] sm:$0xff]
        %v929 = vld [vmem:[%s186 + $0x12a] sm:$0xff]
        %v930 = vld [vmem:[%s186 + $0x13a] sm:$0xff]
        %v931 = vld [vmem:[%s186 + $0x142] sm:$0xff]
        %v932 = vld [vmem:[%s186 + $0x152] sm:$0xff]
        %v933 = vld [vmem:[%s186 + $0x15a] sm:$0xff]
        %v934 = vld [vmem:[%s186 + $0x16a] sm:$0xff]
        %v935 = vld [vmem:[%s186 + $0x172] sm:$0xff]
        %s936 = scalar_lea.vmem %s1, 8
        %v937 = vld [vmem:[%s936] sm:$0xf]
        %v939 = vsel %vm254, %v904, 0
        %v942 = vsel %vm254, %v905, 0
        %v945 = vsel %vm254, %v906, 0
        %v948 = vsel %vm254, %v907, 0
        %v951 = vsel %vm254, %v908, 0
        %v954 = vsel %vm254, %v909, 0
        %v957 = vsel %vm254, %v910, 0
        %v960 = vsel %vm254, %v911, 0
        %v963 = vsel %vm254, %v912, 0
        %v966 = vsel %vm254, %v913, 0
        %v969 = vsel %vm254, %v914, 0
        %v972 = vsel %vm254, %v915, 0
        %v975 = vsel %vm254, %v916, 0
        %v978 = vsel %vm254, %v917, 0
        %v981 = vsel %vm254, %v918, 0
        %v984 = vsel %vm254, %v919, 0
        %v987 = vsel %vm254, %v920, 0
        %v990 = vsel %vm254, %v921, 0
        %v993 = vsel %vm254, %v922, 0
        %v996 = vsel %vm254, %v923, 0
        %v999 = vsel %vm254, %v924, 0
        %v1002 = vsel %vm254, %v925, 0
        %v1005 = vsel %vm254, %v926, 0
        %v1008 = vsel %vm254, %v927, 0
        %v1011 = vsel %vm254, %v928, 0
        %v1014 = vsel %vm254, %v929, 0
        %v1017 = vsel %vm254, %v930, 0
        %v1020 = vsel %vm254, %v931, 0
        %v1023 = vsel %vm254, %v932, 0
        %v1026 = vsel %vm254, %v933, 0
        %v1029 = vsel %vm254, %v934, 0
        %v1032 = vsel %vm254, %v935, 0
        %v1035 = vsel %vm351, %v937, 0
        %1037 = vmatprep.subr.mxu0 0.0
        %1038 = vmatpush1.msra.mxu0 %v1035
        %1039 = vmatprep.subr.mxu0 0.0
        %1040 = vmatpush1.msra.mxu0 0.0
        %1041 = vmatprep.subr.mxu0 0.0
        %1042 = vmatpush1.msra.mxu0 0.0
        %1043 = vmatprep.subr.mxu0 0.0
        %1044 = vmatpush1.msra.mxu0 0.0
        %1045 = vmatprep.subr.mxu0 0.0
        %1046 = vmatpush1.msra.mxu0 0.0
        %1047 = vmatprep.subr.mxu0 0.0
        %1048 = vmatpush1.msra.mxu0 0.0
        %1049 = vmatprep.subr.mxu0 0.0
        %1050 = vmatpush1.msra.mxu0 0.0
        %1051 = vmatprep.subr.mxu0 0.0
        %1052 = vmatpush1.msra.mxu0 0.0
        %1053 = vmatprep.subr.mxu0 0.0
        %1054 = vmatpush1.msra.mxu0 0.0
        %1055 = vmatprep.subr.mxu0 0.0
        %1056 = vmatpush1.msra.mxu0 0.0
        %1057 = vmatprep.subr.mxu0 0.0
        %1058 = vmatpush1.msra.mxu0 0.0
        %1059 = vmatprep.subr.mxu0 0.0
        %1060 = vmatpush1.msra.mxu0 0.0
        %1061 = vmatprep.subr.mxu0 0.0
        %1062 = vmatpush1.msra.mxu0 0.0
        %1063 = vmatprep.subr.mxu0 0.0
        %1064 = vmatpush1.msra.mxu0 0.0
        %1065 = vmatprep.subr.mxu0 0.0
        %1066 = vmatpush1.msra.mxu0 0.0
        %1067 = vmatprep.subr.mxu0 0.0
        %1068 = vmatpush1.msra.mxu0 0.0
        %1069 = vmatprep.subr.mxu0 0.0
        %1070 = vmatpush1.msra.mxu0 0.0
        %1071 = vmatprep.subr.mxu0 0.0
        %1072 = vmatpush1.msra.mxu0 0.0
        %1073 = vmatprep.subr.mxu0 0.0
        %1074 = vmatpush1.msra.mxu0 0.0
        %1075 = vmatprep.subr.mxu0 0.0
        %1076 = vmatpush1.msra.mxu0 0.0
        %1077 = vmatprep.subr.mxu0 0.0
        %1078 = vmatpush1.msra.mxu0 0.0
        %1079 = vmatprep.subr.mxu0 0.0
        %1080 = vmatpush1.msra.mxu0 0.0
        %1081 = vmatprep.subr.mxu0 0.0
        %1082 = vmatpush1.msra.mxu0 0.0
        %1083 = vmatprep.subr.mxu0 0.0
        %1084 = vmatpush1.msra.mxu0 0.0
        %1085 = vmatprep.subr.mxu0 0.0
        %1086 = vmatpush1.msra.mxu0 0.0
        %1087 = vmatprep.subr.mxu0 0.0
        %1088 = vmatpush1.msra.mxu0 0.0
        %1089 = vmatprep.subr.mxu0 0.0
        %1090 = vmatpush1.msra.mxu0 0.0
        %1091 = vmatprep.subr.mxu0 0.0
        %1092 = vmatpush1.msra.mxu0 0.0
        %1093 = vmatprep.subr.mxu0 0.0
        %1094 = vmatpush1.msra.mxu0 0.0
        %1095 = vmatprep.subr.mxu0 0.0
        %1096 = vmatpush1.msra.mxu0 0.0
        %1097 = vmatprep.subr.mxu0 0.0
        %1098 = vmatpush1.msra.mxu0 0.0
        %1099 = vmatprep.subr.mxu0 0.0
        %1100 = vmatpush1.msra.mxu0 0.0
        %1101 = vmatprep.mubr.f32.mxu0 0.0
        %1102 = vmatmul.mubr.f32.gmra.mrb[0].mxu0 %v939
        %v1103 = vpop.f32.mrb[0].mxu0
        %v1104 = vadd.f32 0.0, %v1103
        %v1105 = vpop.f32.mrb[0].mxu0
        %1106 = vmatprep.mubr.f32.mxu0 0.0
        %1107 = vmatmul.mubr.f32.gmra.mrb[0].mxu0 %v942
        %v1108 = vpop.f32.mrb[0].mxu0
        %v1109 = vadd.f32 0.0, %v1108
        %v1110 = vpop.f32.mrb[0].mxu0
        %1111 = vmatprep.mubr.f32.mxu0 0.0
        %1112 = vmatmul.mubr.f32.gmra.mrb[0].mxu0 %v945
        %v1113 = vpop.f32.mrb[0].mxu0
        %v1114 = vadd.f32 0.0, %v1113
        %v1115 = vpop.f32.mrb[0].mxu0
        %1116 = vmatprep.mubr.f32.mxu0 0.0
        %1117 = vmatmul.mubr.f32.gmra.mrb[0].mxu0 %v948
        %v1118 = vpop.f32.mrb[0].mxu0
        %v1119 = vadd.f32 0.0, %v1118
        %v1120 = vpop.f32.mrb[0].mxu0
        %1121 = vmatprep.mubr.f32.mxu0 0.0
        %1122 = vmatmul.mubr.f32.gmra.mrb[0].mxu0 %v951
        %v1123 = vpop.f32.mrb[0].mxu0
        %v1124 = vadd.f32 0.0, %v1123
        %v1125 = vpop.f32.mrb[0].mxu0
        %1126 = vmatprep.mubr.f32.mxu0 0.0
        %1127 = vmatmul.mubr.f32.gmra.mrb[0].mxu0 %v954
        %v1128 = vpop.f32.mrb[0].mxu0
        %v1129 = vadd.f32 0.0, %v1128
        %v1130 = vpop.f32.mrb[0].mxu0
        %1131 = vmatprep.mubr.f32.mxu0 0.0
        %1132 = vmatmul.mubr.f32.gmra.mrb[0].mxu0 %v957
        %v1133 = vpop.f32.mrb[0].mxu0
        %v1134 = vadd.f32 0.0, %v1133
        %v1135 = vpop.f32.mrb[0].mxu0
        %1136 = vmatprep.mubr.f32.mxu0 0.0
        %1137 = vmatmul.mubr.f32.gmra.mrb[0].mxu0 %v960
        %v1138 = vpop.f32.mrb[0].mxu0
        %v1139 = vadd.f32 0.0, %v1138
        %v1140 = vpop.f32.mrb[0].mxu0
        %1141 = vmatprep.mubr.f32.mxu0 0.0
        %1142 = vmatmul.mubr.f32.gmra.mrb[0].mxu0 %v963
        %v1143 = vpop.f32.mrb[0].mxu0
        %v1144 = vadd.f32 0.0, %v1143
        %v1145 = vpop.f32.mrb[0].mxu0
        %1146 = vmatprep.mubr.f32.mxu0 0.0
        %1147 = vmatmul.mubr.f32.gmra.mrb[0].mxu0 %v966
        %v1148 = vpop.f32.mrb[0].mxu0
        %v1149 = vadd.f32 0.0, %v1148
        %v1150 = vpop.f32.mrb[0].mxu0
        %1151 = vmatprep.mubr.f32.mxu0 0.0
        %1152 = vmatmul.mubr.f32.gmra.mrb[0].mxu0 %v969
        %v1153 = vpop.f32.mrb[0].mxu0
        %v1154 = vadd.f32 0.0, %v1153
        %v1155 = vpop.f32.mrb[0].mxu0
        %1156 = vmatprep.mubr.f32.mxu0 0.0
        %1157 = vmatmul.mubr.f32.gmra.mrb[0].mxu0 %v972
        %v1158 = vpop.f32.mrb[0].mxu0
        %v1159 = vadd.f32 0.0, %v1158
        %v1160 = vpop.f32.mrb[0].mxu0
        %1161 = vmatprep.mubr.f32.mxu0 0.0
        %1162 = vmatmul.mubr.f32.gmra.mrb[0].mxu0 %v975
        %v1163 = vpop.f32.mrb[0].mxu0
        %v1164 = vadd.f32 0.0, %v1163
        %v1165 = vpop.f32.mrb[0].mxu0
        %1166 = vmatprep.mubr.f32.mxu0 0.0
        %1167 = vmatmul.mubr.f32.gmra.mrb[0].mxu0 %v978
        %v1168 = vpop.f32.mrb[0].mxu0
        %v1169 = vadd.f32 0.0, %v1168
        %v1170 = vpop.f32.mrb[0].mxu0
        %1171 = vmatprep.mubr.f32.mxu0 0.0
        %1172 = vmatmul.mubr.f32.gmra.mrb[0].mxu0 %v981
        %v1173 = vpop.f32.mrb[0].mxu0
        %v1174 = vadd.f32 0.0, %v1173
        %v1175 = vpop.f32.mrb[0].mxu0
        %1176 = vmatprep.mubr.f32.mxu0 0.0
        %1177 = vmatmul.mubr.f32.gmra.mrb[0].mxu0 %v984
        %v1178 = vpop.f32.mrb[0].mxu0
        %v1179 = vadd.f32 0.0, %v1178
        %v1180 = vpop.f32.mrb[0].mxu0
        %1181 = vmatprep.mubr.f32.mxu0 0.0
        %1182 = vmatmul.mubr.f32.gmra.mrb[0].mxu0 %v987
        %v1183 = vpop.f32.mrb[0].mxu0
        %v1184 = vadd.f32 0.0, %v1183
        %v1185 = vpop.f32.mrb[0].mxu0
        %1186 = vmatprep.mubr.f32.mxu0 0.0
        %1187 = vmatmul.mubr.f32.gmra.mrb[0].mxu0 %v990
        %v1188 = vpop.f32.mrb[0].mxu0
        %v1189 = vadd.f32 0.0, %v1188
        %v1190 = vpop.f32.mrb[0].mxu0
        %1191 = vmatprep.mubr.f32.mxu0 0.0
        %1192 = vmatmul.mubr.f32.gmra.mrb[0].mxu0 %v993
        %v1193 = vpop.f32.mrb[0].mxu0
        %v1194 = vadd.f32 0.0, %v1193
        %v1195 = vpop.f32.mrb[0].mxu0
        %1196 = vmatprep.mubr.f32.mxu0 0.0
        %1197 = vmatmul.mubr.f32.gmra.mrb[0].mxu0 %v996
        %v1198 = vpop.f32.mrb[0].mxu0
        %v1199 = vadd.f32 0.0, %v1198
        %v1200 = vpop.f32.mrb[0].mxu0
        %1201 = vmatprep.mubr.f32.mxu0 0.0
        %1202 = vmatmul.mubr.f32.gmra.mrb[0].mxu0 %v999
        %v1203 = vpop.f32.mrb[0].mxu0
        %v1204 = vadd.f32 0.0, %v1203
        %v1205 = vpop.f32.mrb[0].mxu0
        %1206 = vmatprep.mubr.f32.mxu0 0.0
        %1207 = vmatmul.mubr.f32.gmra.mrb[0].mxu0 %v1002
        %v1208 = vpop.f32.mrb[0].mxu0
        %v1209 = vadd.f32 0.0, %v1208
        %v1210 = vpop.f32.mrb[0].mxu0
        %1211 = vmatprep.mubr.f32.mxu0 0.0
        %1212 = vmatmul.mubr.f32.gmra.mrb[0].mxu0 %v1005
        %v1213 = vpop.f32.mrb[0].mxu0
        %v1214 = vadd.f32 0.0, %v1213
        %v1215 = vpop.f32.mrb[0].mxu0
        %1216 = vmatprep.mubr.f32.mxu0 0.0
        %1217 = vmatmul.mubr.f32.gmra.mrb[0].mxu0 %v1008
        %v1218 = vpop.f32.mrb[0].mxu0
        %v1219 = vadd.f32 0.0, %v1218
        %v1220 = vpop.f32.mrb[0].mxu0
        %1221 = vmatprep.mubr.f32.mxu0 0.0
        %1222 = vmatmul.mubr.f32.gmra.mrb[0].mxu0 %v1011
        %v1223 = vpop.f32.mrb[0].mxu0
        %v1224 = vadd.f32 0.0, %v1223
        %v1225 = vpop.f32.mrb[0].mxu0
        %1226 = vmatprep.mubr.f32.mxu0 0.0
        %1227 = vmatmul.mubr.f32.gmra.mrb[0].mxu0 %v1014
        %v1228 = vpop.f32.mrb[0].mxu0
        %v1229 = vadd.f32 0.0, %v1228
        %v1230 = vpop.f32.mrb[0].mxu0
        %1231 = vmatprep.mubr.f32.mxu0 0.0
        %1232 = vmatmul.mubr.f32.gmra.mrb[0].mxu0 %v1017
        %v1233 = vpop.f32.mrb[0].mxu0
        %v1234 = vadd.f32 0.0, %v1233
        %v1235 = vpop.f32.mrb[0].mxu0
        %1236 = vmatprep.mubr.f32.mxu0 0.0
        %1237 = vmatmul.mubr.f32.gmra.mrb[0].mxu0 %v1020
        %v1238 = vpop.f32.mrb[0].mxu0
        %v1239 = vadd.f32 0.0, %v1238
        %v1240 = vpop.f32.mrb[0].mxu0
        %1241 = vmatprep.mubr.f32.mxu0 0.0
        %1242 = vmatmul.mubr.f32.gmra.mrb[0].mxu0 %v1023
        %v1243 = vpop.f32.mrb[0].mxu0
        %v1244 = vadd.f32 0.0, %v1243
        %v1245 = vpop.f32.mrb[0].mxu0
        %1246 = vmatprep.mubr.f32.mxu0 0.0
        %1247 = vmatmul.mubr.f32.gmra.mrb[0].mxu0 %v1026
        %v1248 = vpop.f32.mrb[0].mxu0
        %v1249 = vadd.f32 0.0, %v1248
        %v1250 = vpop.f32.mrb[0].mxu0
        %1251 = vmatprep.mubr.f32.mxu0 0.0
        %1252 = vmatmul.mubr.f32.gmra.mrb[0].mxu0 %v1029
        %v1253 = vpop.f32.mrb[0].mxu0
        %v1254 = vadd.f32 0.0, %v1253
        %v1255 = vpop.f32.mrb[0].mxu0
        %1256 = vmatprep.mubr.f32.mxu0 0.0
        %1257 = vmatmul.mubr.f32.gmra.mrb[0].mxu0 %v1032
        %v1258 = vpop.f32.mrb[0].mxu0
        %v1259 = vadd.f32 0.0, %v1258
        %v1260 = vpop.f32.mrb[0].mxu0
        %1261 = vdwg.mxu0
        %v1262 = vadd.f32 %v746, %v1104
        %v1263 = vadd.f32 %v751, %v1109
        %v1264 = vadd.f32 %v756, %v1114
        %v1265 = vadd.f32 %v761, %v1119
        %v1266 = vadd.f32 %v766, %v1124
        %v1267 = vadd.f32 %v771, %v1129
        %v1268 = vadd.f32 %v776, %v1134
        %v1269 = vadd.f32 %v781, %v1139
        %v1270 = vadd.f32 %v786, %v1144
        %v1271 = vadd.f32 %v791, %v1149
        %v1272 = vadd.f32 %v796, %v1154
        %v1273 = vadd.f32 %v801, %v1159
        %v1274 = vadd.f32 %v806, %v1164
        %v1275 = vadd.f32 %v811, %v1169
        %v1276 = vadd.f32 %v816, %v1174
        %v1277 = vadd.f32 %v821, %v1179
        %v1278 = vadd.f32 %v826, %v1184
        %v1279 = vadd.f32 %v831, %v1189
        %v1280 = vadd.f32 %v836, %v1194
        %v1281 = vadd.f32 %v841, %v1199
        %v1282 = vadd.f32 %v846, %v1204
        %v1283 = vadd.f32 %v851, %v1209
        %v1284 = vadd.f32 %v856, %v1214
        %v1285 = vadd.f32 %v861, %v1219
        %v1286 = vadd.f32 %v866, %v1224
        %v1287 = vadd.f32 %v871, %v1229
        %v1288 = vadd.f32 %v876, %v1234
        %v1289 = vadd.f32 %v881, %v1239
        %v1290 = vadd.f32 %v886, %v1244
        %v1291 = vadd.f32 %v891, %v1249
        %v1292 = vadd.f32 %v896, %v1254
        %v1293 = vadd.f32 %v901, %v1259
        %s1294 = sadd.s32 %s184, 1
        %s1295 = smul.u32 %s1294, 24
        %s1296 = scalar_lea.vmem %s182, %s1295
        %v1297 = vld [vmem:[%s1296] sm:$0xff]
        %v1298 = vld [vmem:[%s1296 + $0x8] sm:$0xff]
        %v1299 = vld [vmem:[%s1296 + $0x18] sm:$0xff]
        %v1300 = vld [vmem:[%s1296 + $0x20] sm:$0xff]
        %v1301 = vld [vmem:[%s1296 + $0x30] sm:$0xff]
        %v1302 = vld [vmem:[%s1296 + $0x38] sm:$0xff]
        %v1303 = vld [vmem:[%s1296 + $0x48] sm:$0xff]
        %v1304 = vld [vmem:[%s1296 + $0x50] sm:$0xff]
        %v1305 = vld [vmem:[%s1296 + $0x60] sm:$0xff]
        %v1306 = vld [vmem:[%s1296 + $0x68] sm:$0xff]
        %v1307 = vld [vmem:[%s1296 + $0x78] sm:$0xff]
        %v1308 = vld [vmem:[%s1296 + $0x80] sm:$0xff]
        %v1309 = vld [vmem:[%s1296 + $0x90] sm:$0xff]
        %v1310 = vld [vmem:[%s1296 + $0x98] sm:$0xff]
        %v1311 = vld [vmem:[%s1296 + $0xa8] sm:$0xff]
        %v1312 = vld [vmem:[%s1296 + $0xb0] sm:$0xff]
        %v1313 = vld [vmem:[%s1296 + $0xc0] sm:$0xff]
        %v1314 = vld [vmem:[%s1296 + $0xc8] sm:$0xff]
        %v1315 = vld [vmem:[%s1296 + $0xd8] sm:$0xff]
        %v1316 = vld [vmem:[%s1296 + $0xe0] sm:$0xff]
        %v1317 = vld [vmem:[%s1296 + $0xf0] sm:$0xff]
        %v1318 = vld [vmem:[%s1296 + $0xf8] sm:$0xff]
        %v1319 = vld [vmem:[%s1296 + $0x108] sm:$0xff]
        %v1320 = vld [vmem:[%s1296 + $0x110] sm:$0xff]
        %v1321 = vld [vmem:[%s1296 + $0x120] sm:$0xff]
        %v1322 = vld [vmem:[%s1296 + $0x128] sm:$0xff]
        %v1323 = vld [vmem:[%s1296 + $0x138] sm:$0xff]
        %v1324 = vld [vmem:[%s1296 + $0x140] sm:$0xff]
        %v1325 = vld [vmem:[%s1296 + $0x150] sm:$0xff]
        %v1326 = vld [vmem:[%s1296 + $0x158] sm:$0xff]
        %v1327 = vld [vmem:[%s1296 + $0x168] sm:$0xff]
        %v1328 = vld [vmem:[%s1296 + $0x170] sm:$0xff]
        %s1329 = scalar_lea.vmem %s1, 12
        %v1330 = vld [vmem:[%s1329] sm:$0xf]
        %v1332 = vsel %vm254, %v1297, 0
        %v1335 = vsel %vm254, %v1298, 0
        %v1338 = vsel %vm254, %v1299, 0
        %v1341 = vsel %vm254, %v1300, 0
        %v1344 = vsel %vm254, %v1301, 0
        %v1347 = vsel %vm254, %v1302, 0
        %v1350 = vsel %vm254, %v1303, 0
        %v1353 = vsel %vm254, %v1304, 0
        %v1356 = vsel %vm254, %v1305, 0
        %v1359 = vsel %vm254, %v1306, 0
        %v1362 = vsel %vm254, %v1307, 0
        %v1365 = vsel %vm254, %v1308, 0
        %v1368 = vsel %vm254, %v1309, 0
        %v1371 = vsel %vm254, %v1310, 0
        %v1374 = vsel %vm254, %v1311, 0
        %v1377 = vsel %vm254, %v1312, 0
        %v1380 = vsel %vm254, %v1313, 0
        %v1383 = vsel %vm254, %v1314, 0
        %v1386 = vsel %vm254, %v1315, 0
        %v1389 = vsel %vm254, %v1316, 0
        %v1392 = vsel %vm254, %v1317, 0
        %v1395 = vsel %vm254, %v1318, 0
        %v1398 = vsel %vm254, %v1319, 0
        %v1401 = vsel %vm254, %v1320, 0
        %v1404 = vsel %vm254, %v1321, 0
        %v1407 = vsel %vm254, %v1322, 0
        %v1410 = vsel %vm254, %v1323, 0
        %v1413 = vsel %vm254, %v1324, 0
        %v1416 = vsel %vm254, %v1325, 0
        %v1419 = vsel %vm254, %v1326, 0
        %v1422 = vsel %vm254, %v1327, 0
        %v1425 = vsel %vm254, %v1328, 0
        %v1428 = vsel %vm351, %v1330, 0
        %1430 = vmatprep.subr.mxu0 0.0
        %1431 = vmatpush1.msra.mxu0 %v1428
        %1432 = vmatprep.subr.mxu0 0.0
        %1433 = vmatpush1.msra.mxu0 0.0
        %1434 = vmatprep.subr.mxu0 0.0
        %1435 = vmatpush1.msra.mxu0 0.0
        %1436 = vmatprep.subr.mxu0 0.0
        %1437 = vmatpush1.msra.mxu0 0.0
        %1438 = vmatprep.subr.mxu0 0.0
        %1439 = vmatpush1.msra.mxu0 0.0
        %1440 = vmatprep.subr.mxu0 0.0
        %1441 = vmatpush1.msra.mxu0 0.0
        %1442 = vmatprep.subr.mxu0 0.0
        %1443 = vmatpush1.msra.mxu0 0.0
        %1444 = vmatprep.subr.mxu0 0.0
        %1445 = vmatpush1.msra.mxu0 0.0
        %1446 = vmatprep.subr.mxu0 0.0
        %1447 = vmatpush1.msra.mxu0 0.0
        %1448 = vmatprep.subr.mxu0 0.0
        %1449 = vmatpush1.msra.mxu0 0.0
        %1450 = vmatprep.subr.mxu0 0.0
        %1451 = vmatpush1.msra.mxu0 0.0
        %1452 = vmatprep.subr.mxu0 0.0
        %1453 = vmatpush1.msra.mxu0 0.0
        %1454 = vmatprep.subr.mxu0 0.0
        %1455 = vmatpush1.msra.mxu0 0.0
        %1456 = vmatprep.subr.mxu0 0.0
        %1457 = vmatpush1.msra.mxu0 0.0
        %1458 = vmatprep.subr.mxu0 0.0
        %1459 = vmatpush1.msra.mxu0 0.0
        %1460 = vmatprep.subr.mxu0 0.0
        %1461 = vmatpush1.msra.mxu0 0.0
        %1462 = vmatprep.subr.mxu0 0.0
        %1463 = vmatpush1.msra.mxu0 0.0
        %1464 = vmatprep.subr.mxu0 0.0
        %1465 = vmatpush1.msra.mxu0 0.0
        %1466 = vmatprep.subr.mxu0 0.0
        %1467 = vmatpush1.msra.mxu0 0.0
        %1468 = vmatprep.subr.mxu0 0.0
        %1469 = vmatpush1.msra.mxu0 0.0
        %1470 = vmatprep.subr.mxu0 0.0
        %1471 = vmatpush1.msra.mxu0 0.0
        %1472 = vmatprep.subr.mxu0 0.0
        %1473 = vmatpush1.msra.mxu0 0.0
        %1474 = vmatprep.subr.mxu0 0.0
        %1475 = vmatpush1.msra.mxu0 0.0
        %1476 = vmatprep.subr.mxu0 0.0
        %1477 = vmatpush1.msra.mxu0 0.0
        %1478 = vmatprep.subr.mxu0 0.0
        %1479 = vmatpush1.msra.mxu0 0.0
        %1480 = vmatprep.subr.mxu0 0.0
        %1481 = vmatpush1.msra.mxu0 0.0
        %1482 = vmatprep.subr.mxu0 0.0
        %1483 = vmatpush1.msra.mxu0 0.0
        %1484 = vmatprep.subr.mxu0 0.0
        %1485 = vmatpush1.msra.mxu0 0.0
        %1486 = vmatprep.subr.mxu0 0.0
        %1487 = vmatpush1.msra.mxu0 0.0
        %1488 = vmatprep.subr.mxu0 0.0
        %1489 = vmatpush1.msra.mxu0 0.0
        %1490 = vmatprep.subr.mxu0 0.0
        %1491 = vmatpush1.msra.mxu0 0.0
        %1492 = vmatprep.subr.mxu0 0.0
        %1493 = vmatpush1.msra.mxu0 0.0
        %1494 = vmatprep.mubr.f32.mxu0 0.0
        %1495 = vmatmul.mubr.f32.gmra.mrb[0].mxu0 %v1332
        %v1496 = vpop.f32.mrb[0].mxu0
        %v1497 = vadd.f32 0.0, %v1496
        %v1498 = vpop.f32.mrb[0].mxu0
        %1499 = vmatprep.mubr.f32.mxu0 0.0
        %1500 = vmatmul.mubr.f32.gmra.mrb[0].mxu0 %v1335
        %v1501 = vpop.f32.mrb[0].mxu0
        %v1502 = vadd.f32 0.0, %v1501
        %v1503 = vpop.f32.mrb[0].mxu0
        %1504 = vmatprep.mubr.f32.mxu0 0.0
        %1505 = vmatmul.mubr.f32.gmra.mrb[0].mxu0 %v1338
        %v1506 = vpop.f32.mrb[0].mxu0
        %v1507 = vadd.f32 0.0, %v1506
        %v1508 = vpop.f32.mrb[0].mxu0
        %1509 = vmatprep.mubr.f32.mxu0 0.0
        %1510 = vmatmul.mubr.f32.gmra.mrb[0].mxu0 %v1341
        %v1511 = vpop.f32.mrb[0].mxu0
        %v1512 = vadd.f32 0.0, %v1511
        %v1513 = vpop.f32.mrb[0].mxu0
        %1514 = vmatprep.mubr.f32.mxu0 0.0
        %1515 = vmatmul.mubr.f32.gmra.mrb[0].mxu0 %v1344
        %v1516 = vpop.f32.mrb[0].mxu0
        %v1517 = vadd.f32 0.0, %v1516
        %v1518 = vpop.f32.mrb[0].mxu0
        %1519 = vmatprep.mubr.f32.mxu0 0.0
        %1520 = vmatmul.mubr.f32.gmra.mrb[0].mxu0 %v1347
        %v1521 = vpop.f32.mrb[0].mxu0
        %v1522 = vadd.f32 0.0, %v1521
        %v1523 = vpop.f32.mrb[0].mxu0
        %1524 = vmatprep.mubr.f32.mxu0 0.0
        %1525 = vmatmul.mubr.f32.gmra.mrb[0].mxu0 %v1350
        %v1526 = vpop.f32.mrb[0].mxu0
        %v1527 = vadd.f32 0.0, %v1526
        %v1528 = vpop.f32.mrb[0].mxu0
        %1529 = vmatprep.mubr.f32.mxu0 0.0
        %1530 = vmatmul.mubr.f32.gmra.mrb[0].mxu0 %v1353
        %v1531 = vpop.f32.mrb[0].mxu0
        %v1532 = vadd.f32 0.0, %v1531
        %v1533 = vpop.f32.mrb[0].mxu0
        %1534 = vmatprep.mubr.f32.mxu0 0.0
        %1535 = vmatmul.mubr.f32.gmra.mrb[0].mxu0 %v1356
        %v1536 = vpop.f32.mrb[0].mxu0
        %v1537 = vadd.f32 0.0, %v1536
        %v1538 = vpop.f32.mrb[0].mxu0
        %1539 = vmatprep.mubr.f32.mxu0 0.0
        %1540 = vmatmul.mubr.f32.gmra.mrb[0].mxu0 %v1359
        %v1541 = vpop.f32.mrb[0].mxu0
        %v1542 = vadd.f32 0.0, %v1541
        %v1543 = vpop.f32.mrb[0].mxu0
        %1544 = vmatprep.mubr.f32.mxu0 0.0
        %1545 = vmatmul.mubr.f32.gmra.mrb[0].mxu0 %v1362
        %v1546 = vpop.f32.mrb[0].mxu0
        %v1547 = vadd.f32 0.0, %v1546
        %v1548 = vpop.f32.mrb[0].mxu0
        %1549 = vmatprep.mubr.f32.mxu0 0.0
        %1550 = vmatmul.mubr.f32.gmra.mrb[0].mxu0 %v1365
        %v1551 = vpop.f32.mrb[0].mxu0
        %v1552 = vadd.f32 0.0, %v1551
        %v1553 = vpop.f32.mrb[0].mxu0
        %1554 = vmatprep.mubr.f32.mxu0 0.0
        %1555 = vmatmul.mubr.f32.gmra.mrb[0].mxu0 %v1368
        %v1556 = vpop.f32.mrb[0].mxu0
        %v1557 = vadd.f32 0.0, %v1556
        %v1558 = vpop.f32.mrb[0].mxu0
        %1559 = vmatprep.mubr.f32.mxu0 0.0
        %1560 = vmatmul.mubr.f32.gmra.mrb[0].mxu0 %v1371
        %v1561 = vpop.f32.mrb[0].mxu0
        %v1562 = vadd.f32 0.0, %v1561
        %v1563 = vpop.f32.mrb[0].mxu0
        %1564 = vmatprep.mubr.f32.mxu0 0.0
        %1565 = vmatmul.mubr.f32.gmra.mrb[0].mxu0 %v1374
        %v1566 = vpop.f32.mrb[0].mxu0
        %v1567 = vadd.f32 0.0, %v1566
        %v1568 = vpop.f32.mrb[0].mxu0
        %1569 = vmatprep.mubr.f32.mxu0 0.0
        %1570 = vmatmul.mubr.f32.gmra.mrb[0].mxu0 %v1377
        %v1571 = vpop.f32.mrb[0].mxu0
        %v1572 = vadd.f32 0.0, %v1571
        %v1573 = vpop.f32.mrb[0].mxu0
        %1574 = vmatprep.mubr.f32.mxu0 0.0
        %1575 = vmatmul.mubr.f32.gmra.mrb[0].mxu0 %v1380
        %v1576 = vpop.f32.mrb[0].mxu0
        %v1577 = vadd.f32 0.0, %v1576
        %v1578 = vpop.f32.mrb[0].mxu0
        %1579 = vmatprep.mubr.f32.mxu0 0.0
        %1580 = vmatmul.mubr.f32.gmra.mrb[0].mxu0 %v1383
        %v1581 = vpop.f32.mrb[0].mxu0
        %v1582 = vadd.f32 0.0, %v1581
        %v1583 = vpop.f32.mrb[0].mxu0
        %1584 = vmatprep.mubr.f32.mxu0 0.0
        %1585 = vmatmul.mubr.f32.gmra.mrb[0].mxu0 %v1386
        %v1586 = vpop.f32.mrb[0].mxu0
        %v1587 = vadd.f32 0.0, %v1586
        %v1588 = vpop.f32.mrb[0].mxu0
        %1589 = vmatprep.mubr.f32.mxu0 0.0
        %1590 = vmatmul.mubr.f32.gmra.mrb[0].mxu0 %v1389
        %v1591 = vpop.f32.mrb[0].mxu0
        %v1592 = vadd.f32 0.0, %v1591
        %v1593 = vpop.f32.mrb[0].mxu0
        %1594 = vmatprep.mubr.f32.mxu0 0.0
        %1595 = vmatmul.mubr.f32.gmra.mrb[0].mxu0 %v1392
        %v1596 = vpop.f32.mrb[0].mxu0
        %v1597 = vadd.f32 0.0, %v1596
        %v1598 = vpop.f32.mrb[0].mxu0
        %1599 = vmatprep.mubr.f32.mxu0 0.0
        %1600 = vmatmul.mubr.f32.gmra.mrb[0].mxu0 %v1395
        %v1601 = vpop.f32.mrb[0].mxu0
        %v1602 = vadd.f32 0.0, %v1601
        %v1603 = vpop.f32.mrb[0].mxu0
        %1604 = vmatprep.mubr.f32.mxu0 0.0
        %1605 = vmatmul.mubr.f32.gmra.mrb[0].mxu0 %v1398
        %v1606 = vpop.f32.mrb[0].mxu0
        %v1607 = vadd.f32 0.0, %v1606
        %v1608 = vpop.f32.mrb[0].mxu0
        %1609 = vmatprep.mubr.f32.mxu0 0.0
        %1610 = vmatmul.mubr.f32.gmra.mrb[0].mxu0 %v1401
        %v1611 = vpop.f32.mrb[0].mxu0
        %v1612 = vadd.f32 0.0, %v1611
        %v1613 = vpop.f32.mrb[0].mxu0
        %1614 = vmatprep.mubr.f32.mxu0 0.0
        %1615 = vmatmul.mubr.f32.gmra.mrb[0].mxu0 %v1404
        %v1616 = vpop.f32.mrb[0].mxu0
        %v1617 = vadd.f32 0.0, %v1616
        %v1618 = vpop.f32.mrb[0].mxu0
        %1619 = vmatprep.mubr.f32.mxu0 0.0
        %1620 = vmatmul.mubr.f32.gmra.mrb[0].mxu0 %v1407
        %v1621 = vpop.f32.mrb[0].mxu0
        %v1622 = vadd.f32 0.0, %v1621
        %v1623 = vpop.f32.mrb[0].mxu0
        %1624 = vmatprep.mubr.f32.mxu0 0.0
        %1625 = vmatmul.mubr.f32.gmra.mrb[0].mxu0 %v1410
        %v1626 = vpop.f32.mrb[0].mxu0
        %v1627 = vadd.f32 0.0, %v1626
        %v1628 = vpop.f32.mrb[0].mxu0
        %1629 = vmatprep.mubr.f32.mxu0 0.0
        %1630 = vmatmul.mubr.f32.gmra.mrb[0].mxu0 %v1413
        %v1631 = vpop.f32.mrb[0].mxu0
        %v1632 = vadd.f32 0.0, %v1631
        %v1633 = vpop.f32.mrb[0].mxu0
        %1634 = vmatprep.mubr.f32.mxu0 0.0
        %1635 = vmatmul.mubr.f32.gmra.mrb[0].mxu0 %v1416
        %v1636 = vpop.f32.mrb[0].mxu0
        %v1637 = vadd.f32 0.0, %v1636
        %v1638 = vpop.f32.mrb[0].mxu0
        %1639 = vmatprep.mubr.f32.mxu0 0.0
        %1640 = vmatmul.mubr.f32.gmra.mrb[0].mxu0 %v1419
        %v1641 = vpop.f32.mrb[0].mxu0
        %v1642 = vadd.f32 0.0, %v1641
        %v1643 = vpop.f32.mrb[0].mxu0
        %1644 = vmatprep.mubr.f32.mxu0 0.0
        %1645 = vmatmul.mubr.f32.gmra.mrb[0].mxu0 %v1422
        %v1646 = vpop.f32.mrb[0].mxu0
        %v1647 = vadd.f32 0.0, %v1646
        %v1648 = vpop.f32.mrb[0].mxu0
        %1649 = vmatprep.mubr.f32.mxu0 0.0
        %1650 = vmatmul.mubr.f32.gmra.mrb[0].mxu0 %v1425
        %v1651 = vpop.f32.mrb[0].mxu0
        %v1652 = vadd.f32 0.0, %v1651
        %v1653 = vpop.f32.mrb[0].mxu0
        %1654 = vdwg.mxu0
        %v1655 = vadd.f32 %v1262, %v1497
        %v1656 = vadd.f32 %v1263, %v1502
        %v1657 = vadd.f32 %v1264, %v1507
        %v1658 = vadd.f32 %v1265, %v1512
        %v1659 = vadd.f32 %v1266, %v1517
        %v1660 = vadd.f32 %v1267, %v1522
        %v1661 = vadd.f32 %v1268, %v1527
        %v1662 = vadd.f32 %v1269, %v1532
        %v1663 = vadd.f32 %v1270, %v1537
        %v1664 = vadd.f32 %v1271, %v1542
        %v1665 = vadd.f32 %v1272, %v1547
        %v1666 = vadd.f32 %v1273, %v1552
        %v1667 = vadd.f32 %v1274, %v1557
        %v1668 = vadd.f32 %v1275, %v1562
        %v1669 = vadd.f32 %v1276, %v1567
        %v1670 = vadd.f32 %v1277, %v1572
        %v1671 = vadd.f32 %v1278, %v1577
        %v1672 = vadd.f32 %v1279, %v1582
        %v1673 = vadd.f32 %v1280, %v1587
        %v1674 = vadd.f32 %v1281, %v1592
        %v1675 = vadd.f32 %v1282, %v1597
        %v1676 = vadd.f32 %v1283, %v1602
        %v1677 = vadd.f32 %v1284, %v1607
        %v1678 = vadd.f32 %v1285, %v1612
        %v1679 = vadd.f32 %v1286, %v1617
        %v1680 = vadd.f32 %v1287, %v1622
        %v1681 = vadd.f32 %v1288, %v1627
        %v1682 = vadd.f32 %v1289, %v1632
        %v1683 = vadd.f32 %v1290, %v1637
        %v1684 = vadd.f32 %v1291, %v1642
        %v1685 = vadd.f32 %v1292, %v1647
        %v1686 = vadd.f32 %v1293, %v1652
        %v1687 = vld [vmem:[%s1296 + $0x1] sm:$0xff]
        %v1688 = vld [vmem:[%s1296 + $0x9] sm:$0xff]
        %v1689 = vld [vmem:[%s1296 + $0x19] sm:$0xff]
        %v1690 = vld [vmem:[%s1296 + $0x21] sm:$0xff]
        %v1691 = vld [vmem:[%s1296 + $0x31] sm:$0xff]
        %v1692 = vld [vmem:[%s1296 + $0x39] sm:$0xff]
        %v1693 = vld [vmem:[%s1296 + $0x49] sm:$0xff]
        %v1694 = vld [vmem:[%s1296 + $0x51] sm:$0xff]
        %v1695 = vld [vmem:[%s1296 + $0x61] sm:$0xff]
        %v1696 = vld [vmem:[%s1296 + $0x69] sm:$0xff]
        %v1697 = vld [vmem:[%s1296 + $0x79] sm:$0xff]
        %v1698 = vld [vmem:[%s1296 + $0x81] sm:$0xff]
        %v1699 = vld [vmem:[%s1296 + $0x91] sm:$0xff]
        %v1700 = vld [vmem:[%s1296 + $0x99] sm:$0xff]
        %v1701 = vld [vmem:[%s1296 + $0xa9] sm:$0xff]
        %v1702 = vld [vmem:[%s1296 + $0xb1] sm:$0xff]
        %v1703 = vld [vmem:[%s1296 + $0xc1] sm:$0xff]
        %v1704 = vld [vmem:[%s1296 + $0xc9] sm:$0xff]
        %v1705 = vld [vmem:[%s1296 + $0xd9] sm:$0xff]
        %v1706 = vld [vmem:[%s1296 + $0xe1] sm:$0xff]
        %v1707 = vld [vmem:[%s1296 + $0xf1] sm:$0xff]
        %v1708 = vld [vmem:[%s1296 + $0xf9] sm:$0xff]
        %v1709 = vld [vmem:[%s1296 + $0x109] sm:$0xff]
        %v1710 = vld [vmem:[%s1296 + $0x111] sm:$0xff]
        %v1711 = vld [vmem:[%s1296 + $0x121] sm:$0xff]
        %v1712 = vld [vmem:[%s1296 + $0x129] sm:$0xff]
        %v1713 = vld [vmem:[%s1296 + $0x139] sm:$0xff]
        %v1714 = vld [vmem:[%s1296 + $0x141] sm:$0xff]
        %v1715 = vld [vmem:[%s1296 + $0x151] sm:$0xff]
        %v1716 = vld [vmem:[%s1296 + $0x159] sm:$0xff]
        %v1717 = vld [vmem:[%s1296 + $0x169] sm:$0xff]
        %v1718 = vld [vmem:[%s1296 + $0x171] sm:$0xff]
        %s1719 = scalar_lea.vmem %s1, 16
        %v1720 = vld [vmem:[%s1719] sm:$0xf]
        %v1722 = vsel %vm254, %v1687, 0
        %v1725 = vsel %vm254, %v1688, 0
        %v1728 = vsel %vm254, %v1689, 0
        %v1731 = vsel %vm254, %v1690, 0
        %v1734 = vsel %vm254, %v1691, 0
        %v1737 = vsel %vm254, %v1692, 0
        %v1740 = vsel %vm254, %v1693, 0
        %v1743 = vsel %vm254, %v1694, 0
        %v1746 = vsel %vm254, %v1695, 0
        %v1749 = vsel %vm254, %v1696, 0
        %v1752 = vsel %vm254, %v1697, 0
        %v1755 = vsel %vm254, %v1698, 0
        %v1758 = vsel %vm254, %v1699, 0
        %v1761 = vsel %vm254, %v1700, 0
        %v1764 = vsel %vm254, %v1701, 0
        %v1767 = vsel %vm254, %v1702, 0
        %v1770 = vsel %vm254, %v1703, 0
        %v1773 = vsel %vm254, %v1704, 0
        %v1776 = vsel %vm254, %v1705, 0
        %v1779 = vsel %vm254, %v1706, 0
        %v1782 = vsel %vm254, %v1707, 0
        %v1785 = vsel %vm254, %v1708, 0
        %v1788 = vsel %vm254, %v1709, 0
        %v1791 = vsel %vm254, %v1710, 0
        %v1794 = vsel %vm254, %v1711, 0
        %v1797 = vsel %vm254, %v1712, 0
        %v1800 = vsel %vm254, %v1713, 0
        %v1803 = vsel %vm254, %v1714, 0
        %v1806 = vsel %vm254, %v1715, 0
        %v1809 = vsel %vm254, %v1716, 0
        %v1812 = vsel %vm254, %v1717, 0
        %v1815 = vsel %vm254, %v1718, 0
        %v1818 = vsel %vm351, %v1720, 0
        %1820 = vmatprep.subr.mxu0 0.0
        %1821 = vmatpush1.msra.mxu0 %v1818
        %1822 = vmatprep.subr.mxu0 0.0
        %1823 = vmatpush1.msra.mxu0 0.0
        %1824 = vmatprep.subr.mxu0 0.0
        %1825 = vmatpush1.msra.mxu0 0.0
        %1826 = vmatprep.subr.mxu0 0.0
        %1827 = vmatpush1.msra.mxu0 0.0
        %1828 = vmatprep.subr.mxu0 0.0
        %1829 = vmatpush1.msra.mxu0 0.0
        %1830 = vmatprep.subr.mxu0 0.0
        %1831 = vmatpush1.msra.mxu0 0.0
        %1832 = vmatprep.subr.mxu0 0.0
        %1833 = vmatpush1.msra.mxu0 0.0
        %1834 = vmatprep.subr.mxu0 0.0
        %1835 = vmatpush1.msra.mxu0 0.0
        %1836 = vmatprep.subr.mxu0 0.0
        %1837 = vmatpush1.msra.mxu0 0.0
        %1838 = vmatprep.subr.mxu0 0.0
        %1839 = vmatpush1.msra.mxu0 0.0
        %1840 = vmatprep.subr.mxu0 0.0
        %1841 = vmatpush1.msra.mxu0 0.0
        %1842 = vmatprep.subr.mxu0 0.0
        %1843 = vmatpush1.msra.mxu0 0.0
        %1844 = vmatprep.subr.mxu0 0.0
        %1845 = vmatpush1.msra.mxu0 0.0
        %1846 = vmatprep.subr.mxu0 0.0
        %1847 = vmatpush1.msra.mxu0 0.0
        %1848 = vmatprep.subr.mxu0 0.0
        %1849 = vmatpush1.msra.mxu0 0.0
        %1850 = vmatprep.subr.mxu0 0.0
        %1851 = vmatpush1.msra.mxu0 0.0
        %1852 = vmatprep.subr.mxu0 0.0
        %1853 = vmatpush1.msra.mxu0 0.0
        %1854 = vmatprep.subr.mxu0 0.0
        %1855 = vmatpush1.msra.mxu0 0.0
        %1856 = vmatprep.subr.mxu0 0.0
        %1857 = vmatpush1.msra.mxu0 0.0
        %1858 = vmatprep.subr.mxu0 0.0
        %1859 = vmatpush1.msra.mxu0 0.0
        %1860 = vmatprep.subr.mxu0 0.0
        %1861 = vmatpush1.msra.mxu0 0.0
        %1862 = vmatprep.subr.mxu0 0.0
        %1863 = vmatpush1.msra.mxu0 0.0
        %1864 = vmatprep.subr.mxu0 0.0
        %1865 = vmatpush1.msra.mxu0 0.0
        %1866 = vmatprep.subr.mxu0 0.0
        %1867 = vmatpush1.msra.mxu0 0.0
        %1868 = vmatprep.subr.mxu0 0.0
        %1869 = vmatpush1.msra.mxu0 0.0
        %1870 = vmatprep.subr.mxu0 0.0
        %1871 = vmatpush1.msra.mxu0 0.0
        %1872 = vmatprep.subr.mxu0 0.0
        %1873 = vmatpush1.msra.mxu0 0.0
        %1874 = vmatprep.subr.mxu0 0.0
        %1875 = vmatpush1.msra.mxu0 0.0
        %1876 = vmatprep.subr.mxu0 0.0
        %1877 = vmatpush1.msra.mxu0 0.0
        %1878 = vmatprep.subr.mxu0 0.0
        %1879 = vmatpush1.msra.mxu0 0.0
        %1880 = vmatprep.subr.mxu0 0.0
        %1881 = vmatpush1.msra.mxu0 0.0
        %1882 = vmatprep.subr.mxu0 0.0
        %1883 = vmatpush1.msra.mxu0 0.0
        %1884 = vmatprep.mubr.f32.mxu0 0.0
        %1885 = vmatmul.mubr.f32.gmra.mrb[0].mxu0 %v1722
        %v1886 = vpop.f32.mrb[0].mxu0
        %v1887 = vadd.f32 0.0, %v1886
        %v1888 = vpop.f32.mrb[0].mxu0
        %1889 = vmatprep.mubr.f32.mxu0 0.0
        %1890 = vmatmul.mubr.f32.gmra.mrb[0].mxu0 %v1725
        %v1891 = vpop.f32.mrb[0].mxu0
        %v1892 = vadd.f32 0.0, %v1891
        %v1893 = vpop.f32.mrb[0].mxu0
        %1894 = vmatprep.mubr.f32.mxu0 0.0
        %1895 = vmatmul.mubr.f32.gmra.mrb[0].mxu0 %v1728
        %v1896 = vpop.f32.mrb[0].mxu0
        %v1897 = vadd.f32 0.0, %v1896
        %v1898 = vpop.f32.mrb[0].mxu0
        %1899 = vmatprep.mubr.f32.mxu0 0.0
        %1900 = vmatmul.mubr.f32.gmra.mrb[0].mxu0 %v1731
        %v1901 = vpop.f32.mrb[0].mxu0
        %v1902 = vadd.f32 0.0, %v1901
        %v1903 = vpop.f32.mrb[0].mxu0
        %1904 = vmatprep.mubr.f32.mxu0 0.0
        %1905 = vmatmul.mubr.f32.gmra.mrb[0].mxu0 %v1734
        %v1906 = vpop.f32.mrb[0].mxu0
        %v1907 = vadd.f32 0.0, %v1906
        %v1908 = vpop.f32.mrb[0].mxu0
        %1909 = vmatprep.mubr.f32.mxu0 0.0
        %1910 = vmatmul.mubr.f32.gmra.mrb[0].mxu0 %v1737
        %v1911 = vpop.f32.mrb[0].mxu0
        %v1912 = vadd.f32 0.0, %v1911
        %v1913 = vpop.f32.mrb[0].mxu0
        %1914 = vmatprep.mubr.f32.mxu0 0.0
        %1915 = vmatmul.mubr.f32.gmra.mrb[0].mxu0 %v1740
        %v1916 = vpop.f32.mrb[0].mxu0
        %v1917 = vadd.f32 0.0, %v1916
        %v1918 = vpop.f32.mrb[0].mxu0
        %1919 = vmatprep.mubr.f32.mxu0 0.0
        %1920 = vmatmul.mubr.f32.gmra.mrb[0].mxu0 %v1743
        %v1921 = vpop.f32.mrb[0].mxu0
        %v1922 = vadd.f32 0.0, %v1921
        %v1923 = vpop.f32.mrb[0].mxu0
        %1924 = vmatprep.mubr.f32.mxu0 0.0
        %1925 = vmatmul.mubr.f32.gmra.mrb[0].mxu0 %v1746
        %v1926 = vpop.f32.mrb[0].mxu0
        %v1927 = vadd.f32 0.0, %v1926
        %v1928 = vpop.f32.mrb[0].mxu0
        %1929 = vmatprep.mubr.f32.mxu0 0.0
        %1930 = vmatmul.mubr.f32.gmra.mrb[0].mxu0 %v1749
        %v1931 = vpop.f32.mrb[0].mxu0
        %v1932 = vadd.f32 0.0, %v1931
        %v1933 = vpop.f32.mrb[0].mxu0
        %1934 = vmatprep.mubr.f32.mxu0 0.0
        %1935 = vmatmul.mubr.f32.gmra.mrb[0].mxu0 %v1752
        %v1936 = vpop.f32.mrb[0].mxu0
        %v1937 = vadd.f32 0.0, %v1936
        %v1938 = vpop.f32.mrb[0].mxu0
        %1939 = vmatprep.mubr.f32.mxu0 0.0
        %1940 = vmatmul.mubr.f32.gmra.mrb[0].mxu0 %v1755
        %v1941 = vpop.f32.mrb[0].mxu0
        %v1942 = vadd.f32 0.0, %v1941
        %v1943 = vpop.f32.mrb[0].mxu0
        %1944 = vmatprep.mubr.f32.mxu0 0.0
        %1945 = vmatmul.mubr.f32.gmra.mrb[0].mxu0 %v1758
        %v1946 = vpop.f32.mrb[0].mxu0
        %v1947 = vadd.f32 0.0, %v1946
        %v1948 = vpop.f32.mrb[0].mxu0
        %1949 = vmatprep.mubr.f32.mxu0 0.0
        %1950 = vmatmul.mubr.f32.gmra.mrb[0].mxu0 %v1761
        %v1951 = vpop.f32.mrb[0].mxu0
        %v1952 = vadd.f32 0.0, %v1951
        %v1953 = vpop.f32.mrb[0].mxu0
        %1954 = vmatprep.mubr.f32.mxu0 0.0
        %1955 = vmatmul.mubr.f32.gmra.mrb[0].mxu0 %v1764
        %v1956 = vpop.f32.mrb[0].mxu0
        %v1957 = vadd.f32 0.0, %v1956
        %v1958 = vpop.f32.mrb[0].mxu0
        %1959 = vmatprep.mubr.f32.mxu0 0.0
        %1960 = vmatmul.mubr.f32.gmra.mrb[0].mxu0 %v1767
        %v1961 = vpop.f32.mrb[0].mxu0
        %v1962 = vadd.f32 0.0, %v1961
        %v1963 = vpop.f32.mrb[0].mxu0
        %1964 = vmatprep.mubr.f32.mxu0 0.0
        %1965 = vmatmul.mubr.f32.gmra.mrb[0].mxu0 %v1770
        %v1966 = vpop.f32.mrb[0].mxu0
        %v1967 = vadd.f32 0.0, %v1966
        %v1968 = vpop.f32.mrb[0].mxu0
        %1969 = vmatprep.mubr.f32.mxu0 0.0
        %1970 = vmatmul.mubr.f32.gmra.mrb[0].mxu0 %v1773
        %v1971 = vpop.f32.mrb[0].mxu0
        %v1972 = vadd.f32 0.0, %v1971
        %v1973 = vpop.f32.mrb[0].mxu0
        %1974 = vmatprep.mubr.f32.mxu0 0.0
        %1975 = vmatmul.mubr.f32.gmra.mrb[0].mxu0 %v1776
        %v1976 = vpop.f32.mrb[0].mxu0
        %v1977 = vadd.f32 0.0, %v1976
        %v1978 = vpop.f32.mrb[0].mxu0
        %1979 = vmatprep.mubr.f32.mxu0 0.0
        %1980 = vmatmul.mubr.f32.gmra.mrb[0].mxu0 %v1779
        %v1981 = vpop.f32.mrb[0].mxu0
        %v1982 = vadd.f32 0.0, %v1981
        %v1983 = vpop.f32.mrb[0].mxu0
        %1984 = vmatprep.mubr.f32.mxu0 0.0
        %1985 = vmatmul.mubr.f32.gmra.mrb[0].mxu0 %v1782
        %v1986 = vpop.f32.mrb[0].mxu0
        %v1987 = vadd.f32 0.0, %v1986
        %v1988 = vpop.f32.mrb[0].mxu0
        %1989 = vmatprep.mubr.f32.mxu0 0.0
        %1990 = vmatmul.mubr.f32.gmra.mrb[0].mxu0 %v1785
        %v1991 = vpop.f32.mrb[0].mxu0
        %v1992 = vadd.f32 0.0, %v1991
        %v1993 = vpop.f32.mrb[0].mxu0
        %1994 = vmatprep.mubr.f32.mxu0 0.0
        %1995 = vmatmul.mubr.f32.gmra.mrb[0].mxu0 %v1788
        %v1996 = vpop.f32.mrb[0].mxu0
        %v1997 = vadd.f32 0.0, %v1996
        %v1998 = vpop.f32.mrb[0].mxu0
        %1999 = vmatprep.mubr.f32.mxu0 0.0
        %2000 = vmatmul.mubr.f32.gmra.mrb[0].mxu0 %v1791
        %v2001 = vpop.f32.mrb[0].mxu0
        %v2002 = vadd.f32 0.0, %v2001
        %v2003 = vpop.f32.mrb[0].mxu0
        %2004 = vmatprep.mubr.f32.mxu0 0.0
        %2005 = vmatmul.mubr.f32.gmra.mrb[0].mxu0 %v1794
        %v2006 = vpop.f32.mrb[0].mxu0
        %v2007 = vadd.f32 0.0, %v2006
        %v2008 = vpop.f32.mrb[0].mxu0
        %2009 = vmatprep.mubr.f32.mxu0 0.0
        %2010 = vmatmul.mubr.f32.gmra.mrb[0].mxu0 %v1797
        %v2011 = vpop.f32.mrb[0].mxu0
        %v2012 = vadd.f32 0.0, %v2011
        %v2013 = vpop.f32.mrb[0].mxu0
        %2014 = vmatprep.mubr.f32.mxu0 0.0
        %2015 = vmatmul.mubr.f32.gmra.mrb[0].mxu0 %v1800
        %v2016 = vpop.f32.mrb[0].mxu0
        %v2017 = vadd.f32 0.0, %v2016
        %v2018 = vpop.f32.mrb[0].mxu0
        %2019 = vmatprep.mubr.f32.mxu0 0.0
        %2020 = vmatmul.mubr.f32.gmra.mrb[0].mxu0 %v1803
        %v2021 = vpop.f32.mrb[0].mxu0
        %v2022 = vadd.f32 0.0, %v2021
        %v2023 = vpop.f32.mrb[0].mxu0
        %2024 = vmatprep.mubr.f32.mxu0 0.0
        %2025 = vmatmul.mubr.f32.gmra.mrb[0].mxu0 %v1806
        %v2026 = vpop.f32.mrb[0].mxu0
        %v2027 = vadd.f32 0.0, %v2026
        %v2028 = vpop.f32.mrb[0].mxu0
        %2029 = vmatprep.mubr.f32.mxu0 0.0
        %2030 = vmatmul.mubr.f32.gmra.mrb[0].mxu0 %v1809
        %v2031 = vpop.f32.mrb[0].mxu0
        %v2032 = vadd.f32 0.0, %v2031
        %v2033 = vpop.f32.mrb[0].mxu0
        %2034 = vmatprep.mubr.f32.mxu0 0.0
        %2035 = vmatmul.mubr.f32.gmra.mrb[0].mxu0 %v1812
        %v2036 = vpop.f32.mrb[0].mxu0
        %v2037 = vadd.f32 0.0, %v2036
        %v2038 = vpop.f32.mrb[0].mxu0
        %2039 = vmatprep.mubr.f32.mxu0 0.0
        %2040 = vmatmul.mubr.f32.gmra.mrb[0].mxu0 %v1815
        %v2041 = vpop.f32.mrb[0].mxu0
        %v2042 = vadd.f32 0.0, %v2041
        %v2043 = vpop.f32.mrb[0].mxu0
        %2044 = vdwg.mxu0
        %v2045 = vadd.f32 %v1655, %v1887
        %v2046 = vadd.f32 %v1656, %v1892
        %v2047 = vadd.f32 %v1657, %v1897
        %v2048 = vadd.f32 %v1658, %v1902
        %v2049 = vadd.f32 %v1659, %v1907
        %v2050 = vadd.f32 %v1660, %v1912
        %v2051 = vadd.f32 %v1661, %v1917
        %v2052 = vadd.f32 %v1662, %v1922
        %v2053 = vadd.f32 %v1663, %v1927
        %v2054 = vadd.f32 %v1664, %v1932
        %v2055 = vadd.f32 %v1665, %v1937
        %v2056 = vadd.f32 %v1666, %v1942
        %v2057 = vadd.f32 %v1667, %v1947
        %v2058 = vadd.f32 %v1668, %v1952
        %v2059 = vadd.f32 %v1669, %v1957
        %v2060 = vadd.f32 %v1670, %v1962
        %v2061 = vadd.f32 %v1671, %v1967
        %v2062 = vadd.f32 %v1672, %v1972
        %v2063 = vadd.f32 %v1673, %v1977
        %v2064 = vadd.f32 %v1674, %v1982
        %v2065 = vadd.f32 %v1675, %v1987
        %v2066 = vadd.f32 %v1676, %v1992
        %v2067 = vadd.f32 %v1677, %v1997
        %v2068 = vadd.f32 %v1678, %v2002
        %v2069 = vadd.f32 %v1679, %v2007
        %v2070 = vadd.f32 %v1680, %v2012
        %v2071 = vadd.f32 %v1681, %v2017
        %v2072 = vadd.f32 %v1682, %v2022
        %v2073 = vadd.f32 %v1683, %v2027
        %v2074 = vadd.f32 %v1684, %v2032
        %v2075 = vadd.f32 %v1685, %v2037
        %v2076 = vadd.f32 %v1686, %v2042
        %v2077 = vld [vmem:[%s1296 + $0x2] sm:$0xff]
        %v2078 = vld [vmem:[%s1296 + $0xa] sm:$0xff]
        %v2079 = vld [vmem:[%s1296 + $0x1a] sm:$0xff]
        %v2080 = vld [vmem:[%s1296 + $0x22] sm:$0xff]
        %v2081 = vld [vmem:[%s1296 + $0x32] sm:$0xff]
        %v2082 = vld [vmem:[%s1296 + $0x3a] sm:$0xff]
        %v2083 = vld [vmem:[%s1296 + $0x4a] sm:$0xff]
        %v2084 = vld [vmem:[%s1296 + $0x52] sm:$0xff]
        %v2085 = vld [vmem:[%s1296 + $0x62] sm:$0xff]
        %v2086 = vld [vmem:[%s1296 + $0x6a] sm:$0xff]
        %v2087 = vld [vmem:[%s1296 + $0x7a] sm:$0xff]
        %v2088 = vld [vmem:[%s1296 + $0x82] sm:$0xff]
        %v2089 = vld [vmem:[%s1296 + $0x92] sm:$0xff]
        %v2090 = vld [vmem:[%s1296 + $0x9a] sm:$0xff]
        %v2091 = vld [vmem:[%s1296 + $0xaa] sm:$0xff]
        %v2092 = vld [vmem:[%s1296 + $0xb2] sm:$0xff]
        %v2093 = vld [vmem:[%s1296 + $0xc2] sm:$0xff]
        %v2094 = vld [vmem:[%s1296 + $0xca] sm:$0xff]
        %v2095 = vld [vmem:[%s1296 + $0xda] sm:$0xff]
        %v2096 = vld [vmem:[%s1296 + $0xe2] sm:$0xff]
        %v2097 = vld [vmem:[%s1296 + $0xf2] sm:$0xff]
        %v2098 = vld [vmem:[%s1296 + $0xfa] sm:$0xff]
        %v2099 = vld [vmem:[%s1296 + $0x10a] sm:$0xff]
        %v2100 = vld [vmem:[%s1296 + $0x112] sm:$0xff]
        %v2101 = vld [vmem:[%s1296 + $0x122] sm:$0xff]
        %v2102 = vld [vmem:[%s1296 + $0x12a] sm:$0xff]
        %v2103 = vld [vmem:[%s1296 + $0x13a] sm:$0xff]
        %v2104 = vld [vmem:[%s1296 + $0x142] sm:$0xff]
        %v2105 = vld [vmem:[%s1296 + $0x152] sm:$0xff]
        %v2106 = vld [vmem:[%s1296 + $0x15a] sm:$0xff]
        %v2107 = vld [vmem:[%s1296 + $0x16a] sm:$0xff]
        %v2108 = vld [vmem:[%s1296 + $0x172] sm:$0xff]
        %s2109 = scalar_lea.vmem %s1, 20
        %v2110 = vld [vmem:[%s2109] sm:$0xf]
        %v2112 = vsel %vm254, %v2077, 0
        %v2115 = vsel %vm254, %v2078, 0
        %v2118 = vsel %vm254, %v2079, 0
        %v2121 = vsel %vm254, %v2080, 0
        %v2124 = vsel %vm254, %v2081, 0
        %v2127 = vsel %vm254, %v2082, 0
        %v2130 = vsel %vm254, %v2083, 0
        %v2133 = vsel %vm254, %v2084, 0
        %v2136 = vsel %vm254, %v2085, 0
        %v2139 = vsel %vm254, %v2086, 0
        %v2142 = vsel %vm254, %v2087, 0
        %v2145 = vsel %vm254, %v2088, 0
        %v2148 = vsel %vm254, %v2089, 0
        %v2151 = vsel %vm254, %v2090, 0
        %v2154 = vsel %vm254, %v2091, 0
        %v2157 = vsel %vm254, %v2092, 0
        %v2160 = vsel %vm254, %v2093, 0
        %v2163 = vsel %vm254, %v2094, 0
        %v2166 = vsel %vm254, %v2095, 0
        %v2169 = vsel %vm254, %v2096, 0
        %v2172 = vsel %vm254, %v2097, 0
        %v2175 = vsel %vm254, %v2098, 0
        %v2178 = vsel %vm254, %v2099, 0
        %v2181 = vsel %vm254, %v2100, 0
        %v2184 = vsel %vm254, %v2101, 0
        %v2187 = vsel %vm254, %v2102, 0
        %v2190 = vsel %vm254, %v2103, 0
        %v2193 = vsel %vm254, %v2104, 0
        %v2196 = vsel %vm254, %v2105, 0
        %v2199 = vsel %vm254, %v2106, 0
        %v2202 = vsel %vm254, %v2107, 0
        %v2205 = vsel %vm254, %v2108, 0
        %v2208 = vsel %vm351, %v2110, 0
        %2210 = vmatprep.subr.mxu0 0.0
        %2211 = vmatpush1.msra.mxu0 %v2208
        %2212 = vmatprep.subr.mxu0 0.0
        %2213 = vmatpush1.msra.mxu0 0.0
        %2214 = vmatprep.subr.mxu0 0.0
        %2215 = vmatpush1.msra.mxu0 0.0
        %2216 = vmatprep.subr.mxu0 0.0
        %2217 = vmatpush1.msra.mxu0 0.0
        %2218 = vmatprep.subr.mxu0 0.0
        %2219 = vmatpush1.msra.mxu0 0.0
        %2220 = vmatprep.subr.mxu0 0.0
        %2221 = vmatpush1.msra.mxu0 0.0
        %2222 = vmatprep.subr.mxu0 0.0
        %2223 = vmatpush1.msra.mxu0 0.0
        %2224 = vmatprep.subr.mxu0 0.0
        %2225 = vmatpush1.msra.mxu0 0.0
        %2226 = vmatprep.subr.mxu0 0.0
        %2227 = vmatpush1.msra.mxu0 0.0
        %2228 = vmatprep.subr.mxu0 0.0
        %2229 = vmatpush1.msra.mxu0 0.0
        %2230 = vmatprep.subr.mxu0 0.0
        %2231 = vmatpush1.msra.mxu0 0.0
        %2232 = vmatprep.subr.mxu0 0.0
        %2233 = vmatpush1.msra.mxu0 0.0
        %2234 = vmatprep.subr.mxu0 0.0
        %2235 = vmatpush1.msra.mxu0 0.0
        %2236 = vmatprep.subr.mxu0 0.0
        %2237 = vmatpush1.msra.mxu0 0.0
        %2238 = vmatprep.subr.mxu0 0.0
        %2239 = vmatpush1.msra.mxu0 0.0
        %2240 = vmatprep.subr.mxu0 0.0
        %2241 = vmatpush1.msra.mxu0 0.0
        %2242 = vmatprep.subr.mxu0 0.0
        %2243 = vmatpush1.msra.mxu0 0.0
        %2244 = vmatprep.subr.mxu0 0.0
        %2245 = vmatpush1.msra.mxu0 0.0
        %2246 = vmatprep.subr.mxu0 0.0
        %2247 = vmatpush1.msra.mxu0 0.0
        %2248 = vmatprep.subr.mxu0 0.0
        %2249 = vmatpush1.msra.mxu0 0.0
        %2250 = vmatprep.subr.mxu0 0.0
        %2251 = vmatpush1.msra.mxu0 0.0
        %2252 = vmatprep.subr.mxu0 0.0
        %2253 = vmatpush1.msra.mxu0 0.0
        %2254 = vmatprep.subr.mxu0 0.0
        %2255 = vmatpush1.msra.mxu0 0.0
        %2256 = vmatprep.subr.mxu0 0.0
        %2257 = vmatpush1.msra.mxu0 0.0
        %2258 = vmatprep.subr.mxu0 0.0
        %2259 = vmatpush1.msra.mxu0 0.0
        %2260 = vmatprep.subr.mxu0 0.0
        %2261 = vmatpush1.msra.mxu0 0.0
        %2262 = vmatprep.subr.mxu0 0.0
        %2263 = vmatpush1.msra.mxu0 0.0
        %2264 = vmatprep.subr.mxu0 0.0
        %2265 = vmatpush1.msra.mxu0 0.0
        %2266 = vmatprep.subr.mxu0 0.0
        %2267 = vmatpush1.msra.mxu0 0.0
        %2268 = vmatprep.subr.mxu0 0.0
        %2269 = vmatpush1.msra.mxu0 0.0
        %2270 = vmatprep.subr.mxu0 0.0
        %2271 = vmatpush1.msra.mxu0 0.0
        %2272 = vmatprep.subr.mxu0 0.0
        %2273 = vmatpush1.msra.mxu0 0.0
        %2274 = vmatprep.mubr.f32.mxu0 0.0
        %2275 = vmatmul.mubr.f32.gmra.mrb[0].mxu0 %v2112
        %v2276 = vpop.f32.mrb[0].mxu0
        %v2277 = vadd.f32 0.0, %v2276
        %v2278 = vpop.f32.mrb[0].mxu0
        %2279 = vmatprep.mubr.f32.mxu0 0.0
        %2280 = vmatmul.mubr.f32.gmra.mrb[0].mxu0 %v2115
        %v2281 = vpop.f32.mrb[0].mxu0
        %v2282 = vadd.f32 0.0, %v2281
        %v2283 = vpop.f32.mrb[0].mxu0
        %2284 = vmatprep.mubr.f32.mxu0 0.0
        %2285 = vmatmul.mubr.f32.gmra.mrb[0].mxu0 %v2118
        %v2286 = vpop.f32.mrb[0].mxu0
        %v2287 = vadd.f32 0.0, %v2286
        %v2288 = vpop.f32.mrb[0].mxu0
        %2289 = vmatprep.mubr.f32.mxu0 0.0
        %2290 = vmatmul.mubr.f32.gmra.mrb[0].mxu0 %v2121
        %v2291 = vpop.f32.mrb[0].mxu0
        %v2292 = vadd.f32 0.0, %v2291
        %v2293 = vpop.f32.mrb[0].mxu0
        %2294 = vmatprep.mubr.f32.mxu0 0.0
        %2295 = vmatmul.mubr.f32.gmra.mrb[0].mxu0 %v2124
        %v2296 = vpop.f32.mrb[0].mxu0
        %v2297 = vadd.f32 0.0, %v2296
        %v2298 = vpop.f32.mrb[0].mxu0
        %2299 = vmatprep.mubr.f32.mxu0 0.0
        %2300 = vmatmul.mubr.f32.gmra.mrb[0].mxu0 %v2127
        %v2301 = vpop.f32.mrb[0].mxu0
        %v2302 = vadd.f32 0.0, %v2301
        %v2303 = vpop.f32.mrb[0].mxu0
        %2304 = vmatprep.mubr.f32.mxu0 0.0
        %2305 = vmatmul.mubr.f32.gmra.mrb[0].mxu0 %v2130
        %v2306 = vpop.f32.mrb[0].mxu0
        %v2307 = vadd.f32 0.0, %v2306
        %v2308 = vpop.f32.mrb[0].mxu0
        %2309 = vmatprep.mubr.f32.mxu0 0.0
        %2310 = vmatmul.mubr.f32.gmra.mrb[0].mxu0 %v2133
        %v2311 = vpop.f32.mrb[0].mxu0
        %v2312 = vadd.f32 0.0, %v2311
        %v2313 = vpop.f32.mrb[0].mxu0
        %2314 = vmatprep.mubr.f32.mxu0 0.0
        %2315 = vmatmul.mubr.f32.gmra.mrb[0].mxu0 %v2136
        %v2316 = vpop.f32.mrb[0].mxu0
        %v2317 = vadd.f32 0.0, %v2316
        %v2318 = vpop.f32.mrb[0].mxu0
        %2319 = vmatprep.mubr.f32.mxu0 0.0
        %2320 = vmatmul.mubr.f32.gmra.mrb[0].mxu0 %v2139
        %v2321 = vpop.f32.mrb[0].mxu0
        %v2322 = vadd.f32 0.0, %v2321
        %v2323 = vpop.f32.mrb[0].mxu0
        %2324 = vmatprep.mubr.f32.mxu0 0.0
        %2325 = vmatmul.mubr.f32.gmra.mrb[0].mxu0 %v2142
        %v2326 = vpop.f32.mrb[0].mxu0
        %v2327 = vadd.f32 0.0, %v2326
        %v2328 = vpop.f32.mrb[0].mxu0
        %2329 = vmatprep.mubr.f32.mxu0 0.0
        %2330 = vmatmul.mubr.f32.gmra.mrb[0].mxu0 %v2145
        %v2331 = vpop.f32.mrb[0].mxu0
        %v2332 = vadd.f32 0.0, %v2331
        %v2333 = vpop.f32.mrb[0].mxu0
        %2334 = vmatprep.mubr.f32.mxu0 0.0
        %2335 = vmatmul.mubr.f32.gmra.mrb[0].mxu0 %v2148
        %v2336 = vpop.f32.mrb[0].mxu0
        %v2337 = vadd.f32 0.0, %v2336
        %v2338 = vpop.f32.mrb[0].mxu0
        %2339 = vmatprep.mubr.f32.mxu0 0.0
        %2340 = vmatmul.mubr.f32.gmra.mrb[0].mxu0 %v2151
        %v2341 = vpop.f32.mrb[0].mxu0
        %v2342 = vadd.f32 0.0, %v2341
        %v2343 = vpop.f32.mrb[0].mxu0
        %2344 = vmatprep.mubr.f32.mxu0 0.0
        %2345 = vmatmul.mubr.f32.gmra.mrb[0].mxu0 %v2154
        %v2346 = vpop.f32.mrb[0].mxu0
        %v2347 = vadd.f32 0.0, %v2346
        %v2348 = vpop.f32.mrb[0].mxu0
        %2349 = vmatprep.mubr.f32.mxu0 0.0
        %2350 = vmatmul.mubr.f32.gmra.mrb[0].mxu0 %v2157
        %v2351 = vpop.f32.mrb[0].mxu0
        %v2352 = vadd.f32 0.0, %v2351
        %v2353 = vpop.f32.mrb[0].mxu0
        %2354 = vmatprep.mubr.f32.mxu0 0.0
        %2355 = vmatmul.mubr.f32.gmra.mrb[0].mxu0 %v2160
        %v2356 = vpop.f32.mrb[0].mxu0
        %v2357 = vadd.f32 0.0, %v2356
        %v2358 = vpop.f32.mrb[0].mxu0
        %2359 = vmatprep.mubr.f32.mxu0 0.0
        %2360 = vmatmul.mubr.f32.gmra.mrb[0].mxu0 %v2163
        %v2361 = vpop.f32.mrb[0].mxu0
        %v2362 = vadd.f32 0.0, %v2361
        %v2363 = vpop.f32.mrb[0].mxu0
        %2364 = vmatprep.mubr.f32.mxu0 0.0
        %2365 = vmatmul.mubr.f32.gmra.mrb[0].mxu0 %v2166
        %v2366 = vpop.f32.mrb[0].mxu0
        %v2367 = vadd.f32 0.0, %v2366
        %v2368 = vpop.f32.mrb[0].mxu0
        %2369 = vmatprep.mubr.f32.mxu0 0.0
        %2370 = vmatmul.mubr.f32.gmra.mrb[0].mxu0 %v2169
        %v2371 = vpop.f32.mrb[0].mxu0
        %v2372 = vadd.f32 0.0, %v2371
        %v2373 = vpop.f32.mrb[0].mxu0
        %2374 = vmatprep.mubr.f32.mxu0 0.0
        %2375 = vmatmul.mubr.f32.gmra.mrb[0].mxu0 %v2172
        %v2376 = vpop.f32.mrb[0].mxu0
        %v2377 = vadd.f32 0.0, %v2376
        %v2378 = vpop.f32.mrb[0].mxu0
        %2379 = vmatprep.mubr.f32.mxu0 0.0
        %2380 = vmatmul.mubr.f32.gmra.mrb[0].mxu0 %v2175
        %v2381 = vpop.f32.mrb[0].mxu0
        %v2382 = vadd.f32 0.0, %v2381
        %v2383 = vpop.f32.mrb[0].mxu0
        %2384 = vmatprep.mubr.f32.mxu0 0.0
        %2385 = vmatmul.mubr.f32.gmra.mrb[0].mxu0 %v2178
        %v2386 = vpop.f32.mrb[0].mxu0
        %v2387 = vadd.f32 0.0, %v2386
        %v2388 = vpop.f32.mrb[0].mxu0
        %2389 = vmatprep.mubr.f32.mxu0 0.0
        %2390 = vmatmul.mubr.f32.gmra.mrb[0].mxu0 %v2181
        %v2391 = vpop.f32.mrb[0].mxu0
        %v2392 = vadd.f32 0.0, %v2391
        %v2393 = vpop.f32.mrb[0].mxu0
        %2394 = vmatprep.mubr.f32.mxu0 0.0
        %2395 = vmatmul.mubr.f32.gmra.mrb[0].mxu0 %v2184
        %v2396 = vpop.f32.mrb[0].mxu0
        %v2397 = vadd.f32 0.0, %v2396
        %v2398 = vpop.f32.mrb[0].mxu0
        %2399 = vmatprep.mubr.f32.mxu0 0.0
        %2400 = vmatmul.mubr.f32.gmra.mrb[0].mxu0 %v2187
        %v2401 = vpop.f32.mrb[0].mxu0
        %v2402 = vadd.f32 0.0, %v2401
        %v2403 = vpop.f32.mrb[0].mxu0
        %2404 = vmatprep.mubr.f32.mxu0 0.0
        %2405 = vmatmul.mubr.f32.gmra.mrb[0].mxu0 %v2190
        %v2406 = vpop.f32.mrb[0].mxu0
        %v2407 = vadd.f32 0.0, %v2406
        %v2408 = vpop.f32.mrb[0].mxu0
        %2409 = vmatprep.mubr.f32.mxu0 0.0
        %2410 = vmatmul.mubr.f32.gmra.mrb[0].mxu0 %v2193
        %v2411 = vpop.f32.mrb[0].mxu0
        %v2412 = vadd.f32 0.0, %v2411
        %v2413 = vpop.f32.mrb[0].mxu0
        %2414 = vmatprep.mubr.f32.mxu0 0.0
        %2415 = vmatmul.mubr.f32.gmra.mrb[0].mxu0 %v2196
        %v2416 = vpop.f32.mrb[0].mxu0
        %v2417 = vadd.f32 0.0, %v2416
        %v2418 = vpop.f32.mrb[0].mxu0
        %2419 = vmatprep.mubr.f32.mxu0 0.0
        %2420 = vmatmul.mubr.f32.gmra.mrb[0].mxu0 %v2199
        %v2421 = vpop.f32.mrb[0].mxu0
        %v2422 = vadd.f32 0.0, %v2421
        %v2423 = vpop.f32.mrb[0].mxu0
        %2424 = vmatprep.mubr.f32.mxu0 0.0
        %2425 = vmatmul.mubr.f32.gmra.mrb[0].mxu0 %v2202
        %v2426 = vpop.f32.mrb[0].mxu0
        %v2427 = vadd.f32 0.0, %v2426
        %v2428 = vpop.f32.mrb[0].mxu0
        %2429 = vmatprep.mubr.f32.mxu0 0.0
        %2430 = vmatmul.mubr.f32.gmra.mrb[0].mxu0 %v2205
        %v2431 = vpop.f32.mrb[0].mxu0
        %v2432 = vadd.f32 0.0, %v2431
        %v2433 = vpop.f32.mrb[0].mxu0
        %2434 = vdwg.mxu0
        %v2435 = vadd.f32 %v2045, %v2277
        %v2436 = vadd.f32 %v2046, %v2282
        %v2437 = vadd.f32 %v2047, %v2287
        %v2438 = vadd.f32 %v2048, %v2292
        %v2439 = vadd.f32 %v2049, %v2297
        %v2440 = vadd.f32 %v2050, %v2302
        %v2441 = vadd.f32 %v2051, %v2307
        %v2442 = vadd.f32 %v2052, %v2312
        %v2443 = vadd.f32 %v2053, %v2317
        %v2444 = vadd.f32 %v2054, %v2322
        %v2445 = vadd.f32 %v2055, %v2327
        %v2446 = vadd.f32 %v2056, %v2332
        %v2447 = vadd.f32 %v2057, %v2337
        %v2448 = vadd.f32 %v2058, %v2342
        %v2449 = vadd.f32 %v2059, %v2347
        %v2450 = vadd.f32 %v2060, %v2352
        %v2451 = vadd.f32 %v2061, %v2357
        %v2452 = vadd.f32 %v2062, %v2362
        %v2453 = vadd.f32 %v2063, %v2367
        %v2454 = vadd.f32 %v2064, %v2372
        %v2455 = vadd.f32 %v2065, %v2377
        %v2456 = vadd.f32 %v2066, %v2382
        %v2457 = vadd.f32 %v2067, %v2387
        %v2458 = vadd.f32 %v2068, %v2392
        %v2459 = vadd.f32 %v2069, %v2397
        %v2460 = vadd.f32 %v2070, %v2402
        %v2461 = vadd.f32 %v2071, %v2407
        %v2462 = vadd.f32 %v2072, %v2412
        %v2463 = vadd.f32 %v2073, %v2417
        %v2464 = vadd.f32 %v2074, %v2422
        %v2465 = vadd.f32 %v2075, %v2427
        %v2466 = vadd.f32 %v2076, %v2432
        %s2467 = sadd.s32 %s184, 2
        %s2468 = smul.u32 %s2467, 24
        %s2469 = scalar_lea.vmem %s182, %s2468
        %v2470 = vld [vmem:[%s2469] sm:$0xff]
        %v2471 = vld [vmem:[%s2469 + $0x8] sm:$0xff]
        %v2472 = vld [vmem:[%s2469 + $0x18] sm:$0xff]
        %v2473 = vld [vmem:[%s2469 + $0x20] sm:$0xff]
        %v2474 = vld [vmem:[%s2469 + $0x30] sm:$0xff]
        %v2475 = vld [vmem:[%s2469 + $0x38] sm:$0xff]
        %v2476 = vld [vmem:[%s2469 + $0x48] sm:$0xff]
        %v2477 = vld [vmem:[%s2469 + $0x50] sm:$0xff]
        %v2478 = vld [vmem:[%s2469 + $0x60] sm:$0xff]
        %v2479 = vld [vmem:[%s2469 + $0x68] sm:$0xff]
        %v2480 = vld [vmem:[%s2469 + $0x78] sm:$0xff]
        %v2481 = vld [vmem:[%s2469 + $0x80] sm:$0xff]
        %v2482 = vld [vmem:[%s2469 + $0x90] sm:$0xff]
        %v2483 = vld [vmem:[%s2469 + $0x98] sm:$0xff]
        %v2484 = vld [vmem:[%s2469 + $0xa8] sm:$0xff]
        %v2485 = vld [vmem:[%s2469 + $0xb0] sm:$0xff]
        %v2486 = vld [vmem:[%s2469 + $0xc0] sm:$0xff]
        %v2487 = vld [vmem:[%s2469 + $0xc8] sm:$0xff]
        %v2488 = vld [vmem:[%s2469 + $0xd8] sm:$0xff]
        %v2489 = vld [vmem:[%s2469 + $0xe0] sm:$0xff]
        %v2490 = vld [vmem:[%s2469 + $0xf0] sm:$0xff]
        %v2491 = vld [vmem:[%s2469 + $0xf8] sm:$0xff]
        %v2492 = vld [vmem:[%s2469 + $0x108] sm:$0xff]
        %v2493 = vld [vmem:[%s2469 + $0x110] sm:$0xff]
        %v2494 = vld [vmem:[%s2469 + $0x120] sm:$0xff]
        %v2495 = vld [vmem:[%s2469 + $0x128] sm:$0xff]
        %v2496 = vld [vmem:[%s2469 + $0x138] sm:$0xff]
        %v2497 = vld [vmem:[%s2469 + $0x140] sm:$0xff]
        %v2498 = vld [vmem:[%s2469 + $0x150] sm:$0xff]
        %v2499 = vld [vmem:[%s2469 + $0x158] sm:$0xff]
        %v2500 = vld [vmem:[%s2469 + $0x168] sm:$0xff]
        %v2501 = vld [vmem:[%s2469 + $0x170] sm:$0xff]
        %s2502 = scalar_lea.vmem %s1, 24
        %v2503 = vld [vmem:[%s2502] sm:$0xf]
        %v2505 = vsel %vm254, %v2470, 0
        %v2508 = vsel %vm254, %v2471, 0
        %v2511 = vsel %vm254, %v2472, 0
        %v2514 = vsel %vm254, %v2473, 0
        %v2517 = vsel %vm254, %v2474, 0
        %v2520 = vsel %vm254, %v2475, 0
        %v2523 = vsel %vm254, %v2476, 0
        %v2526 = vsel %vm254, %v2477, 0
        %v2529 = vsel %vm254, %v2478, 0
        %v2532 = vsel %vm254, %v2479, 0
        %v2535 = vsel %vm254, %v2480, 0
        %v2538 = vsel %vm254, %v2481, 0
        %v2541 = vsel %vm254, %v2482, 0
        %v2544 = vsel %vm254, %v2483, 0
        %v2547 = vsel %vm254, %v2484, 0
        %v2550 = vsel %vm254, %v2485, 0
        %v2553 = vsel %vm254, %v2486, 0
        %v2556 = vsel %vm254, %v2487, 0
        %v2559 = vsel %vm254, %v2488, 0
        %v2562 = vsel %vm254, %v2489, 0
        %v2565 = vsel %vm254, %v2490, 0
        %v2568 = vsel %vm254, %v2491, 0
        %v2571 = vsel %vm254, %v2492, 0
        %v2574 = vsel %vm254, %v2493, 0
        %v2577 = vsel %vm254, %v2494, 0
        %v2580 = vsel %vm254, %v2495, 0
        %v2583 = vsel %vm254, %v2496, 0
        %v2586 = vsel %vm254, %v2497, 0
        %v2589 = vsel %vm254, %v2498, 0
        %v2592 = vsel %vm254, %v2499, 0
        %v2595 = vsel %vm254, %v2500, 0
        %v2598 = vsel %vm254, %v2501, 0
        %v2601 = vsel %vm351, %v2503, 0
        %2603 = vmatprep.subr.mxu0 0.0
        %2604 = vmatpush1.msra.mxu0 %v2601
        %2605 = vmatprep.subr.mxu0 0.0
        %2606 = vmatpush1.msra.mxu0 0.0
        %2607 = vmatprep.subr.mxu0 0.0
        %2608 = vmatpush1.msra.mxu0 0.0
        %2609 = vmatprep.subr.mxu0 0.0
        %2610 = vmatpush1.msra.mxu0 0.0
        %2611 = vmatprep.subr.mxu0 0.0
        %2612 = vmatpush1.msra.mxu0 0.0
        %2613 = vmatprep.subr.mxu0 0.0
        %2614 = vmatpush1.msra.mxu0 0.0
        %2615 = vmatprep.subr.mxu0 0.0
        %2616 = vmatpush1.msra.mxu0 0.0
        %2617 = vmatprep.subr.mxu0 0.0
        %2618 = vmatpush1.msra.mxu0 0.0
        %2619 = vmatprep.subr.mxu0 0.0
        %2620 = vmatpush1.msra.mxu0 0.0
        %2621 = vmatprep.subr.mxu0 0.0
        %2622 = vmatpush1.msra.mxu0 0.0
        %2623 = vmatprep.subr.mxu0 0.0
        %2624 = vmatpush1.msra.mxu0 0.0
        %2625 = vmatprep.subr.mxu0 0.0
        %2626 = vmatpush1.msra.mxu0 0.0
        %2627 = vmatprep.subr.mxu0 0.0
        %2628 = vmatpush1.msra.mxu0 0.0
        %2629 = vmatprep.subr.mxu0 0.0
        %2630 = vmatpush1.msra.mxu0 0.0
        %2631 = vmatprep.subr.mxu0 0.0
        %2632 = vmatpush1.msra.mxu0 0.0
        %2633 = vmatprep.subr.mxu0 0.0
        %2634 = vmatpush1.msra.mxu0 0.0
        %2635 = vmatprep.subr.mxu0 0.0
        %2636 = vmatpush1.msra.mxu0 0.0
        %2637 = vmatprep.subr.mxu0 0.0
        %2638 = vmatpush1.msra.mxu0 0.0
        %2639 = vmatprep.subr.mxu0 0.0
        %2640 = vmatpush1.msra.mxu0 0.0
        %2641 = vmatprep.subr.mxu0 0.0
        %2642 = vmatpush1.msra.mxu0 0.0
        %2643 = vmatprep.subr.mxu0 0.0
        %2644 = vmatpush1.msra.mxu0 0.0
        %2645 = vmatprep.subr.mxu0 0.0
        %2646 = vmatpush1.msra.mxu0 0.0
        %2647 = vmatprep.subr.mxu0 0.0
        %2648 = vmatpush1.msra.mxu0 0.0
        %2649 = vmatprep.subr.mxu0 0.0
        %2650 = vmatpush1.msra.mxu0 0.0
        %2651 = vmatprep.subr.mxu0 0.0
        %2652 = vmatpush1.msra.mxu0 0.0
        %2653 = vmatprep.subr.mxu0 0.0
        %2654 = vmatpush1.msra.mxu0 0.0
        %2655 = vmatprep.subr.mxu0 0.0
        %2656 = vmatpush1.msra.mxu0 0.0
        %2657 = vmatprep.subr.mxu0 0.0
        %2658 = vmatpush1.msra.mxu0 0.0
        %2659 = vmatprep.subr.mxu0 0.0
        %2660 = vmatpush1.msra.mxu0 0.0
        %2661 = vmatprep.subr.mxu0 0.0
        %2662 = vmatpush1.msra.mxu0 0.0
        %2663 = vmatprep.subr.mxu0 0.0
        %2664 = vmatpush1.msra.mxu0 0.0
        %2665 = vmatprep.subr.mxu0 0.0
        %2666 = vmatpush1.msra.mxu0 0.0
        %2667 = vmatprep.mubr.f32.mxu0 0.0
        %2668 = vmatmul.mubr.f32.gmra.mrb[0].mxu0 %v2505
        %v2669 = vpop.f32.mrb[0].mxu0
        %v2670 = vadd.f32 0.0, %v2669
        %v2671 = vpop.f32.mrb[0].mxu0
        %2672 = vmatprep.mubr.f32.mxu0 0.0
        %2673 = vmatmul.mubr.f32.gmra.mrb[0].mxu0 %v2508
        %v2674 = vpop.f32.mrb[0].mxu0
        %v2675 = vadd.f32 0.0, %v2674
        %v2676 = vpop.f32.mrb[0].mxu0
        %2677 = vmatprep.mubr.f32.mxu0 0.0
        %2678 = vmatmul.mubr.f32.gmra.mrb[0].mxu0 %v2511
        %v2679 = vpop.f32.mrb[0].mxu0
        %v2680 = vadd.f32 0.0, %v2679
        %v2681 = vpop.f32.mrb[0].mxu0
        %2682 = vmatprep.mubr.f32.mxu0 0.0
        %2683 = vmatmul.mubr.f32.gmra.mrb[0].mxu0 %v2514
        %v2684 = vpop.f32.mrb[0].mxu0
        %v2685 = vadd.f32 0.0, %v2684
        %v2686 = vpop.f32.mrb[0].mxu0
        %2687 = vmatprep.mubr.f32.mxu0 0.0
        %2688 = vmatmul.mubr.f32.gmra.mrb[0].mxu0 %v2517
        %v2689 = vpop.f32.mrb[0].mxu0
        %v2690 = vadd.f32 0.0, %v2689
        %v2691 = vpop.f32.mrb[0].mxu0
        %2692 = vmatprep.mubr.f32.mxu0 0.0
        %2693 = vmatmul.mubr.f32.gmra.mrb[0].mxu0 %v2520
        %v2694 = vpop.f32.mrb[0].mxu0
        %v2695 = vadd.f32 0.0, %v2694
        %v2696 = vpop.f32.mrb[0].mxu0
        %2697 = vmatprep.mubr.f32.mxu0 0.0
        %2698 = vmatmul.mubr.f32.gmra.mrb[0].mxu0 %v2523
        %v2699 = vpop.f32.mrb[0].mxu0
        %v2700 = vadd.f32 0.0, %v2699
        %v2701 = vpop.f32.mrb[0].mxu0
        %2702 = vmatprep.mubr.f32.mxu0 0.0
        %2703 = vmatmul.mubr.f32.gmra.mrb[0].mxu0 %v2526
        %v2704 = vpop.f32.mrb[0].mxu0
        %v2705 = vadd.f32 0.0, %v2704
        %v2706 = vpop.f32.mrb[0].mxu0
        %2707 = vmatprep.mubr.f32.mxu0 0.0
        %2708 = vmatmul.mubr.f32.gmra.mrb[0].mxu0 %v2529
        %v2709 = vpop.f32.mrb[0].mxu0
        %v2710 = vadd.f32 0.0, %v2709
        %v2711 = vpop.f32.mrb[0].mxu0
        %2712 = vmatprep.mubr.f32.mxu0 0.0
        %2713 = vmatmul.mubr.f32.gmra.mrb[0].mxu0 %v2532
        %v2714 = vpop.f32.mrb[0].mxu0
        %v2715 = vadd.f32 0.0, %v2714
        %v2716 = vpop.f32.mrb[0].mxu0
        %2717 = vmatprep.mubr.f32.mxu0 0.0
        %2718 = vmatmul.mubr.f32.gmra.mrb[0].mxu0 %v2535
        %v2719 = vpop.f32.mrb[0].mxu0
        %v2720 = vadd.f32 0.0, %v2719
        %v2721 = vpop.f32.mrb[0].mxu0
        %2722 = vmatprep.mubr.f32.mxu0 0.0
        %2723 = vmatmul.mubr.f32.gmra.mrb[0].mxu0 %v2538
        %v2724 = vpop.f32.mrb[0].mxu0
        %v2725 = vadd.f32 0.0, %v2724
        %v2726 = vpop.f32.mrb[0].mxu0
        %2727 = vmatprep.mubr.f32.mxu0 0.0
        %2728 = vmatmul.mubr.f32.gmra.mrb[0].mxu0 %v2541
        %v2729 = vpop.f32.mrb[0].mxu0
        %v2730 = vadd.f32 0.0, %v2729
        %v2731 = vpop.f32.mrb[0].mxu0
        %2732 = vmatprep.mubr.f32.mxu0 0.0
        %2733 = vmatmul.mubr.f32.gmra.mrb[0].mxu0 %v2544
        %v2734 = vpop.f32.mrb[0].mxu0
        %v2735 = vadd.f32 0.0, %v2734
        %v2736 = vpop.f32.mrb[0].mxu0
        %2737 = vmatprep.mubr.f32.mxu0 0.0
        %2738 = vmatmul.mubr.f32.gmra.mrb[0].mxu0 %v2547
        %v2739 = vpop.f32.mrb[0].mxu0
        %v2740 = vadd.f32 0.0, %v2739
        %v2741 = vpop.f32.mrb[0].mxu0
        %2742 = vmatprep.mubr.f32.mxu0 0.0
        %2743 = vmatmul.mubr.f32.gmra.mrb[0].mxu0 %v2550
        %v2744 = vpop.f32.mrb[0].mxu0
        %v2745 = vadd.f32 0.0, %v2744
        %v2746 = vpop.f32.mrb[0].mxu0
        %2747 = vmatprep.mubr.f32.mxu0 0.0
        %2748 = vmatmul.mubr.f32.gmra.mrb[0].mxu0 %v2553
        %v2749 = vpop.f32.mrb[0].mxu0
        %v2750 = vadd.f32 0.0, %v2749
        %v2751 = vpop.f32.mrb[0].mxu0
        %2752 = vmatprep.mubr.f32.mxu0 0.0
        %2753 = vmatmul.mubr.f32.gmra.mrb[0].mxu0 %v2556
        %v2754 = vpop.f32.mrb[0].mxu0
        %v2755 = vadd.f32 0.0, %v2754
        %v2756 = vpop.f32.mrb[0].mxu0
        %2757 = vmatprep.mubr.f32.mxu0 0.0
        %2758 = vmatmul.mubr.f32.gmra.mrb[0].mxu0 %v2559
        %v2759 = vpop.f32.mrb[0].mxu0
        %v2760 = vadd.f32 0.0, %v2759
        %v2761 = vpop.f32.mrb[0].mxu0
        %2762 = vmatprep.mubr.f32.mxu0 0.0
        %2763 = vmatmul.mubr.f32.gmra.mrb[0].mxu0 %v2562
        %v2764 = vpop.f32.mrb[0].mxu0
        %v2765 = vadd.f32 0.0, %v2764
        %v2766 = vpop.f32.mrb[0].mxu0
        %2767 = vmatprep.mubr.f32.mxu0 0.0
        %2768 = vmatmul.mubr.f32.gmra.mrb[0].mxu0 %v2565
        %v2769 = vpop.f32.mrb[0].mxu0
        %v2770 = vadd.f32 0.0, %v2769
        %v2771 = vpop.f32.mrb[0].mxu0
        %2772 = vmatprep.mubr.f32.mxu0 0.0
        %2773 = vmatmul.mubr.f32.gmra.mrb[0].mxu0 %v2568
        %v2774 = vpop.f32.mrb[0].mxu0
        %v2775 = vadd.f32 0.0, %v2774
        %v2776 = vpop.f32.mrb[0].mxu0
        %2777 = vmatprep.mubr.f32.mxu0 0.0
        %2778 = vmatmul.mubr.f32.gmra.mrb[0].mxu0 %v2571
        %v2779 = vpop.f32.mrb[0].mxu0
        %v2780 = vadd.f32 0.0, %v2779
        %v2781 = vpop.f32.mrb[0].mxu0
        %2782 = vmatprep.mubr.f32.mxu0 0.0
        %2783 = vmatmul.mubr.f32.gmra.mrb[0].mxu0 %v2574
        %v2784 = vpop.f32.mrb[0].mxu0
        %v2785 = vadd.f32 0.0, %v2784
        %v2786 = vpop.f32.mrb[0].mxu0
        %2787 = vmatprep.mubr.f32.mxu0 0.0
        %2788 = vmatmul.mubr.f32.gmra.mrb[0].mxu0 %v2577
        %v2789 = vpop.f32.mrb[0].mxu0
        %v2790 = vadd.f32 0.0, %v2789
        %v2791 = vpop.f32.mrb[0].mxu0
        %2792 = vmatprep.mubr.f32.mxu0 0.0
        %2793 = vmatmul.mubr.f32.gmra.mrb[0].mxu0 %v2580
        %v2794 = vpop.f32.mrb[0].mxu0
        %v2795 = vadd.f32 0.0, %v2794
        %v2796 = vpop.f32.mrb[0].mxu0
        %2797 = vmatprep.mubr.f32.mxu0 0.0
        %2798 = vmatmul.mubr.f32.gmra.mrb[0].mxu0 %v2583
        %v2799 = vpop.f32.mrb[0].mxu0
        %v2800 = vadd.f32 0.0, %v2799
        %v2801 = vpop.f32.mrb[0].mxu0
        %2802 = vmatprep.mubr.f32.mxu0 0.0
        %2803 = vmatmul.mubr.f32.gmra.mrb[0].mxu0 %v2586
        %v2804 = vpop.f32.mrb[0].mxu0
        %v2805 = vadd.f32 0.0, %v2804
        %v2806 = vpop.f32.mrb[0].mxu0
        %2807 = vmatprep.mubr.f32.mxu0 0.0
        %2808 = vmatmul.mubr.f32.gmra.mrb[0].mxu0 %v2589
        %v2809 = vpop.f32.mrb[0].mxu0
        %v2810 = vadd.f32 0.0, %v2809
        %v2811 = vpop.f32.mrb[0].mxu0
        %2812 = vmatprep.mubr.f32.mxu0 0.0
        %2813 = vmatmul.mubr.f32.gmra.mrb[0].mxu0 %v2592
        %v2814 = vpop.f32.mrb[0].mxu0
        %v2815 = vadd.f32 0.0, %v2814
        %v2816 = vpop.f32.mrb[0].mxu0
        %2817 = vmatprep.mubr.f32.mxu0 0.0
        %2818 = vmatmul.mubr.f32.gmra.mrb[0].mxu0 %v2595
        %v2819 = vpop.f32.mrb[0].mxu0
        %v2820 = vadd.f32 0.0, %v2819
        %v2821 = vpop.f32.mrb[0].mxu0
        %2822 = vmatprep.mubr.f32.mxu0 0.0
        %2823 = vmatmul.mubr.f32.gmra.mrb[0].mxu0 %v2598
        %v2824 = vpop.f32.mrb[0].mxu0
        %v2825 = vadd.f32 0.0, %v2824
        %v2826 = vpop.f32.mrb[0].mxu0
        %2827 = vdwg.mxu0
        %v2828 = vadd.f32 %v2435, %v2670
        %v2829 = vadd.f32 %v2436, %v2675
        %v2830 = vadd.f32 %v2437, %v2680
        %v2831 = vadd.f32 %v2438, %v2685
        %v2832 = vadd.f32 %v2439, %v2690
        %v2833 = vadd.f32 %v2440, %v2695
        %v2834 = vadd.f32 %v2441, %v2700
        %v2835 = vadd.f32 %v2442, %v2705
        %v2836 = vadd.f32 %v2443, %v2710
        %v2837 = vadd.f32 %v2444, %v2715
        %v2838 = vadd.f32 %v2445, %v2720
        %v2839 = vadd.f32 %v2446, %v2725
        %v2840 = vadd.f32 %v2447, %v2730
        %v2841 = vadd.f32 %v2448, %v2735
        %v2842 = vadd.f32 %v2449, %v2740
        %v2843 = vadd.f32 %v2450, %v2745
        %v2844 = vadd.f32 %v2451, %v2750
        %v2845 = vadd.f32 %v2452, %v2755
        %v2846 = vadd.f32 %v2453, %v2760
        %v2847 = vadd.f32 %v2454, %v2765
        %v2848 = vadd.f32 %v2455, %v2770
        %v2849 = vadd.f32 %v2456, %v2775
        %v2850 = vadd.f32 %v2457, %v2780
        %v2851 = vadd.f32 %v2458, %v2785
        %v2852 = vadd.f32 %v2459, %v2790
        %v2853 = vadd.f32 %v2460, %v2795
        %v2854 = vadd.f32 %v2461, %v2800
        %v2855 = vadd.f32 %v2462, %v2805
        %v2856 = vadd.f32 %v2463, %v2810
        %v2857 = vadd.f32 %v2464, %v2815
        %v2858 = vadd.f32 %v2465, %v2820
        %v2859 = vadd.f32 %v2466, %v2825
        %v2860 = vld [vmem:[%s2469 + $0x1] sm:$0xff]
        %v2861 = vld [vmem:[%s2469 + $0x9] sm:$0xff]
        %v2862 = vld [vmem:[%s2469 + $0x19] sm:$0xff]
        %v2863 = vld [vmem:[%s2469 + $0x21] sm:$0xff]
        %v2864 = vld [vmem:[%s2469 + $0x31] sm:$0xff]
        %v2865 = vld [vmem:[%s2469 + $0x39] sm:$0xff]
        %v2866 = vld [vmem:[%s2469 + $0x49] sm:$0xff]
        %v2867 = vld [vmem:[%s2469 + $0x51] sm:$0xff]
        %v2868 = vld [vmem:[%s2469 + $0x61] sm:$0xff]
        %v2869 = vld [vmem:[%s2469 + $0x69] sm:$0xff]
        %v2870 = vld [vmem:[%s2469 + $0x79] sm:$0xff]
        %v2871 = vld [vmem:[%s2469 + $0x81] sm:$0xff]
        %v2872 = vld [vmem:[%s2469 + $0x91] sm:$0xff]
        %v2873 = vld [vmem:[%s2469 + $0x99] sm:$0xff]
        %v2874 = vld [vmem:[%s2469 + $0xa9] sm:$0xff]
        %v2875 = vld [vmem:[%s2469 + $0xb1] sm:$0xff]
        %v2876 = vld [vmem:[%s2469 + $0xc1] sm:$0xff]
        %v2877 = vld [vmem:[%s2469 + $0xc9] sm:$0xff]
        %v2878 = vld [vmem:[%s2469 + $0xd9] sm:$0xff]
        %v2879 = vld [vmem:[%s2469 + $0xe1] sm:$0xff]
        %v2880 = vld [vmem:[%s2469 + $0xf1] sm:$0xff]
        %v2881 = vld [vmem:[%s2469 + $0xf9] sm:$0xff]
        %v2882 = vld [vmem:[%s2469 + $0x109] sm:$0xff]
        %v2883 = vld [vmem:[%s2469 + $0x111] sm:$0xff]
        %v2884 = vld [vmem:[%s2469 + $0x121] sm:$0xff]
        %v2885 = vld [vmem:[%s2469 + $0x129] sm:$0xff]
        %v2886 = vld [vmem:[%s2469 + $0x139] sm:$0xff]
        %v2887 = vld [vmem:[%s2469 + $0x141] sm:$0xff]
        %v2888 = vld [vmem:[%s2469 + $0x151] sm:$0xff]
        %v2889 = vld [vmem:[%s2469 + $0x159] sm:$0xff]
        %v2890 = vld [vmem:[%s2469 + $0x169] sm:$0xff]
        %v2891 = vld [vmem:[%s2469 + $0x171] sm:$0xff]
        %s2892 = scalar_lea.vmem %s1, 28
        %v2893 = vld [vmem:[%s2892] sm:$0xf]
        %v2895 = vsel %vm254, %v2860, 0
        %v2898 = vsel %vm254, %v2861, 0
        %v2901 = vsel %vm254, %v2862, 0
        %v2904 = vsel %vm254, %v2863, 0
        %v2907 = vsel %vm254, %v2864, 0
        %v2910 = vsel %vm254, %v2865, 0
        %v2913 = vsel %vm254, %v2866, 0
        %v2916 = vsel %vm254, %v2867, 0
        %v2919 = vsel %vm254, %v2868, 0
        %v2922 = vsel %vm254, %v2869, 0
        %v2925 = vsel %vm254, %v2870, 0
        %v2928 = vsel %vm254, %v2871, 0
        %v2931 = vsel %vm254, %v2872, 0
        %v2934 = vsel %vm254, %v2873, 0
        %v2937 = vsel %vm254, %v2874, 0
        %v2940 = vsel %vm254, %v2875, 0
        %v2943 = vsel %vm254, %v2876, 0
        %v2946 = vsel %vm254, %v2877, 0
        %v2949 = vsel %vm254, %v2878, 0
        %v2952 = vsel %vm254, %v2879, 0
        %v2955 = vsel %vm254, %v2880, 0
        %v2958 = vsel %vm254, %v2881, 0
        %v2961 = vsel %vm254, %v2882, 0
        %v2964 = vsel %vm254, %v2883, 0
        %v2967 = vsel %vm254, %v2884, 0
        %v2970 = vsel %vm254, %v2885, 0
        %v2973 = vsel %vm254, %v2886, 0
        %v2976 = vsel %vm254, %v2887, 0
        %v2979 = vsel %vm254, %v2888, 0
        %v2982 = vsel %vm254, %v2889, 0
        %v2985 = vsel %vm254, %v2890, 0
        %v2988 = vsel %vm254, %v2891, 0
        %v2991 = vsel %vm351, %v2893, 0
        %2993 = vmatprep.subr.mxu0 0.0
        %2994 = vmatpush1.msra.mxu0 %v2991
        %2995 = vmatprep.subr.mxu0 0.0
        %2996 = vmatpush1.msra.mxu0 0.0
        %2997 = vmatprep.subr.mxu0 0.0
        %2998 = vmatpush1.msra.mxu0 0.0
        %2999 = vmatprep.subr.mxu0 0.0
        %3000 = vmatpush1.msra.mxu0 0.0
        %3001 = vmatprep.subr.mxu0 0.0
        %3002 = vmatpush1.msra.mxu0 0.0
        %3003 = vmatprep.subr.mxu0 0.0
        %3004 = vmatpush1.msra.mxu0 0.0
        %3005 = vmatprep.subr.mxu0 0.0
        %3006 = vmatpush1.msra.mxu0 0.0
        %3007 = vmatprep.subr.mxu0 0.0
        %3008 = vmatpush1.msra.mxu0 0.0
        %3009 = vmatprep.subr.mxu0 0.0
        %3010 = vmatpush1.msra.mxu0 0.0
        %3011 = vmatprep.subr.mxu0 0.0
        %3012 = vmatpush1.msra.mxu0 0.0
        %3013 = vmatprep.subr.mxu0 0.0
        %3014 = vmatpush1.msra.mxu0 0.0
        %3015 = vmatprep.subr.mxu0 0.0
        %3016 = vmatpush1.msra.mxu0 0.0
        %3017 = vmatprep.subr.mxu0 0.0
        %3018 = vmatpush1.msra.mxu0 0.0
        %3019 = vmatprep.subr.mxu0 0.0
        %3020 = vmatpush1.msra.mxu0 0.0
        %3021 = vmatprep.subr.mxu0 0.0
        %3022 = vmatpush1.msra.mxu0 0.0
        %3023 = vmatprep.subr.mxu0 0.0
        %3024 = vmatpush1.msra.mxu0 0.0
        %3025 = vmatprep.subr.mxu0 0.0
        %3026 = vmatpush1.msra.mxu0 0.0
        %3027 = vmatprep.subr.mxu0 0.0
        %3028 = vmatpush1.msra.mxu0 0.0
        %3029 = vmatprep.subr.mxu0 0.0
        %3030 = vmatpush1.msra.mxu0 0.0
        %3031 = vmatprep.subr.mxu0 0.0
        %3032 = vmatpush1.msra.mxu0 0.0
        %3033 = vmatprep.subr.mxu0 0.0
        %3034 = vmatpush1.msra.mxu0 0.0
        %3035 = vmatprep.subr.mxu0 0.0
        %3036 = vmatpush1.msra.mxu0 0.0
        %3037 = vmatprep.subr.mxu0 0.0
        %3038 = vmatpush1.msra.mxu0 0.0
        %3039 = vmatprep.subr.mxu0 0.0
        %3040 = vmatpush1.msra.mxu0 0.0
        %3041 = vmatprep.subr.mxu0 0.0
        %3042 = vmatpush1.msra.mxu0 0.0
        %3043 = vmatprep.subr.mxu0 0.0
        %3044 = vmatpush1.msra.mxu0 0.0
        %3045 = vmatprep.subr.mxu0 0.0
        %3046 = vmatpush1.msra.mxu0 0.0
        %3047 = vmatprep.subr.mxu0 0.0
        %3048 = vmatpush1.msra.mxu0 0.0
        %3049 = vmatprep.subr.mxu0 0.0
        %3050 = vmatpush1.msra.mxu0 0.0
        %3051 = vmatprep.subr.mxu0 0.0
        %3052 = vmatpush1.msra.mxu0 0.0
        %3053 = vmatprep.subr.mxu0 0.0
        %3054 = vmatpush1.msra.mxu0 0.0
        %3055 = vmatprep.subr.mxu0 0.0
        %3056 = vmatpush1.msra.mxu0 0.0
        %3057 = vmatprep.mubr.f32.mxu0 0.0
        %3058 = vmatmul.mubr.f32.gmra.mrb[0].mxu0 %v2895
        %v3059 = vpop.f32.mrb[0].mxu0
        %v3060 = vadd.f32 0.0, %v3059
        %v3061 = vpop.f32.mrb[0].mxu0
        %3062 = vmatprep.mubr.f32.mxu0 0.0
        %3063 = vmatmul.mubr.f32.gmra.mrb[0].mxu0 %v2898
        %v3064 = vpop.f32.mrb[0].mxu0
        %v3065 = vadd.f32 0.0, %v3064
        %v3066 = vpop.f32.mrb[0].mxu0
        %3067 = vmatprep.mubr.f32.mxu0 0.0
        %3068 = vmatmul.mubr.f32.gmra.mrb[0].mxu0 %v2901
        %v3069 = vpop.f32.mrb[0].mxu0
        %v3070 = vadd.f32 0.0, %v3069
        %v3071 = vpop.f32.mrb[0].mxu0
        %3072 = vmatprep.mubr.f32.mxu0 0.0
        %3073 = vmatmul.mubr.f32.gmra.mrb[0].mxu0 %v2904
        %v3074 = vpop.f32.mrb[0].mxu0
        %v3075 = vadd.f32 0.0, %v3074
        %v3076 = vpop.f32.mrb[0].mxu0
        %3077 = vmatprep.mubr.f32.mxu0 0.0
        %3078 = vmatmul.mubr.f32.gmra.mrb[0].mxu0 %v2907
        %v3079 = vpop.f32.mrb[0].mxu0
        %v3080 = vadd.f32 0.0, %v3079
        %v3081 = vpop.f32.mrb[0].mxu0
        %3082 = vmatprep.mubr.f32.mxu0 0.0
        %3083 = vmatmul.mubr.f32.gmra.mrb[0].mxu0 %v2910
        %v3084 = vpop.f32.mrb[0].mxu0
        %v3085 = vadd.f32 0.0, %v3084
        %v3086 = vpop.f32.mrb[0].mxu0
        %3087 = vmatprep.mubr.f32.mxu0 0.0
        %3088 = vmatmul.mubr.f32.gmra.mrb[0].mxu0 %v2913
        %v3089 = vpop.f32.mrb[0].mxu0
        %v3090 = vadd.f32 0.0, %v3089
        %v3091 = vpop.f32.mrb[0].mxu0
        %3092 = vmatprep.mubr.f32.mxu0 0.0
        %3093 = vmatmul.mubr.f32.gmra.mrb[0].mxu0 %v2916
        %v3094 = vpop.f32.mrb[0].mxu0
        %v3095 = vadd.f32 0.0, %v3094
        %v3096 = vpop.f32.mrb[0].mxu0
        %3097 = vmatprep.mubr.f32.mxu0 0.0
        %3098 = vmatmul.mubr.f32.gmra.mrb[0].mxu0 %v2919
        %v3099 = vpop.f32.mrb[0].mxu0
        %v3100 = vadd.f32 0.0, %v3099
        %v3101 = vpop.f32.mrb[0].mxu0
        %3102 = vmatprep.mubr.f32.mxu0 0.0
        %3103 = vmatmul.mubr.f32.gmra.mrb[0].mxu0 %v2922
        %v3104 = vpop.f32.mrb[0].mxu0
        %v3105 = vadd.f32 0.0, %v3104
        %v3106 = vpop.f32.mrb[0].mxu0
        %3107 = vmatprep.mubr.f32.mxu0 0.0
        %3108 = vmatmul.mubr.f32.gmra.mrb[0].mxu0 %v2925
        %v3109 = vpop.f32.mrb[0].mxu0
        %v3110 = vadd.f32 0.0, %v3109
        %v3111 = vpop.f32.mrb[0].mxu0
        %3112 = vmatprep.mubr.f32.mxu0 0.0
        %3113 = vmatmul.mubr.f32.gmra.mrb[0].mxu0 %v2928
        %v3114 = vpop.f32.mrb[0].mxu0
        %v3115 = vadd.f32 0.0, %v3114
        %v3116 = vpop.f32.mrb[0].mxu0
        %3117 = vmatprep.mubr.f32.mxu0 0.0
        %3118 = vmatmul.mubr.f32.gmra.mrb[0].mxu0 %v2931
        %v3119 = vpop.f32.mrb[0].mxu0
        %v3120 = vadd.f32 0.0, %v3119
        %v3121 = vpop.f32.mrb[0].mxu0
        %3122 = vmatprep.mubr.f32.mxu0 0.0
        %3123 = vmatmul.mubr.f32.gmra.mrb[0].mxu0 %v2934
        %v3124 = vpop.f32.mrb[0].mxu0
        %v3125 = vadd.f32 0.0, %v3124
        %v3126 = vpop.f32.mrb[0].mxu0
        %3127 = vmatprep.mubr.f32.mxu0 0.0
        %3128 = vmatmul.mubr.f32.gmra.mrb[0].mxu0 %v2937
        %v3129 = vpop.f32.mrb[0].mxu0
        %v3130 = vadd.f32 0.0, %v3129
        %v3131 = vpop.f32.mrb[0].mxu0
        %3132 = vmatprep.mubr.f32.mxu0 0.0
        %3133 = vmatmul.mubr.f32.gmra.mrb[0].mxu0 %v2940
        %v3134 = vpop.f32.mrb[0].mxu0
        %v3135 = vadd.f32 0.0, %v3134
        %v3136 = vpop.f32.mrb[0].mxu0
        %3137 = vmatprep.mubr.f32.mxu0 0.0
        %3138 = vmatmul.mubr.f32.gmra.mrb[0].mxu0 %v2943
        %v3139 = vpop.f32.mrb[0].mxu0
        %v3140 = vadd.f32 0.0, %v3139
        %v3141 = vpop.f32.mrb[0].mxu0
        %3142 = vmatprep.mubr.f32.mxu0 0.0
        %3143 = vmatmul.mubr.f32.gmra.mrb[0].mxu0 %v2946
        %v3144 = vpop.f32.mrb[0].mxu0
        %v3145 = vadd.f32 0.0, %v3144
        %v3146 = vpop.f32.mrb[0].mxu0
        %3147 = vmatprep.mubr.f32.mxu0 0.0
        %3148 = vmatmul.mubr.f32.gmra.mrb[0].mxu0 %v2949
        %v3149 = vpop.f32.mrb[0].mxu0
        %v3150 = vadd.f32 0.0, %v3149
        %v3151 = vpop.f32.mrb[0].mxu0
        %3152 = vmatprep.mubr.f32.mxu0 0.0
        %3153 = vmatmul.mubr.f32.gmra.mrb[0].mxu0 %v2952
        %v3154 = vpop.f32.mrb[0].mxu0
        %v3155 = vadd.f32 0.0, %v3154
        %v3156 = vpop.f32.mrb[0].mxu0
        %3157 = vmatprep.mubr.f32.mxu0 0.0
        %3158 = vmatmul.mubr.f32.gmra.mrb[0].mxu0 %v2955
        %v3159 = vpop.f32.mrb[0].mxu0
        %v3160 = vadd.f32 0.0, %v3159
        %v3161 = vpop.f32.mrb[0].mxu0
        %3162 = vmatprep.mubr.f32.mxu0 0.0
        %3163 = vmatmul.mubr.f32.gmra.mrb[0].mxu0 %v2958
        %v3164 = vpop.f32.mrb[0].mxu0
        %v3165 = vadd.f32 0.0, %v3164
        %v3166 = vpop.f32.mrb[0].mxu0
        %3167 = vmatprep.mubr.f32.mxu0 0.0
        %3168 = vmatmul.mubr.f32.gmra.mrb[0].mxu0 %v2961
        %v3169 = vpop.f32.mrb[0].mxu0
        %v3170 = vadd.f32 0.0, %v3169
        %v3171 = vpop.f32.mrb[0].mxu0
        %3172 = vmatprep.mubr.f32.mxu0 0.0
        %3173 = vmatmul.mubr.f32.gmra.mrb[0].mxu0 %v2964
        %v3174 = vpop.f32.mrb[0].mxu0
        %v3175 = vadd.f32 0.0, %v3174
        %v3176 = vpop.f32.mrb[0].mxu0
        %3177 = vmatprep.mubr.f32.mxu0 0.0
        %3178 = vmatmul.mubr.f32.gmra.mrb[0].mxu0 %v2967
        %v3179 = vpop.f32.mrb[0].mxu0
        %v3180 = vadd.f32 0.0, %v3179
        %v3181 = vpop.f32.mrb[0].mxu0
        %3182 = vmatprep.mubr.f32.mxu0 0.0
        %3183 = vmatmul.mubr.f32.gmra.mrb[0].mxu0 %v2970
        %v3184 = vpop.f32.mrb[0].mxu0
        %v3185 = vadd.f32 0.0, %v3184
        %v3186 = vpop.f32.mrb[0].mxu0
        %3187 = vmatprep.mubr.f32.mxu0 0.0
        %3188 = vmatmul.mubr.f32.gmra.mrb[0].mxu0 %v2973
        %v3189 = vpop.f32.mrb[0].mxu0
        %v3190 = vadd.f32 0.0, %v3189
        %v3191 = vpop.f32.mrb[0].mxu0
        %3192 = vmatprep.mubr.f32.mxu0 0.0
        %3193 = vmatmul.mubr.f32.gmra.mrb[0].mxu0 %v2976
        %v3194 = vpop.f32.mrb[0].mxu0
        %v3195 = vadd.f32 0.0, %v3194
        %v3196 = vpop.f32.mrb[0].mxu0
        %3197 = vmatprep.mubr.f32.mxu0 0.0
        %3198 = vmatmul.mubr.f32.gmra.mrb[0].mxu0 %v2979
        %v3199 = vpop.f32.mrb[0].mxu0
        %v3200 = vadd.f32 0.0, %v3199
        %v3201 = vpop.f32.mrb[0].mxu0
        %3202 = vmatprep.mubr.f32.mxu0 0.0
        %3203 = vmatmul.mubr.f32.gmra.mrb[0].mxu0 %v2982
        %v3204 = vpop.f32.mrb[0].mxu0
        %v3205 = vadd.f32 0.0, %v3204
        %v3206 = vpop.f32.mrb[0].mxu0
        %3207 = vmatprep.mubr.f32.mxu0 0.0
        %3208 = vmatmul.mubr.f32.gmra.mrb[0].mxu0 %v2985
        %v3209 = vpop.f32.mrb[0].mxu0
        %v3210 = vadd.f32 0.0, %v3209
        %v3211 = vpop.f32.mrb[0].mxu0
        %3212 = vmatprep.mubr.f32.mxu0 0.0
        %3213 = vmatmul.mubr.f32.gmra.mrb[0].mxu0 %v2988
        %v3214 = vpop.f32.mrb[0].mxu0
        %v3215 = vadd.f32 0.0, %v3214
        %v3216 = vpop.f32.mrb[0].mxu0
        %3217 = vdwg.mxu0
        %v3218 = vadd.f32 %v2828, %v3060
        %v3219 = vadd.f32 %v2829, %v3065
        %v3220 = vadd.f32 %v2830, %v3070
        %v3221 = vadd.f32 %v2831, %v3075
        %v3222 = vadd.f32 %v2832, %v3080
        %v3223 = vadd.f32 %v2833, %v3085
        %v3224 = vadd.f32 %v2834, %v3090
        %v3225 = vadd.f32 %v2835, %v3095
        %v3226 = vadd.f32 %v2836, %v3100
        %v3227 = vadd.f32 %v2837, %v3105
        %v3228 = vadd.f32 %v2838, %v3110
        %v3229 = vadd.f32 %v2839, %v3115
        %v3230 = vadd.f32 %v2840, %v3120
        %v3231 = vadd.f32 %v2841, %v3125
        %v3232 = vadd.f32 %v2842, %v3130
        %v3233 = vadd.f32 %v2843, %v3135
        %v3234 = vadd.f32 %v2844, %v3140
        %v3235 = vadd.f32 %v2845, %v3145
        %v3236 = vadd.f32 %v2846, %v3150
        %v3237 = vadd.f32 %v2847, %v3155
        %v3238 = vadd.f32 %v2848, %v3160
        %v3239 = vadd.f32 %v2849, %v3165
        %v3240 = vadd.f32 %v2850, %v3170
        %v3241 = vadd.f32 %v2851, %v3175
        %v3242 = vadd.f32 %v2852, %v3180
        %v3243 = vadd.f32 %v2853, %v3185
        %v3244 = vadd.f32 %v2854, %v3190
        %v3245 = vadd.f32 %v2855, %v3195
        %v3246 = vadd.f32 %v2856, %v3200
        %v3247 = vadd.f32 %v2857, %v3205
        %v3248 = vadd.f32 %v2858, %v3210
        %v3249 = vadd.f32 %v2859, %v3215
        %v3250 = vld [vmem:[%s2469 + $0x2] sm:$0xff]
        %v3251 = vld [vmem:[%s2469 + $0xa] sm:$0xff]
        %v3252 = vld [vmem:[%s2469 + $0x1a] sm:$0xff]
        %v3253 = vld [vmem:[%s2469 + $0x22] sm:$0xff]
        %v3254 = vld [vmem:[%s2469 + $0x32] sm:$0xff]
        %v3255 = vld [vmem:[%s2469 + $0x3a] sm:$0xff]
        %v3256 = vld [vmem:[%s2469 + $0x4a] sm:$0xff]
        %v3257 = vld [vmem:[%s2469 + $0x52] sm:$0xff]
        %v3258 = vld [vmem:[%s2469 + $0x62] sm:$0xff]
        %v3259 = vld [vmem:[%s2469 + $0x6a] sm:$0xff]
        %v3260 = vld [vmem:[%s2469 + $0x7a] sm:$0xff]
        %v3261 = vld [vmem:[%s2469 + $0x82] sm:$0xff]
        %v3262 = vld [vmem:[%s2469 + $0x92] sm:$0xff]
        %v3263 = vld [vmem:[%s2469 + $0x9a] sm:$0xff]
        %v3264 = vld [vmem:[%s2469 + $0xaa] sm:$0xff]
        %v3265 = vld [vmem:[%s2469 + $0xb2] sm:$0xff]
        %v3266 = vld [vmem:[%s2469 + $0xc2] sm:$0xff]
        %v3267 = vld [vmem:[%s2469 + $0xca] sm:$0xff]
        %v3268 = vld [vmem:[%s2469 + $0xda] sm:$0xff]
        %v3269 = vld [vmem:[%s2469 + $0xe2] sm:$0xff]
        %v3270 = vld [vmem:[%s2469 + $0xf2] sm:$0xff]
        %v3271 = vld [vmem:[%s2469 + $0xfa] sm:$0xff]
        %v3272 = vld [vmem:[%s2469 + $0x10a] sm:$0xff]
        %v3273 = vld [vmem:[%s2469 + $0x112] sm:$0xff]
        %v3274 = vld [vmem:[%s2469 + $0x122] sm:$0xff]
        %v3275 = vld [vmem:[%s2469 + $0x12a] sm:$0xff]
        %v3276 = vld [vmem:[%s2469 + $0x13a] sm:$0xff]
        %v3277 = vld [vmem:[%s2469 + $0x142] sm:$0xff]
        %v3278 = vld [vmem:[%s2469 + $0x152] sm:$0xff]
        %v3279 = vld [vmem:[%s2469 + $0x15a] sm:$0xff]
        %v3280 = vld [vmem:[%s2469 + $0x16a] sm:$0xff]
        %v3281 = vld [vmem:[%s2469 + $0x172] sm:$0xff]
        %s3282 = scalar_lea.vmem %s1, 32
        %v3283 = vld [vmem:[%s3282] sm:$0xf]
        %v3285 = vsel %vm254, %v3250, 0
        %v3288 = vsel %vm254, %v3251, 0
        %v3291 = vsel %vm254, %v3252, 0
        %v3294 = vsel %vm254, %v3253, 0
        %v3297 = vsel %vm254, %v3254, 0
        %v3300 = vsel %vm254, %v3255, 0
        %v3303 = vsel %vm254, %v3256, 0
        %v3306 = vsel %vm254, %v3257, 0
        %v3309 = vsel %vm254, %v3258, 0
        %v3312 = vsel %vm254, %v3259, 0
        %v3315 = vsel %vm254, %v3260, 0
        %v3318 = vsel %vm254, %v3261, 0
        %v3321 = vsel %vm254, %v3262, 0
        %v3324 = vsel %vm254, %v3263, 0
        %v3327 = vsel %vm254, %v3264, 0
        %v3330 = vsel %vm254, %v3265, 0
        %v3333 = vsel %vm254, %v3266, 0
        %v3336 = vsel %vm254, %v3267, 0
        %v3339 = vsel %vm254, %v3268, 0
        %v3342 = vsel %vm254, %v3269, 0
        %v3345 = vsel %vm254, %v3270, 0
        %v3348 = vsel %vm254, %v3271, 0
        %v3351 = vsel %vm254, %v3272, 0
        %v3354 = vsel %vm254, %v3273, 0
        %v3357 = vsel %vm254, %v3274, 0
        %v3360 = vsel %vm254, %v3275, 0
        %v3363 = vsel %vm254, %v3276, 0
        %v3366 = vsel %vm254, %v3277, 0
        %v3369 = vsel %vm254, %v3278, 0
        %v3372 = vsel %vm254, %v3279, 0
        %v3375 = vsel %vm254, %v3280, 0
        %v3378 = vsel %vm254, %v3281, 0
        %v3381 = vsel %vm351, %v3283, 0
        %3383 = vmatprep.subr.mxu0 0.0
        %3384 = vmatpush1.msra.mxu0 %v3381
        %3385 = vmatprep.subr.mxu0 0.0
        %3386 = vmatpush1.msra.mxu0 0.0
        %3387 = vmatprep.subr.mxu0 0.0
        %3388 = vmatpush1.msra.mxu0 0.0
        %3389 = vmatprep.subr.mxu0 0.0
        %3390 = vmatpush1.msra.mxu0 0.0
        %3391 = vmatprep.subr.mxu0 0.0
        %3392 = vmatpush1.msra.mxu0 0.0
        %3393 = vmatprep.subr.mxu0 0.0
        %3394 = vmatpush1.msra.mxu0 0.0
        %3395 = vmatprep.subr.mxu0 0.0
        %3396 = vmatpush1.msra.mxu0 0.0
        %3397 = vmatprep.subr.mxu0 0.0
        %3398 = vmatpush1.msra.mxu0 0.0
        %3399 = vmatprep.subr.mxu0 0.0
        %3400 = vmatpush1.msra.mxu0 0.0
        %3401 = vmatprep.subr.mxu0 0.0
        %3402 = vmatpush1.msra.mxu0 0.0
        %3403 = vmatprep.subr.mxu0 0.0
        %3404 = vmatpush1.msra.mxu0 0.0
        %3405 = vmatprep.subr.mxu0 0.0
        %3406 = vmatpush1.msra.mxu0 0.0
        %3407 = vmatprep.subr.mxu0 0.0
        %3408 = vmatpush1.msra.mxu0 0.0
        %3409 = vmatprep.subr.mxu0 0.0
        %3410 = vmatpush1.msra.mxu0 0.0
        %3411 = vmatprep.subr.mxu0 0.0
        %3412 = vmatpush1.msra.mxu0 0.0
        %3413 = vmatprep.subr.mxu0 0.0
        %3414 = vmatpush1.msra.mxu0 0.0
        %3415 = vmatprep.subr.mxu0 0.0
        %3416 = vmatpush1.msra.mxu0 0.0
        %3417 = vmatprep.subr.mxu0 0.0
        %3418 = vmatpush1.msra.mxu0 0.0
        %3419 = vmatprep.subr.mxu0 0.0
        %3420 = vmatpush1.msra.mxu0 0.0
        %3421 = vmatprep.subr.mxu0 0.0
        %3422 = vmatpush1.msra.mxu0 0.0
        %3423 = vmatprep.subr.mxu0 0.0
        %3424 = vmatpush1.msra.mxu0 0.0
        %3425 = vmatprep.subr.mxu0 0.0
        %3426 = vmatpush1.msra.mxu0 0.0
        %3427 = vmatprep.subr.mxu0 0.0
        %3428 = vmatpush1.msra.mxu0 0.0
        %3429 = vmatprep.subr.mxu0 0.0
        %3430 = vmatpush1.msra.mxu0 0.0
        %3431 = vmatprep.subr.mxu0 0.0
        %3432 = vmatpush1.msra.mxu0 0.0
        %3433 = vmatprep.subr.mxu0 0.0
        %3434 = vmatpush1.msra.mxu0 0.0
        %3435 = vmatprep.subr.mxu0 0.0
        %3436 = vmatpush1.msra.mxu0 0.0
        %3437 = vmatprep.subr.mxu0 0.0
        %3438 = vmatpush1.msra.mxu0 0.0
        %3439 = vmatprep.subr.mxu0 0.0
        %3440 = vmatpush1.msra.mxu0 0.0
        %3441 = vmatprep.subr.mxu0 0.0
        %3442 = vmatpush1.msra.mxu0 0.0
        %3443 = vmatprep.subr.mxu0 0.0
        %3444 = vmatpush1.msra.mxu0 0.0
        %3445 = vmatprep.subr.mxu0 0.0
        %3446 = vmatpush1.msra.mxu0 0.0
        %3447 = vmatprep.mubr.f32.mxu0 0.0
        %3448 = vmatmul.mubr.f32.gmra.mrb[0].mxu0 %v3285
        %v3449 = vpop.f32.mrb[0].mxu0
        %v3450 = vadd.f32 0.0, %v3449
        %v3451 = vpop.f32.mrb[0].mxu0
        %3452 = vmatprep.mubr.f32.mxu0 0.0
        %3453 = vmatmul.mubr.f32.gmra.mrb[0].mxu0 %v3288
        %v3454 = vpop.f32.mrb[0].mxu0
        %v3455 = vadd.f32 0.0, %v3454
        %v3456 = vpop.f32.mrb[0].mxu0
        %3457 = vmatprep.mubr.f32.mxu0 0.0
        %3458 = vmatmul.mubr.f32.gmra.mrb[0].mxu0 %v3291
        %v3459 = vpop.f32.mrb[0].mxu0
        %v3460 = vadd.f32 0.0, %v3459
        %v3461 = vpop.f32.mrb[0].mxu0
        %3462 = vmatprep.mubr.f32.mxu0 0.0
        %3463 = vmatmul.mubr.f32.gmra.mrb[0].mxu0 %v3294
        %v3464 = vpop.f32.mrb[0].mxu0
        %v3465 = vadd.f32 0.0, %v3464
        %v3466 = vpop.f32.mrb[0].mxu0
        %3467 = vmatprep.mubr.f32.mxu0 0.0
        %3468 = vmatmul.mubr.f32.gmra.mrb[0].mxu0 %v3297
        %v3469 = vpop.f32.mrb[0].mxu0
        %v3470 = vadd.f32 0.0, %v3469
        %v3471 = vpop.f32.mrb[0].mxu0
        %3472 = vmatprep.mubr.f32.mxu0 0.0
        %3473 = vmatmul.mubr.f32.gmra.mrb[0].mxu0 %v3300
        %v3474 = vpop.f32.mrb[0].mxu0
        %v3475 = vadd.f32 0.0, %v3474
        %v3476 = vpop.f32.mrb[0].mxu0
        %3477 = vmatprep.mubr.f32.mxu0 0.0
        %3478 = vmatmul.mubr.f32.gmra.mrb[0].mxu0 %v3303
        %v3479 = vpop.f32.mrb[0].mxu0
        %v3480 = vadd.f32 0.0, %v3479
        %v3481 = vpop.f32.mrb[0].mxu0
        %3482 = vmatprep.mubr.f32.mxu0 0.0
        %3483 = vmatmul.mubr.f32.gmra.mrb[0].mxu0 %v3306
        %v3484 = vpop.f32.mrb[0].mxu0
        %v3485 = vadd.f32 0.0, %v3484
        %v3486 = vpop.f32.mrb[0].mxu0
        %3487 = vmatprep.mubr.f32.mxu0 0.0
        %3488 = vmatmul.mubr.f32.gmra.mrb[0].mxu0 %v3309
        %v3489 = vpop.f32.mrb[0].mxu0
        %v3490 = vadd.f32 0.0, %v3489
        %v3491 = vpop.f32.mrb[0].mxu0
        %3492 = vmatprep.mubr.f32.mxu0 0.0
        %3493 = vmatmul.mubr.f32.gmra.mrb[0].mxu0 %v3312
        %v3494 = vpop.f32.mrb[0].mxu0
        %v3495 = vadd.f32 0.0, %v3494
        %v3496 = vpop.f32.mrb[0].mxu0
        %3497 = vmatprep.mubr.f32.mxu0 0.0
        %3498 = vmatmul.mubr.f32.gmra.mrb[0].mxu0 %v3315
        %v3499 = vpop.f32.mrb[0].mxu0
        %v3500 = vadd.f32 0.0, %v3499
        %v3501 = vpop.f32.mrb[0].mxu0
        %3502 = vmatprep.mubr.f32.mxu0 0.0
        %3503 = vmatmul.mubr.f32.gmra.mrb[0].mxu0 %v3318
        %v3504 = vpop.f32.mrb[0].mxu0
        %v3505 = vadd.f32 0.0, %v3504
        %v3506 = vpop.f32.mrb[0].mxu0
        %3507 = vmatprep.mubr.f32.mxu0 0.0
        %3508 = vmatmul.mubr.f32.gmra.mrb[0].mxu0 %v3321
        %v3509 = vpop.f32.mrb[0].mxu0
        %v3510 = vadd.f32 0.0, %v3509
        %v3511 = vpop.f32.mrb[0].mxu0
        %3512 = vmatprep.mubr.f32.mxu0 0.0
        %3513 = vmatmul.mubr.f32.gmra.mrb[0].mxu0 %v3324
        %v3514 = vpop.f32.mrb[0].mxu0
        %v3515 = vadd.f32 0.0, %v3514
        %v3516 = vpop.f32.mrb[0].mxu0
        %3517 = vmatprep.mubr.f32.mxu0 0.0
        %3518 = vmatmul.mubr.f32.gmra.mrb[0].mxu0 %v3327
        %v3519 = vpop.f32.mrb[0].mxu0
        %v3520 = vadd.f32 0.0, %v3519
        %v3521 = vpop.f32.mrb[0].mxu0
        %3522 = vmatprep.mubr.f32.mxu0 0.0
        %3523 = vmatmul.mubr.f32.gmra.mrb[0].mxu0 %v3330
        %v3524 = vpop.f32.mrb[0].mxu0
        %v3525 = vadd.f32 0.0, %v3524
        %v3526 = vpop.f32.mrb[0].mxu0
        %3527 = vmatprep.mubr.f32.mxu0 0.0
        %3528 = vmatmul.mubr.f32.gmra.mrb[0].mxu0 %v3333
        %v3529 = vpop.f32.mrb[0].mxu0
        %v3530 = vadd.f32 0.0, %v3529
        %v3531 = vpop.f32.mrb[0].mxu0
        %3532 = vmatprep.mubr.f32.mxu0 0.0
        %3533 = vmatmul.mubr.f32.gmra.mrb[0].mxu0 %v3336
        %v3534 = vpop.f32.mrb[0].mxu0
        %v3535 = vadd.f32 0.0, %v3534
        %v3536 = vpop.f32.mrb[0].mxu0
        %3537 = vmatprep.mubr.f32.mxu0 0.0
        %3538 = vmatmul.mubr.f32.gmra.mrb[0].mxu0 %v3339
        %v3539 = vpop.f32.mrb[0].mxu0
        %v3540 = vadd.f32 0.0, %v3539
        %v3541 = vpop.f32.mrb[0].mxu0
        %3542 = vmatprep.mubr.f32.mxu0 0.0
        %3543 = vmatmul.mubr.f32.gmra.mrb[0].mxu0 %v3342
        %v3544 = vpop.f32.mrb[0].mxu0
        %v3545 = vadd.f32 0.0, %v3544
        %v3546 = vpop.f32.mrb[0].mxu0
        %3547 = vmatprep.mubr.f32.mxu0 0.0
        %3548 = vmatmul.mubr.f32.gmra.mrb[0].mxu0 %v3345
        %v3549 = vpop.f32.mrb[0].mxu0
        %v3550 = vadd.f32 0.0, %v3549
        %v3551 = vpop.f32.mrb[0].mxu0
        %3552 = vmatprep.mubr.f32.mxu0 0.0
        %3553 = vmatmul.mubr.f32.gmra.mrb[0].mxu0 %v3348
        %v3554 = vpop.f32.mrb[0].mxu0
        %v3555 = vadd.f32 0.0, %v3554
        %v3556 = vpop.f32.mrb[0].mxu0
        %3557 = vmatprep.mubr.f32.mxu0 0.0
        %3558 = vmatmul.mubr.f32.gmra.mrb[0].mxu0 %v3351
        %v3559 = vpop.f32.mrb[0].mxu0
        %v3560 = vadd.f32 0.0, %v3559
        %v3561 = vpop.f32.mrb[0].mxu0
        %3562 = vmatprep.mubr.f32.mxu0 0.0
        %3563 = vmatmul.mubr.f32.gmra.mrb[0].mxu0 %v3354
        %v3564 = vpop.f32.mrb[0].mxu0
        %v3565 = vadd.f32 0.0, %v3564
        %v3566 = vpop.f32.mrb[0].mxu0
        %3567 = vmatprep.mubr.f32.mxu0 0.0
        %3568 = vmatmul.mubr.f32.gmra.mrb[0].mxu0 %v3357
        %v3569 = vpop.f32.mrb[0].mxu0
        %v3570 = vadd.f32 0.0, %v3569
        %v3571 = vpop.f32.mrb[0].mxu0
        %3572 = vmatprep.mubr.f32.mxu0 0.0
        %3573 = vmatmul.mubr.f32.gmra.mrb[0].mxu0 %v3360
        %v3574 = vpop.f32.mrb[0].mxu0
        %v3575 = vadd.f32 0.0, %v3574
        %v3576 = vpop.f32.mrb[0].mxu0
        %3577 = vmatprep.mubr.f32.mxu0 0.0
        %3578 = vmatmul.mubr.f32.gmra.mrb[0].mxu0 %v3363
        %v3579 = vpop.f32.mrb[0].mxu0
        %v3580 = vadd.f32 0.0, %v3579
        %v3581 = vpop.f32.mrb[0].mxu0
        %3582 = vmatprep.mubr.f32.mxu0 0.0
        %3583 = vmatmul.mubr.f32.gmra.mrb[0].mxu0 %v3366
        %v3584 = vpop.f32.mrb[0].mxu0
        %v3585 = vadd.f32 0.0, %v3584
        %v3586 = vpop.f32.mrb[0].mxu0
        %3587 = vmatprep.mubr.f32.mxu0 0.0
        %3588 = vmatmul.mubr.f32.gmra.mrb[0].mxu0 %v3369
        %v3589 = vpop.f32.mrb[0].mxu0
        %v3590 = vadd.f32 0.0, %v3589
        %v3591 = vpop.f32.mrb[0].mxu0
        %3592 = vmatprep.mubr.f32.mxu0 0.0
        %3593 = vmatmul.mubr.f32.gmra.mrb[0].mxu0 %v3372
        %v3594 = vpop.f32.mrb[0].mxu0
        %v3595 = vadd.f32 0.0, %v3594
        %v3596 = vpop.f32.mrb[0].mxu0
        %3597 = vmatprep.mubr.f32.mxu0 0.0
        %3598 = vmatmul.mubr.f32.gmra.mrb[0].mxu0 %v3375
        %v3599 = vpop.f32.mrb[0].mxu0
        %v3600 = vadd.f32 0.0, %v3599
        %v3601 = vpop.f32.mrb[0].mxu0
        %3602 = vmatprep.mubr.f32.mxu0 0.0
        %3603 = vmatmul.mubr.f32.gmra.mrb[0].mxu0 %v3378
        %v3604 = vpop.f32.mrb[0].mxu0
        %v3605 = vadd.f32 0.0, %v3604
        %v3606 = vpop.f32.mrb[0].mxu0
        %3607 = vdwg.mxu0
        %v3608 = vadd.f32 %v3218, %v3450
        %v3609 = vadd.f32 %v3219, %v3455
        %v3610 = vadd.f32 %v3220, %v3460
        %v3611 = vadd.f32 %v3221, %v3465
        %v3612 = vadd.f32 %v3222, %v3470
        %v3613 = vadd.f32 %v3223, %v3475
        %v3614 = vadd.f32 %v3224, %v3480
        %v3615 = vadd.f32 %v3225, %v3485
        %v3616 = vadd.f32 %v3226, %v3490
        %v3617 = vadd.f32 %v3227, %v3495
        %v3618 = vadd.f32 %v3228, %v3500
        %v3619 = vadd.f32 %v3229, %v3505
        %v3620 = vadd.f32 %v3230, %v3510
        %v3621 = vadd.f32 %v3231, %v3515
        %v3622 = vadd.f32 %v3232, %v3520
        %v3623 = vadd.f32 %v3233, %v3525
        %v3624 = vadd.f32 %v3234, %v3530
        %v3625 = vadd.f32 %v3235, %v3535
        %v3626 = vadd.f32 %v3236, %v3540
        %v3627 = vadd.f32 %v3237, %v3545
        %v3628 = vadd.f32 %v3238, %v3550
        %v3629 = vadd.f32 %v3239, %v3555
        %v3630 = vadd.f32 %v3240, %v3560
        %v3631 = vadd.f32 %v3241, %v3565
        %v3632 = vadd.f32 %v3242, %v3570
        %v3633 = vadd.f32 %v3243, %v3575
        %v3634 = vadd.f32 %v3244, %v3580
        %v3635 = vadd.f32 %v3245, %v3585
        %v3636 = vadd.f32 %v3246, %v3590
        %v3637 = vadd.f32 %v3247, %v3595
        %v3638 = vadd.f32 %v3248, %v3600
        %v3639 = vadd.f32 %v3249, %v3605
        %v3640 = vld [vmem:[%s2] sm:$0x1]
        %v3642 = vlaneseq
        %v3643 = vshrl.u32 %v3642, 7
        %v3644 = vsub.s32 0, %v3643
        %v3645 = vrot.slane %v3640, %v3644
        %v3647 = vadd.f32 %v3608, %v3645
        %v3648 = vadd.f32 %v3609, %v3645
        %v3649 = vadd.f32 %v3610, %v3645
        %v3650 = vadd.f32 %v3611, %v3645
        %v3651 = vadd.f32 %v3612, %v3645
        %v3652 = vadd.f32 %v3613, %v3645
        %v3653 = vadd.f32 %v3614, %v3645
        %v3654 = vadd.f32 %v3615, %v3645
        %v3655 = vadd.f32 %v3616, %v3645
        %v3656 = vadd.f32 %v3617, %v3645
        %v3657 = vadd.f32 %v3618, %v3645
        %v3658 = vadd.f32 %v3619, %v3645
        %v3659 = vadd.f32 %v3620, %v3645
        %v3660 = vadd.f32 %v3621, %v3645
        %v3661 = vadd.f32 %v3622, %v3645
        %v3662 = vadd.f32 %v3623, %v3645
        %v3663 = vadd.f32 %v3624, %v3645
        %v3664 = vadd.f32 %v3625, %v3645
        %v3665 = vadd.f32 %v3626, %v3645
        %v3666 = vadd.f32 %v3627, %v3645
        %v3667 = vadd.f32 %v3628, %v3645
        %v3668 = vadd.f32 %v3629, %v3645
        %v3669 = vadd.f32 %v3630, %v3645
        %v3670 = vadd.f32 %v3631, %v3645
        %v3671 = vadd.f32 %v3632, %v3645
        %v3672 = vadd.f32 %v3633, %v3645
        %v3673 = vadd.f32 %v3634, %v3645
        %v3674 = vadd.f32 %v3635, %v3645
        %v3675 = vadd.f32 %v3636, %v3645
        %v3676 = vadd.f32 %v3637, %v3645
        %v3677 = vadd.f32 %v3638, %v3645
        %v3678 = vadd.f32 %v3639, %v3645
        %3679 = vst [vmem:[%s177] sm:$0xff] %v3647
        %3680 = vst [vmem:[%s177 + $0x8] sm:$0xff] %v3648
        %3681 = vst [vmem:[%s177 + $0x10] sm:$0xff] %v3649
        %3682 = vst [vmem:[%s177 + $0x18] sm:$0xff] %v3650
        %3683 = vst [vmem:[%s177 + $0x20] sm:$0xff] %v3651
        %3684 = vst [vmem:[%s177 + $0x28] sm:$0xff] %v3652
        %3685 = vst [vmem:[%s177 + $0x30] sm:$0xff] %v3653
        %3686 = vst [vmem:[%s177 + $0x38] sm:$0xff] %v3654
        %3687 = vst [vmem:[%s177 + $0x40] sm:$0xff] %v3655
        %3688 = vst [vmem:[%s177 + $0x48] sm:$0xff] %v3656
        %3689 = vst [vmem:[%s177 + $0x50] sm:$0xff] %v3657
        %3690 = vst [vmem:[%s177 + $0x58] sm:$0xff] %v3658
        %3691 = vst [vmem:[%s177 + $0x60] sm:$0xff] %v3659
        %3692 = vst [vmem:[%s177 + $0x68] sm:$0xff] %v3660
        %3693 = vst [vmem:[%s177 + $0x70] sm:$0xff] %v3661
        %3694 = vst [vmem:[%s177 + $0x78] sm:$0xff] %v3662
        %3695 = vst [vmem:[%s177 + $0x80] sm:$0xff] %v3663
        %3696 = vst [vmem:[%s177 + $0x88] sm:$0xff] %v3664
        %3697 = vst [vmem:[%s177 + $0x90] sm:$0xff] %v3665
        %3698 = vst [vmem:[%s177 + $0x98] sm:$0xff] %v3666
        %3699 = vst [vmem:[%s177 + $0xa0] sm:$0xff] %v3667
        %3700 = vst [vmem:[%s177 + $0xa8] sm:$0xff] %v3668
        %3701 = vst [vmem:[%s177 + $0xb0] sm:$0xff] %v3669
        %3702 = vst [vmem:[%s177 + $0xb8] sm:$0xff] %v3670
        %3703 = vst [vmem:[%s177 + $0xc0] sm:$0xff] %v3671
        %3704 = vst [vmem:[%s177 + $0xc8] sm:$0xff] %v3672
        %3705 = vst [vmem:[%s177 + $0xd0] sm:$0xff] %v3673
        %3706 = vst [vmem:[%s177 + $0xd8] sm:$0xff] %v3674
        %3707 = vst [vmem:[%s177 + $0xe0] sm:$0xff] %v3675
        %3708 = vst [vmem:[%s177 + $0xe8] sm:$0xff] %v3676
        %3709 = vst [vmem:[%s177 + $0xf0] sm:$0xff] %v3677
        %3710 = vst [vmem:[%s177 + $0xf8] sm:$0xff] %v3678
        %s3711 = sand.u32 %s107, 1
        %s3712 = scalar_lea.sflag [#allocation3], %s3711
        %s3713 = sand.u32 %s107, 1
        %s3714 = smul.addr %s3713, 256
        %s3715 = scalar_lea.vmem [#allocation2], %s3714
        // Predicated region
        $region33: #{tpu_custom_call.1} parent=31 // pred_check
          %p3716 = pneg %p117
        $region34: #{tpu_custom_call.1} parent=31 // pred_check_branch
          %3718 = sbr.rel (%p3716) target = $region36
        $region35: #{tpu_custom_call.1} parent=31 // pred_region
          %s3719 = smul.u32 16, %s22
          %s3721 = ssub.s32 4096, 4096
          %3722 = vsyncadd %s3712, %s3721
          %s3723 = smul.addr %s3719, 2
          %s3724 = smul.addr %s21, 32
          %s3725 = sadd.s32 %s3723, %s3724
          %s3726 = smul.addr %s3725, 128
          %s3727 = scalar_lea.hbm %s3, %s3726
          %s3728 = sshll.u32 %s3715, 4
          %s3729 = int_to_ptr.vmem [resolvable:$true] %s3728
          %3734 = dma.vmem_to_hbm [thread:$0]  %s3729, 4096, %s3727, %s3712, 128, 128, 8
        $region36: #{tpu_custom_call.1} parent=31 // pred_fallthru
          _
      $region32: #{tpu_custom_call.1} parent=5 // pred_fallthru
        _
      %p3735 = scmp.le.s32.totalorder 2, %s12
      // Predicated region
      $region37: #{tpu_custom_call.1} parent=5 // pred_check
        %p3736 = pneg %p3735
      $region38: #{tpu_custom_call.1} parent=5 // pred_check_branch
        %3738 = sbr.rel (%p3736) target = $region40
      $region39: #{tpu_custom_call.1} parent=5 // pred_region
        %s3739 = ssub.s32 %s12, 2
        // Predicated region
        $region41: #{tpu_custom_call.1} parent=39 // pred_check
          %p3740 = pneg %p123
        $region42: #{tpu_custom_call.1} parent=39 // pred_check_branch
          %3742 = sbr.rel (%p3740) target = $region44
        $region43: #{tpu_custom_call.1} parent=39 // pred_region
          %s3743 = sand.u32 %s108, 1
          %s3744 = scalar_lea.sflag [#allocation3], %s3743
          %s3745 = sand.u32 %s108, 1
          %s3746 = smul.addr %s3745, 256
          %s3747 = scalar_lea.vmem [#allocation2], %s3746
          %3748 = dma.done %s3744, 4096
        $region44: #{tpu_custom_call.1} parent=39 // pred_fallthru
          _
      $region40: #{tpu_custom_call.1} parent=5 // pred_fallthru
        _
    $region6: #{tpu_custom_call.1} parent=1 // loop_footer
      %s16 = sadd.s32 1, %s12
    $region7: #{tpu_custom_call.1} parent=1 // loop_footer_branch
      %11 = sbr.rel target = $region3
    $region8: #{tpu_custom_call.1} parent=1 // loop_exit
      _
    %3749 = vsyncpa [#allocation3], 1
    %s3750 = scalar_lea.sflag [#allocation3], 1
    %3751 = vsyncpa %s3750, 1

</llo_original>
